<compile_context>
chip_gen: v7x
topology: tpu7x:2x2x1
jax: 0.10.0
libtpu: 0.0.40
codegen_flags: <defaults>
</compile_context>

<pallas_src>
import math

import jax
import jax.numpy as jnp
from jax.experimental import pallas as pl
from jax.experimental.pallas import tpu as pltpu


# ----------------------------------------------------------------------------
# Pallas kernel
# ----------------------------------------------------------------------------
def make_posterior_encoder_kernel(in_channels, out_channels, hidden,
                                  kernel_size, dilations, t_tile, halo,
                                  max_pad, tau, use_im2col):
    H = hidden
    K = kernel_size
    n_layers = len(dilations)
    center = (K - 1) // 2
    Te = t_tile + 2 * halo            # extended (haloed) tile width

    def kernel(x_ref, mask_ref, noise_ref,
               pre_w_ref, pre_b_ref, in_w_ref, in_b_ref,
               rs_w_ref, rs_b_ref, proj_w_ref, proj_b_ref,
               z_ref, m_ref, logs_ref,
               h_pad_ref, skip_ref, *maybe_stack):
        stack_ref = maybe_stack[0] if use_im2col else None

        x = x_ref[0, 0]                         # (C_in, Te) bf16
        mask_e = mask_ref[0, 0]                 # (1, Te)    f32
        # Hoisted once: JAX does not CSE broadcast_in_dim, so re-broadcasting
        # the mask per layer would be pure VPU/store filler.
        mask_h = jnp.broadcast_to(mask_e, (H, Te))

        # ---- pre: 1x1 conv, bf16 operands / f32 MXU accumulation
        h0 = (jnp.dot(pre_w_ref[...], x, preferred_element_type=jnp.float32)
              + pre_b_ref[...]) * mask_h        # (H, Te) f32

        # Residual stream h lives in f32 inside the zero-haloed padded scratch
        # (the halo provides the conv's zero "same" padding and keeps all tap
        # reads in bounds); only matmul operands are rounded to bf16.
        if max_pad > 0:
            zeros_edge = jnp.zeros((H, max_pad), jnp.float32)
            h_pad_ref[:, :max_pad] = zeros_edge
            h_pad_ref[:, max_pad + Te:] = zeros_edge
        h_pad_ref[:, max_pad:max_pad + Te] = h0
        skip_ref[...] = jnp.zeros_like(skip_ref)

        # ---- one WN layer: dilated conv + gated activation + res/skip 1x1.
        # `i` may be dynamic (fori_loop) but `d` (hence all lane offsets) is
        # always a static Python int.
        def wn_layer(i, d):
            if use_im2col:
                # im2col: K shifted (H, Te) views -> (K*H, Te); the whole
                # dilated conv is ONE MXU matmul with contraction K*H.
                for k in range(K):
                    start = max_pad + d * (k - center)
                    stack_ref[k * H:(k + 1) * H, :] = (
                        h_pad_ref[:, start:start + Te].astype(jnp.bfloat16))
                x_in = (jnp.dot(in_w_ref[i], stack_ref[...],
                                preferred_element_type=jnp.float32)
                        + in_b_ref[i])                       # (2H, Te) f32
            else:
                # v5e-friendly no-stack variant: K accumulating dots (no
                # (K*H, Te) store/reload traffic on the single vst slot).
                w_i = in_w_ref[i]                            # (2H, K*H) bf16
                x_in = jnp.zeros((2 * H, Te), jnp.float32)
                for k in range(K):
                    start = max_pad + d * (k - center)
                    tap = h_pad_ref[:, start:start + Te].astype(jnp.bfloat16)
                    x_in = x_in + jnp.dot(w_i[:, k * H:(k + 1) * H], tap,
                                          preferred_element_type=jnp.float32)
                x_in = x_in + in_b_ref[i]

            # fused_add_tanh_sigmoid_multiply (g is None -> g_l = 0)
            acts = jnp.tanh(x_in[:H]) * jax.nn.sigmoid(x_in[H:])
            rs = (jnp.dot(rs_w_ref[i], acts.astype(jnp.bfloat16),
                          preferred_element_type=jnp.float32)
                  + rs_b_ref[i])                             # (2H, Te) f32
            # Uniform update for every layer: the wrapper moved the last
            # layer's (H-row) weights into the skip rows and zeroed the
            # residual rows, so rs[:H] == 0 there (h unused afterwards).
            h_cur = h_pad_ref[:, max_pad:max_pad + Te]
            h_pad_ref[:, max_pad:max_pad + Te] = (h_cur + rs[:H]) * mask_h
            skip_ref[...] = skip_ref[...] + rs[H:]

        if len(set(dilations)) == 1:
            # Real VITS posterior encoder (dilation_rate == 1) takes this
            # path: fori_loop bounds live ranges / code size across n_layers.
            d0 = dilations[0]

            def body(i, carry):
                wn_layer(i, d0)
                return carry

            jax.lax.fori_loop(0, n_layers, body, 0)
        else:
            # TODO(synk): mixed dilations keep the layer loop statically
            # unrolled so all lane offsets stay static.
            for i in range(n_layers):
                wn_layer(i, dilations[i])

        # ---- epilogue on the central t_tile columns only
        enc = (skip_ref[:, halo:halo + t_tile]
               * mask_h[:, halo:halo + t_tile]).astype(jnp.bfloat16)
        mask_c = mask_e[:, halo:halo + t_tile]               # (1, t_tile)
        stats = (jnp.dot(proj_w_ref[...], enc,
                         preferred_element_type=jnp.float32)
                 + proj_b_ref[...]) * mask_c                 # (2*out, t_tile)
        m = stats[:out_channels]
        logs = stats[out_channels:]
        z = (m + noise_ref[0] * tau * jnp.exp(logs)) * mask_c

        z_ref[0] = z.astype(z_ref.dtype)
        m_ref[0] = m.astype(m_ref.dtype)
        logs_ref[0] = logs.astype(logs_ref.dtype)

    return kernel


# ----------------------------------------------------------------------------
# Wrapper
# ----------------------------------------------------------------------------
def posterior_encoder_forward(x, x_lengths, noise, params, *, in_channels,
                              out_channels, hidden, kernel_size,
                              dilation_rate, n_layers, tau=1.0,
                              t_tile=512, use_im2col=True):
    B, C_in, T = x.shape
    assert C_in == in_channels
    H = hidden
    K = kernel_size
    assert K % 2 == 1, "odd kernel_size assumed (VITS uses 5)"
    out_dtype = x.dtype

    dilations = tuple(dilation_rate ** i for i in range(n_layers))
    max_pad = max(dilations) * (K - 1) // 2          # widest single-layer pad
    halo = sum(d * (K - 1) // 2 for d in dilations)  # full WN receptive field

    # ---- time tiling: lane-dense (multiple of 128) tiles + halo
    t_tile = max(128, (t_tile // 128) * 128)
    t_tile = min(t_tile, max(128, -(-T // 128) * 128))   # no bigger than needed
    n_t = -(-T // t_tile)
    Tp = n_t * t_tile
    Te = t_tile + 2 * halo

    pre_w, pre_b, in_w, in_b, rs_w, rs_b, proj_w, proj_b = params

    # Fuse the K conv taps into one matmul weight (n_layers, 2H, K*H); columns
    # [k*H:(k+1)*H] hold tap k -- matches the kernel's im2col stack layout.
    in_w_fused = jnp.reshape(jnp.transpose(in_w, (0, 1, 3, 2)),
                             (n_layers, 2 * H, K * H))
    # Last WN layer has only H (skip) output channels in PyTorch: move its
    # weights/bias into the skip rows [H:2H] and zero the residual rows so the
    # fori_loop body is uniform across layers.
    rs_w_u = rs_w.at[n_layers - 1].set(
        jnp.concatenate([jnp.zeros((H, H), rs_w.dtype),
                         rs_w[n_layers - 1, :H]], axis=0))
    rs_b_u = rs_b.at[n_layers - 1].set(
        jnp.concatenate([jnp.zeros((H, 1), rs_b.dtype),
                         rs_b[n_layers - 1, :H]], axis=0))

    wcast = lambda w: w.astype(jnp.bfloat16)   # f32 accumulation stays in-kernel
    weights = (wcast(pre_w), pre_b.astype(jnp.float32),
               wcast(in_w_fused), in_b.astype(jnp.float32),
               wcast(rs_w_u), rs_b_u.astype(jnp.float32),
               wcast(proj_w), proj_b.astype(jnp.float32))

    # ---- sequence mask (module semantics), lane-padded to Tp
    mask_full = (jnp.arange(Tp)[None, None, :]
                 < x_lengths[:, None, None]).astype(jnp.float32)   # (B,1,Tp)
    x_mask = mask_full[:, :, :T].astype(out_dtype)                  # returned

    # ---- haloed per-tile windows of x and mask: (B, n_t, C/1, Te).  With a
    # full receptive-field halo each tile is exact: corrupted edge bands never
    # reach the central t_tile columns.  Beyond the real sequence the mask is
    # 0, matching the conv's zero "same" padding.
    x_pad = jnp.pad(x.astype(jnp.bfloat16),
                    ((0, 0), (0, 0), (halo, Tp - T + halo)))
    mask_pad = jnp.pad(mask_full, ((0, 0), (0, 0), (halo, halo)))
    win = jnp.arange(n_t)[:, None] * t_tile + jnp.arange(Te)[None, :]
    x_halo = jnp.transpose(x_pad[:, :, win], (0, 2, 1, 3))        # (B,n_t,C,Te)
    mask_halo = jnp.transpose(mask_pad[:, :, win], (0, 2, 1, 3))  # (B,n_t,1,Te)
    noise_p = jnp.pad(noise.astype(jnp.float32), ((0, 0), (0, 0), (0, Tp - T)))

    kernel = make_posterior_encoder_kernel(
        in_channels, out_channels, H, K, dilations, t_tile, halo, max_pad,
        tau, use_im2col)

    out_sds = jax.ShapeDtypeStruct((B, out_channels, Tp), out_dtype)
    out_spec = pl.BlockSpec((1, out_channels, t_tile), lambda b, t: (b, 0, t))

    data_specs = [
        pl.BlockSpec((1, 1, in_channels, Te), lambda b, t: (b, t, 0, 0)),  # x
        pl.BlockSpec((1, 1, 1, Te), lambda b, t: (b, t, 0, 0)),            # mask
        pl.BlockSpec((1, out_channels, t_tile), lambda b, t: (b, 0, t)),   # noise
    ]

    def weight_specs(single_buffer):
        specs = []
        for w in weights:
            nd = w.ndim
            kw = dict(pipeline_mode=pl.Buffered(1)) if single_buffer else {}
            specs.append(pl.BlockSpec(w.shape,
                                      lambda b, t, _nd=nd: (0,) * _nd, **kw))
        return specs

    scratch = [pltpu.VMEM((H, Te + 2 * max_pad), jnp.float32),  # residual h
               pltpu.VMEM((H, Te), jnp.float32)]                # skip accum
    if use_im2col:
        scratch.append(pltpu.VMEM((K * H, Te), jnp.bfloat16))   # im2col stack

    # ---- VMEM budget follows the tiling decision (not a flat constant)
    def nbytes(shape, dtype):
        return math.prod(shape) * jnp.dtype(dtype).itemsize

    weight_bytes = sum(int(w.size) * w.dtype.itemsize for w in weights)
    scratch_bytes = (nbytes((H, Te + 2 * max_pad), jnp.float32)
                     + nbytes((H, Te), jnp.float32)
                     + (nbytes((K * H, Te), jnp.bfloat16) if use_im2col else 0))
    block_bytes = 2 * (nbytes((in_channels, Te), jnp.bfloat16)
                       + nbytes((1, Te), jnp.float32)
                       + 4 * nbytes((out_channels, t_tile), jnp.float32))
    live_bytes = 8 * nbytes((H, Te), jnp.float32)   # x_in/acts/rs/mask_h etc.

    def vmem_limit(single_buffer):
        need = (scratch_bytes + block_bytes + live_bytes
                + weight_bytes * (1 if single_buffer else 2))
        return int(min(100 * 2 ** 20, max(16 * 2 ** 20, 2 * need)))

    flops = 2 * B * n_t * (Te * H * in_channels
                           + n_layers * Te * (2 * H * K * H + 2 * H * H)
                           + t_tile * 2 * out_channels * H)
    transcendentals = B * n_t * (2 * n_layers * H * Te + out_channels * t_tile)
    bytes_accessed = (x_halo.size * 2 + mask_halo.size * 4 + noise_p.size * 4
                      + 3 * B * out_channels * Tp * 4 + weight_bytes)
    cost = pl.CostEstimate(flops=int(flops),
                           transcendentals=int(transcendentals),
                           bytes_accessed=int(bytes_accessed))

    def call(single_buffer_weights):
        grid_spec = pltpu.PrefetchScalarGridSpec(
            num_scalar_prefetch=0,
            grid=(B, n_t),
            in_specs=data_specs + weight_specs(single_buffer_weights),
            out_specs=(out_spec, out_spec, out_spec),
            scratch_shapes=scratch)
        return pl.pallas_call(
            kernel,
            out_shape=(out_sds, out_sds, out_sds),
            grid_spec=grid_spec,
            compiler_params=pltpu.CompilerParams(
                # Both axes are independent, so either can be split across
                # TensorCores (keeps the 2nd v7x core busy even when B == 1).
                dimension_semantics=("parallel", "parallel"),
                vmem_limit_bytes=vmem_limit(single_buffer_weights)),
            cost_estimate=cost,
        )(x_halo, mask_halo, noise_p, *weights)

    try:
        # Grid-invariant weights: single-buffer them (their block index never
        # changes), halving the weight VMEM footprint (~12 MiB fused conv
        # weight for real VITS) -> larger time tile headroom on v7x.
        z, m, logs = call(single_buffer_weights=True)
    except Exception:
        # Graceful fallback for JAX builds without BlockSpec.pipeline_mode.
        z, m, logs = call(single_buffer_weights=False)

    return z[:, :, :T], m[:, :, :T], logs[:, :, :T], x_mask


# ----------------------------------------------------------------------------
# Deterministic parameter init (shapes follow the module's __init__)
# ----------------------------------------------------------------------------
def init_params(key, in_channels, out_channels, hidden, kernel_size, n_layers):
    ks = jax.random.split(key, 8)
    s = 0.1
    H = hidden
    pre_w = s * jax.random.normal(ks[0], (H, in_channels), jnp.float32)
    pre_b = s * jax.random.normal(ks[1], (H, 1), jnp.float32)
    # dilated conv weights in PyTorch layout (layer, C_out, C_in, K)
    in_w = s * jax.random.normal(ks[2], (n_layers, 2 * H, H, kernel_size),
                                 jnp.float32)
    in_b = s * jax.random.normal(ks[3], (n_layers, 2 * H, 1), jnp.float32)
    # res_skip stacked to 2H rows for all layers; last layer uses first H rows
    rs_w = s * jax.random.normal(ks[4], (n_layers, 2 * H, H), jnp.float32)
    rs_b = s * jax.random.normal(ks[5], (n_layers, 2 * H, 1), jnp.float32)
    proj_w = s * jax.random.normal(ks[6], (2 * out_channels, H), jnp.float32)
    proj_b = s * jax.random.normal(ks[7], (2 * out_channels, 1), jnp.float32)
    return (pre_w, pre_b, in_w, in_b, rs_w, rs_b, proj_w, proj_b)


# ----------------------------------------------------------------------------
# Pure-JAX reference (same math) for correctness check
# ----------------------------------------------------------------------------
def ref_forward(x, x_lengths, noise, params, *, in_channels, out_channels,
                hidden, kernel_size, dilation_rate, n_layers, tau=1.0,
                weight_round=None):
    H = hidden
    K = kernel_size
    wr = (lambda w: w) if weight_round is None else weight_round
    pre_w, pre_b, in_w, in_b, rs_w, rs_b, proj_w, proj_b = params
    B, C, T = x.shape
    x_mask = (jnp.arange(T)[None, None, :]
              < x_lengths[:, None, None]).astype(x.dtype)

    h = (jnp.einsum('oc,bct->bot', wr(pre_w), x) + pre_b[None]) * x_mask
    output = jnp.zeros_like(h)
    for i in range(n_layers):
        d = dilation_rate ** i
        pad = d * (K - 1) // 2
        hpad = jnp.pad(h, ((0, 0), (0, 0), (pad, pad)))
        x_in = in_b[i][None]
        for k in range(K):
            x_in = x_in + jnp.einsum('oc,bct->bot', wr(in_w[i, :, :, k]),
                                     hpad[:, :, k * d:k * d + T])
        acts = jnp.tanh(x_in[:, :H]) * jax.nn.sigmoid(x_in[:, H:])
        rs = jnp.einsum('oc,bct->bot', wr(rs_w[i]), acts) + rs_b[i][None]
        if i < n_layers - 1:
            h = (h + rs[:, :H]) * x_mask
            output = output + rs[:, H:]
        else:
            output = output + rs[:, :H]
    enc = output * x_mask
    stats = (jnp.einsum('oc,bct->bot', wr(proj_w), enc) + proj_b[None]) * x_mask
    m, logs = stats[:, :out_channels], stats[:, out_channels:]
    z = (m + noise * tau * jnp.exp(logs)) * x_mask
    return z, m, logs, x_mask


# ----------------------------------------------------------------------------
if __name__ == "__main__":
    in_channels, out_channels, hidden = 16, 8, 32
    kernel_size = 5
    tau = 1.0

    # Config A: real-VITS-style dilation_rate=1 (fori_loop + im2col path),
    #           T=200 -> two 128-wide time tiles (exercises the halo logic).
    # Config B: dilation_rate=2 (static-unroll path) + no-stack conv variant.
    configs = [
        dict(dilation_rate=1, n_layers=4, B=2, T=200, t_tile=128,
             use_im2col=True),
        dict(dilation_rate=2, n_layers=3, B=2, T=100, t_tile=128,
             use_im2col=False),
    ]

    for cfg in configs:
        B, T = cfg["B"], cfg["T"]
        key = jax.random.PRNGKey(0)
        kx, kn, kp = jax.random.split(key, 3)
        x = jax.random.normal(kx, (B, in_channels, T), jnp.float32)
        x_lengths = jnp.array([T, 3 * T // 4], jnp.int32)
        # torch.randn_like(m) equivalent: sampled on host and passed in so the
        # kernel and the reference see identical noise.
        noise = jax.random.normal(kn, (B, out_channels, T), jnp.float32)
        params = init_params(kp, in_channels, out_channels, hidden,
                             kernel_size, cfg["n_layers"])

        z, m, logs, x_mask = posterior_encoder_forward(
            x, x_lengths, noise, params, in_channels=in_channels,
            out_channels=out_channels, hidden=hidden, kernel_size=kernel_size,
            dilation_rate=cfg["dilation_rate"], n_layers=cfg["n_layers"],
            tau=tau, t_tile=cfg["t_tile"], use_im2col=cfg["use_im2col"])
        z = jax.block_until_ready(z)

        # Reference sees the same bf16-rounded weights and bf16-rounded x, so
        # the remaining mismatch is in-kernel bf16 rounding of matmul operands
        # (amplified for z by exp(logs)) -> per-output tolerances below.
        wround = lambda w: w.astype(jnp.bfloat16).astype(jnp.float32)
        x_r = x.astype(jnp.bfloat16).astype(jnp.float32)
        z_r, m_r, logs_r, mask_r = ref_forward(
            x_r, x_lengths, noise, params, in_channels=in_channels,
            out_channels=out_channels, hidden=hidden, kernel_size=kernel_size,
            dilation_rate=cfg["dilation_rate"], n_layers=cfg["n_layers"],
            tau=tau, weight_round=wround)

        assert z.shape == (B, out_channels, T)
        checks = ((z, z_r, "z", 1e-1), (m, m_r, "m", 5e-2),
                  (logs, logs_r, "logs", 5e-2), (x_mask, mask_r, "mask", 1e-6))
        for got, want, name, tol in checks:
            max_err = float(jnp.max(jnp.abs(got - want)))
            assert jnp.allclose(got, want, atol=tol, rtol=tol), \
                f"{name} (cfg={cfg}) max_err={max_err}"

    print("KERNEL_OK")
</pallas_src>

<mosaic_0001>
module attributes {stable_mosaic.version = 11 : i64} {
  func.func @kernel(%arg0: i32, %arg1: i32, %arg2: memref<1x1x16x144xbf16, #tpu.memory_space<vmem>>, %arg3: memref<1x1x1x144xf32, #tpu.memory_space<vmem>>, %arg4: memref<1x8x128xf32, #tpu.memory_space<vmem>>, %arg5: memref<32x16xbf16, #tpu.memory_space<vmem>>, %arg6: memref<32x1xf32, #tpu.memory_space<vmem>>, %arg7: memref<4x64x160xbf16, #tpu.memory_space<vmem>>, %arg8: memref<4x64x1xf32, #tpu.memory_space<vmem>>, %arg9: memref<4x64x32xbf16, #tpu.memory_space<vmem>>, %arg10: memref<4x64x1xf32, #tpu.memory_space<vmem>>, %arg11: memref<16x32xbf16, #tpu.memory_space<vmem>>, %arg12: memref<16x1xf32, #tpu.memory_space<vmem>>, %arg13: memref<1x8x128xf32, #tpu.memory_space<vmem>>, %arg14: memref<1x8x128xf32, #tpu.memory_space<vmem>>, %arg15: memref<1x8x128xf32, #tpu.memory_space<vmem>>, %arg16: memref<32x148xf32, #tpu.memory_space<vmem>>, %arg17: memref<32x144xf32, #tpu.memory_space<vmem>>, %arg18: memref<160x144xbf16, #tpu.memory_space<vmem>>) attributes {dimension_semantics = [#tpu.dimension_semantics<parallel>, #tpu.dimension_semantics<parallel>], iteration_bounds = array<i64: 2, 2>, scalar_prefetch = 0 : i64, scratch_operands = 3 : i64, tpu.core_type = #tpu.core_type<tc>, window_params = [{transform_indices = @transform_0, window_bounds = array<i64: 1, 1, 16, 144>}, {transform_indices = @transform_1, window_bounds = array<i64: 1, 1, 1, 144>}, {transform_indices = @transform_2, window_bounds = array<i64: 1, 8, 128>}, {pipeline_mode = #tpu.pipeline_mode<synchronous>, transform_indices = @transform_3, window_bounds = array<i64: 32, 16>}, {pipeline_mode = #tpu.pipeline_mode<synchronous>, transform_indices = @transform_4, window_bounds = array<i64: 32, 1>}, {pipeline_mode = #tpu.pipeline_mode<synchronous>, transform_indices = @transform_5, window_bounds = array<i64: 4, 64, 160>}, {pipeline_mode = #tpu.pipeline_mode<synchronous>, transform_indices = @transform_6, window_bounds = array<i64: 4, 64, 1>}, {pipeline_mode = #tpu.pipeline_mode<synchronous>, transform_indices = @transform_7, window_bounds = array<i64: 4, 64, 32>}, {pipeline_mode = #tpu.pipeline_mode<synchronous>, transform_indices = @transform_8, window_bounds = array<i64: 4, 64, 1>}, {pipeline_mode = #tpu.pipeline_mode<synchronous>, transform_indices = @transform_9, window_bounds = array<i64: 16, 32>}, {pipeline_mode = #tpu.pipeline_mode<synchronous>, transform_indices = @transform_10, window_bounds = array<i64: 16, 1>}, {transform_indices = @transform_11, window_bounds = array<i64: 1, 8, 128>}, {transform_indices = @transform_12, window_bounds = array<i64: 1, 8, 128>}, {transform_indices = @transform_13, window_bounds = array<i64: 1, 8, 128>}]} {
    %c0 = arith.constant 0 : index
    %c0_0 = arith.constant 0 : index
    %c0_1 = arith.constant 0 : index
    %c0_2 = arith.constant 0 : index
    %0 = vector.load %arg2[%c0, %c0_0, %c0_1, %c0_2] : memref<1x1x16x144xbf16, #tpu.memory_space<vmem>>, vector<1x1x16x144xbf16>
    %1 = vector.shape_cast %0 : vector<1x1x16x144xbf16> to vector<16x144xbf16>
    %c0_3 = arith.constant 0 : index
    %c0_4 = arith.constant 0 : index
    %c0_5 = arith.constant 0 : index
    %c0_6 = arith.constant 0 : index
    %2 = vector.load %arg3[%c0_3, %c0_4, %c0_5, %c0_6] : memref<1x1x1x144xf32, #tpu.memory_space<vmem>>, vector<1x1x1x144xf32>
    %3 = vector.shape_cast %2 : vector<1x1x1x144xf32> to vector<1x144xf32>
    %4 = vector.shape_cast %3 : vector<1x144xf32> to vector<1x144xf32>
    %5 = vector.broadcast %4 : vector<1x144xf32> to vector<32x144xf32>
    %c0_7 = arith.constant 0 : index
    %c0_8 = arith.constant 0 : index
    %6 = vector.load %arg5[%c0_7, %c0_8] : memref<32x16xbf16, #tpu.memory_space<vmem>>, vector<32x16xbf16>
    %cst = arith.constant dense<0.000000e+00> : vector<32x144xf32>
    %7 = tpu.matmul %6, %1, %cst {dimension_numbers = #tpu.dot_dimension_numbers<[1], [0], [0], [1], [0, 0, 1, 1], [], []>} : vector<32x16xbf16>, vector<16x144xbf16>, vector<32x144xf32> -> vector<32x144xf32>
    %c0_9 = arith.constant 0 : index
    %c0_10 = arith.constant 0 : index
    %8 = vector.load %arg6[%c0_9, %c0_10] : memref<32x1xf32, #tpu.memory_space<vmem>>, vector<32x1xf32>
    %9 = vector.broadcast %8 : vector<32x1xf32> to vector<32x144xf32>
    %10 = arith.addf %7, %9 : vector<32x144xf32>
    %11 = arith.mulf %10, %5 : vector<32x144xf32>
    %cst_11 = arith.constant 0.000000e+00 : f32
    %12 = vector.broadcast %cst_11 : f32 to vector<32x2xf32>
    %c0_12 = arith.constant 0 : index
    %c0_13 = arith.constant 0 : index
    %13 = vector.load %arg16[%c0_12, %c0_13] : memref<32x148xf32, #tpu.memory_space<vmem>>, vector<32x2xf32>
    tpu.vector_store %arg16[%c0_12, %c0_13], %12 {strides = array<i32>} : memref<32x148xf32, #tpu.memory_space<vmem>>, vector<32x2xf32>,
    %c0_14 = arith.constant 0 : index
    %c146 = arith.constant 146 : index
    %14 = vector.load %arg16[%c0_14, %c146] : memref<32x148xf32, #tpu.memory_space<vmem>>, vector<32x2xf32>
    tpu.vector_store %arg16[%c0_14, %c146], %12 {strides = array<i32>} : memref<32x148xf32, #tpu.memory_space<vmem>>, vector<32x2xf32>,
    %c0_15 = arith.constant 0 : index
    %c2 = arith.constant 2 : index
    %15 = vector.load %arg16[%c0_15, %c2] : memref<32x148xf32, #tpu.memory_space<vmem>>, vector<32x144xf32>
    tpu.vector_store %arg16[%c0_15, %c2], %11 {strides = array<i32>} : memref<32x148xf32, #tpu.memory_space<vmem>>, vector<32x144xf32>,
    %cst_16 = arith.constant 0.000000e+00 : f32
    %16 = vector.broadcast %cst_16 : f32 to vector<32x144xf32>
    %c0_17 = arith.constant 0 : index
    %c0_18 = arith.constant 0 : index
    %17 = vector.load %arg17[%c0_17, %c0_18] : memref<32x144xf32, #tpu.memory_space<vmem>>, vector<32x144xf32>
    tpu.vector_store %arg17[%c0_17, %c0_18], %16 {strides = array<i32>} : memref<32x144xf32, #tpu.memory_space<vmem>>, vector<32x144xf32>,
    %c0_i32 = arith.constant 0 : i32
    %c4_i32 = arith.constant 4 : i32
    %18 = arith.addi %c0_i32, %c4_i32 : i32
    %c1_i32 = arith.constant 1 : i32
    scf.for %arg19 = %c0_i32 to %18 step %c1_i32  : i32 {
      %c0_39 = arith.constant 0 : index
      %c0_40 = arith.constant 0 : index
      %51 = vector.load %arg16[%c0_39, %c0_40] : memref<32x148xf32, #tpu.memory_space<vmem>>, vector<32x144xf32>
      %52 = arith.truncf %51 : vector<32x144xf32> to vector<32x144xbf16>
      %c0_41 = arith.constant 0 : index
      %c0_42 = arith.constant 0 : index
      %53 = vector.load %arg18[%c0_41, %c0_42] : memref<160x144xbf16, #tpu.memory_space<vmem>>, vector<32x144xbf16>
      tpu.vector_store %arg18[%c0_41, %c0_42], %52 {strides = array<i32>} : memref<160x144xbf16, #tpu.memory_space<vmem>>, vector<32x144xbf16>,
      %c0_43 = arith.constant 0 : index
      %c1 = arith.constant 1 : index
      %54 = vector.load %arg16[%c0_43, %c1] : memref<32x148xf32, #tpu.memory_space<vmem>>, vector<32x144xf32>
      %55 = arith.truncf %54 : vector<32x144xf32> to vector<32x144xbf16>
      %c32 = arith.constant 32 : index
      %c0_44 = arith.constant 0 : index
      %56 = vector.load %arg18[%c32, %c0_44] : memref<160x144xbf16, #tpu.memory_space<vmem>>, vector<32x144xbf16>
      tpu.vector_store %arg18[%c32, %c0_44], %55 {strides = array<i32>} : memref<160x144xbf16, #tpu.memory_space<vmem>>, vector<32x144xbf16>,
      %c0_45 = arith.constant 0 : index
      %c2_46 = arith.constant 2 : index
      %57 = vector.load %arg16[%c0_45, %c2_46] : memref<32x148xf32, #tpu.memory_space<vmem>>, vector<32x144xf32>
      %58 = arith.truncf %57 : vector<32x144xf32> to vector<32x144xbf16>
      %c64 = arith.constant 64 : index
      %c0_47 = arith.constant 0 : index
      %59 = vector.load %arg18[%c64, %c0_47] : memref<160x144xbf16, #tpu.memory_space<vmem>>, vector<32x144xbf16>
      tpu.vector_store %arg18[%c64, %c0_47], %58 {strides = array<i32>} : memref<160x144xbf16, #tpu.memory_space<vmem>>, vector<32x144xbf16>,
      %c0_48 = arith.constant 0 : index
      %c3 = arith.constant 3 : index
      %60 = vector.load %arg16[%c0_48, %c3] : memref<32x148xf32, #tpu.memory_space<vmem>>, vector<32x144xf32>
      %61 = arith.truncf %60 : vector<32x144xf32> to vector<32x144xbf16>
      %c96 = arith.constant 96 : index
      %c0_49 = arith.constant 0 : index
      %62 = vector.load %arg18[%c96, %c0_49] : memref<160x144xbf16, #tpu.memory_space<vmem>>, vector<32x144xbf16>
      tpu.vector_store %arg18[%c96, %c0_49], %61 {strides = array<i32>} : memref<160x144xbf16, #tpu.memory_space<vmem>>, vector<32x144xbf16>,
      %c0_50 = arith.constant 0 : index
      %c4 = arith.constant 4 : index
      %63 = vector.load %arg16[%c0_50, %c4] : memref<32x148xf32, #tpu.memory_space<vmem>>, vector<32x144xf32>
      %64 = arith.truncf %63 : vector<32x144xf32> to vector<32x144xbf16>
      %c128 = arith.constant 128 : index
      %c0_51 = arith.constant 0 : index
      %65 = vector.load %arg18[%c128, %c0_51] : memref<160x144xbf16, #tpu.memory_space<vmem>>, vector<32x144xbf16>
      tpu.vector_store %arg18[%c128, %c0_51], %64 {strides = array<i32>} : memref<160x144xbf16, #tpu.memory_space<vmem>>, vector<32x144xbf16>,
      %66 = arith.index_cast %arg19 : i32 to index
      %c0_52 = arith.constant 0 : index
      %c0_53 = arith.constant 0 : index
      %67 = vector.load %arg7[%66, %c0_52, %c0_53] : memref<4x64x160xbf16, #tpu.memory_space<vmem>>, vector<1x64x160xbf16>
      %68 = vector.shape_cast %67 : vector<1x64x160xbf16> to vector<64x160xbf16>
      %c0_54 = arith.constant 0 : index
      %c0_55 = arith.constant 0 : index
      %69 = vector.load %arg18[%c0_54, %c0_55] : memref<160x144xbf16, #tpu.memory_space<vmem>>, vector<160x144xbf16>
      %cst_56 = arith.constant dense<0.000000e+00> : vector<64x144xf32>
      %70 = tpu.matmul %68, %69, %cst_56 {dimension_numbers = #tpu.dot_dimension_numbers<[1], [0], [0], [1], [0, 0, 1, 1], [], []>} : vector<64x160xbf16>, vector<160x144xbf16>, vector<64x144xf32> -> vector<64x144xf32>
      %71 = arith.index_cast %arg19 : i32 to index
      %c0_57 = arith.constant 0 : index
      %c0_58 = arith.constant 0 : index
      %72 = vector.load %arg8[%71, %c0_57, %c0_58] : memref<4x64x1xf32, #tpu.memory_space<vmem>>, vector<1x64x1xf32>
      %73 = vector.shape_cast %72 : vector<1x64x1xf32> to vector<64x1xf32>
      %74 = vector.broadcast %73 : vector<64x1xf32> to vector<64x144xf32>
      %75 = arith.addf %70, %74 : vector<64x144xf32>
      %76 = vector.extract_strided_slice %75 {offsets = [0, 0], sizes = [32, 144], strides = [1, 1]} : vector<64x144xf32> to vector<32x144xf32>
      %77 = math.tanh %76 : vector<32x144xf32>
      %78 = vector.extract_strided_slice %75 {offsets = [32, 0], sizes = [32, 144], strides = [1, 1]} : vector<64x144xf32> to vector<32x144xf32>
      %79 = arith.negf %78 : vector<32x144xf32>
      %80 = math.exp %79 : vector<32x144xf32>
      %cst_59 = arith.constant 1.000000e+00 : f32
      %81 = vector.broadcast %cst_59 : f32 to vector<32x144xf32>
      %82 = arith.addf %81, %80 : vector<32x144xf32>
      %83 = arith.divf %81, %82 : vector<32x144xf32>
      %84 = arith.mulf %77, %83 : vector<32x144xf32>
      %85 = arith.index_cast %arg19 : i32 to index
      %c0_60 = arith.constant 0 : index
      %c0_61 = arith.constant 0 : index
      %86 = vector.load %arg9[%85, %c0_60, %c0_61] : memref<4x64x32xbf16, #tpu.memory_space<vmem>>, vector<1x64x32xbf16>
      %87 = vector.shape_cast %86 : vector<1x64x32xbf16> to vector<64x32xbf16>
      %88 = arith.truncf %84 : vector<32x144xf32> to vector<32x144xbf16>
      %cst_62 = arith.constant dense<0.000000e+00> : vector<64x144xf32>
      %89 = tpu.matmul %87, %88, %cst_62 {dimension_numbers = #tpu.dot_dimension_numbers<[1], [0], [0], [1], [0, 0, 1, 1], [], []>} : vector<64x32xbf16>, vector<32x144xbf16>, vector<64x144xf32> -> vector<64x144xf32>
      %90 = arith.index_cast %arg19 : i32 to index
      %c0_63 = arith.constant 0 : index
      %c0_64 = arith.constant 0 : index
      %91 = vector.load %arg10[%90, %c0_63, %c0_64] : memref<4x64x1xf32, #tpu.memory_space<vmem>>, vector<1x64x1xf32>
      %92 = vector.shape_cast %91 : vector<1x64x1xf32> to vector<64x1xf32>
      %93 = vector.broadcast %92 : vector<64x1xf32> to vector<64x144xf32>
      %94 = arith.addf %89, %93 : vector<64x144xf32>
      %c0_65 = arith.constant 0 : index
      %c2_66 = arith.constant 2 : index
      %95 = vector.load %arg16[%c0_65, %c2_66] : memref<32x148xf32, #tpu.memory_space<vmem>>, vector<32x144xf32>
      %96 = vector.extract_strided_slice %94 {offsets = [0, 0], sizes = [32, 144], strides = [1, 1]} : vector<64x144xf32> to vector<32x144xf32>
      %97 = arith.addf %95, %96 : vector<32x144xf32>
      %98 = arith.mulf %97, %5 : vector<32x144xf32>
      %c0_67 = arith.constant 0 : index
      %c2_68 = arith.constant 2 : index
      %99 = vector.load %arg16[%c0_67, %c2_68] : memref<32x148xf32, #tpu.memory_space<vmem>>, vector<32x144xf32>
      tpu.vector_store %arg16[%c0_67, %c2_68], %98 {strides = array<i32>} : memref<32x148xf32, #tpu.memory_space<vmem>>, vector<32x144xf32>,
      %c0_69 = arith.constant 0 : index
      %c0_70 = arith.constant 0 : index
      %100 = vector.load %arg17[%c0_69, %c0_70] : memref<32x144xf32, #tpu.memory_space<vmem>>, vector<32x144xf32>
      %101 = vector.extract_strided_slice %94 {offsets = [32, 0], sizes = [32, 144], strides = [1, 1]} : vector<64x144xf32> to vector<32x144xf32>
      %102 = arith.addf %100, %101 : vector<32x144xf32>
      %c0_71 = arith.constant 0 : index
      %c0_72 = arith.constant 0 : index
      %103 = vector.load %arg17[%c0_71, %c0_72] : memref<32x144xf32, #tpu.memory_space<vmem>>, vector<32x144xf32>
      tpu.vector_store %arg17[%c0_71, %c0_72], %102 {strides = array<i32>} : memref<32x144xf32, #tpu.memory_space<vmem>>, vector<32x144xf32>,
    }
    %c4_i32_19 = arith.constant 4 : i32
    %c0_20 = arith.constant 0 : index
    %c8 = arith.constant 8 : index
    %19 = vector.load %arg17[%c0_20, %c8] : memref<32x144xf32, #tpu.memory_space<vmem>>, vector<32x128xf32>
    %20 = vector.extract_strided_slice %5 {offsets = [0, 8], sizes = [32, 128], strides = [1, 1]} : vector<32x144xf32> to vector<32x128xf32>
    %21 = arith.mulf %19, %20 : vector<32x128xf32>
    %22 = arith.truncf %21 : vector<32x128xf32> to vector<32x128xbf16>
    %23 = vector.extract_strided_slice %3 {offsets = [0, 8], sizes = [1, 128], strides = [1, 1]} : vector<1x144xf32> to vector<1x128xf32>
    %c0_21 = arith.constant 0 : index
    %c0_22 = arith.constant 0 : index
    %24 = vector.load %arg11[%c0_21, %c0_22] : memref<16x32xbf16, #tpu.memory_space<vmem>>, vector<16x32xbf16>
    %cst_23 = arith.constant dense<0.000000e+00> : vector<16x128xf32>
    %25 = tpu.matmul %24, %22, %cst_23 {dimension_numbers = #tpu.dot_dimension_numbers<[1], [0], [0], [1], [0, 0, 1, 1], [], []>} : vector<16x32xbf16>, vector<32x128xbf16>, vector<16x128xf32> -> vector<16x128xf32>
    %c0_24 = arith.constant 0 : index
    %c0_25 = arith.constant 0 : index
    %26 = vector.load %arg12[%c0_24, %c0_25] : memref<16x1xf32, #tpu.memory_space<vmem>>, vector<16x1xf32>
    %27 = vector.broadcast %26 : vector<16x1xf32> to vector<16x128xf32>
    %28 = arith.addf %25, %27 : vector<16x128xf32>
    %29 = vector.broadcast %23 : vector<1x128xf32> to vector<16x128xf32>
    %30 = arith.mulf %28, %29 : vector<16x128xf32>
    %31 = vector.extract_strided_slice %30 {offsets = [0, 0], sizes = [8, 128], strides = [1, 1]} : vector<16x128xf32> to vector<8x128xf32>
    %32 = vector.extract_strided_slice %30 {offsets = [8, 0], sizes = [8, 128], strides = [1, 1]} : vector<16x128xf32> to vector<8x128xf32>
    %c0_26 = arith.constant 0 : index
    %c0_27 = arith.constant 0 : index
    %c0_28 = arith.constant 0 : index
    %33 = vector.load %arg4[%c0_26, %c0_27, %c0_28] : memref<1x8x128xf32, #tpu.memory_space<vmem>>, vector<1x8x128xf32>
    %34 = vector.shape_cast %33 : vector<1x8x128xf32> to vector<8x128xf32>
    %cst_29 = arith.constant 1.000000e+00 : f32
    %35 = vector.broadcast %cst_29 : f32 to vector<8x128xf32>
    %36 = arith.mulf %34, %35 : vector<8x128xf32>
    %37 = math.exp %32 : vector<8x128xf32>
    %38 = arith.mulf %36, %37 : vector<8x128xf32>
    %39 = arith.addf %31, %38 : vector<8x128xf32>
    %40 = vector.broadcast %23 : vector<1x128xf32> to vector<8x128xf32>
    %41 = arith.mulf %39, %40 : vector<8x128xf32>
    %c0_30 = arith.constant 0 : index
    %c0_31 = arith.constant 0 : index
    %c0_32 = arith.constant 0 : index
    %42 = vector.load %arg13[%c0_30, %c0_31, %c0_32] : memref<1x8x128xf32, #tpu.memory_space<vmem>>, vector<1x8x128xf32>
    %43 = vector.shape_cast %42 : vector<1x8x128xf32> to vector<8x128xf32>
    %44 = vector.shape_cast %41 : vector<8x128xf32> to vector<1x8x128xf32>
    tpu.vector_store %arg13[%c0_30, %c0_31, %c0_32], %44 {strides = array<i32>} : memref<1x8x128xf32, #tpu.memory_space<vmem>>, vector<1x8x128xf32>,
    %c0_33 = arith.constant 0 : index
    %c0_34 = arith.constant 0 : index
    %c0_35 = arith.constant 0 : index
    %45 = vector.load %arg14[%c0_33, %c0_34, %c0_35] : memref<1x8x128xf32, #tpu.memory_space<vmem>>, vector<1x8x128xf32>
    %46 = vector.shape_cast %45 : vector<1x8x128xf32> to vector<8x128xf32>
    %47 = vector.shape_cast %31 : vector<8x128xf32> to vector<1x8x128xf32>
    tpu.vector_store %arg14[%c0_33, %c0_34, %c0_35], %47 {strides = array<i32>} : memref<1x8x128xf32, #tpu.memory_space<vmem>>, vector<1x8x128xf32>,
    %c0_36 = arith.constant 0 : index
    %c0_37 = arith.constant 0 : index
    %c0_38 = arith.constant 0 : index
    %48 = vector.load %arg15[%c0_36, %c0_37, %c0_38] : memref<1x8x128xf32, #tpu.memory_space<vmem>>, vector<1x8x128xf32>
    %49 = vector.shape_cast %48 : vector<1x8x128xf32> to vector<8x128xf32>
    %50 = vector.shape_cast %32 : vector<8x128xf32> to vector<1x8x128xf32>
    tpu.vector_store %arg15[%c0_36, %c0_37, %c0_38], %50 {strides = array<i32>} : memref<1x8x128xf32, #tpu.memory_space<vmem>>, vector<1x8x128xf32>,
    return
  }
  func.func @transform_0(%arg0: i32, %arg1: i32) -> (i32, i32, i32, i32) {
    %c0_i32 = arith.constant 0 : i32
    %c0_i32_0 = arith.constant 0 : i32
    %c0_i32_1 = arith.constant 0 : i32
    return %arg0, %arg1, %c0_i32, %c0_i32_0 : i32, i32, i32, i32
  }
  func.func @transform_1(%arg0: i32, %arg1: i32) -> (i32, i32, i32, i32) {
    %c0_i32 = arith.constant 0 : i32
    %c0_i32_0 = arith.constant 0 : i32
    %c0_i32_1 = arith.constant 0 : i32
    return %arg0, %arg1, %c0_i32, %c0_i32_0 : i32, i32, i32, i32
  }
  func.func @transform_2(%arg0: i32, %arg1: i32) -> (i32, i32, i32) {
    %c0_i32 = arith.constant 0 : i32
    %c0_i32_0 = arith.constant 0 : i32
    return %arg0, %c0_i32, %arg1 : i32, i32, i32
  }
  func.func @transform_3(%arg0: i32, %arg1: i32) -> (i32, i32) {
    %c0_i32 = arith.constant 0 : i32
    %c0_i32_0 = arith.constant 0 : i32
    %c0_i32_1 = arith.constant 0 : i32
    return %c0_i32, %c0_i32_0 : i32, i32
  }
  func.func @transform_4(%arg0: i32, %arg1: i32) -> (i32, i32) {
    %c0_i32 = arith.constant 0 : i32
    %c0_i32_0 = arith.constant 0 : i32
    %c0_i32_1 = arith.constant 0 : i32
    return %c0_i32, %c0_i32_0 : i32, i32
  }
  func.func @transform_5(%arg0: i32, %arg1: i32) -> (i32, i32, i32) {
    %c0_i32 = arith.constant 0 : i32
    %c0_i32_0 = arith.constant 0 : i32
    %c0_i32_1 = arith.constant 0 : i32
    %c0_i32_2 = arith.constant 0 : i32
    return %c0_i32, %c0_i32_0, %c0_i32_1 : i32, i32, i32
  }
  func.func @transform_6(%arg0: i32, %arg1: i32) -> (i32, i32, i32) {
    %c0_i32 = arith.constant 0 : i32
    %c0_i32_0 = arith.constant 0 : i32
    %c0_i32_1 = arith.constant 0 : i32
    %c0_i32_2 = arith.constant 0 : i32
    return %c0_i32, %c0_i32_0, %c0_i32_1 : i32, i32, i32
  }
  func.func @transform_7(%arg0: i32, %arg1: i32) -> (i32, i32, i32) {
    %c0_i32 = arith.constant 0 : i32
    %c0_i32_0 = arith.constant 0 : i32
    %c0_i32_1 = arith.constant 0 : i32
    %c0_i32_2 = arith.constant 0 : i32
    return %c0_i32, %c0_i32_0, %c0_i32_1 : i32, i32, i32
  }
  func.func @transform_8(%arg0: i32, %arg1: i32) -> (i32, i32, i32) {
    %c0_i32 = arith.constant 0 : i32
    %c0_i32_0 = arith.constant 0 : i32
    %c0_i32_1 = arith.constant 0 : i32
    %c0_i32_2 = arith.constant 0 : i32
    return %c0_i32, %c0_i32_0, %c0_i32_1 : i32, i32, i32
  }
  func.func @transform_9(%arg0: i32, %arg1: i32) -> (i32, i32) {
    %c0_i32 = arith.constant 0 : i32
    %c0_i32_0 = arith.constant 0 : i32
    %c0_i32_1 = arith.constant 0 : i32
    return %c0_i32, %c0_i32_0 : i32, i32
  }
  func.func @transform_10(%arg0: i32, %arg1: i32) -> (i32, i32) {
    %c0_i32 = arith.constant 0 : i32
    %c0_i32_0 = arith.constant 0 : i32
    %c0_i32_1 = arith.constant 0 : i32
    return %c0_i32, %c0_i32_0 : i32, i32
  }
  func.func @transform_11(%arg0: i32, %arg1: i32) -> (i32, i32, i32) {
    %c0_i32 = arith.constant 0 : i32
    %c0_i32_0 = arith.constant 0 : i32
    return %arg0, %c0_i32, %arg1 : i32, i32, i32
  }
  func.func @transform_12(%arg0: i32, %arg1: i32) -> (i32, i32, i32) {
    %c0_i32 = arith.constant 0 : i32
    %c0_i32_0 = arith.constant 0 : i32
    return %arg0, %c0_i32, %arg1 : i32, i32, i32
  }
  func.func @transform_13(%arg0: i32, %arg1: i32) -> (i32, i32, i32) {
    %c0_i32 = arith.constant 0 : i32
    %c0_i32_0 = arith.constant 0 : i32
    return %arg0, %c0_i32, %arg1 : i32, i32, i32
  }
}

module attributes {stable_mosaic.version = 11 : i64} {
  func.func @kernel(%arg0: i32, %arg1: i32, %arg2: memref<1x1x16x144xbf16, #tpu.memory_space<vmem>>, %arg3: memref<1x1x1x144xf32, #tpu.memory_space<vmem>>, %arg4: memref<1x8x128xf32, #tpu.memory_space<vmem>>, %arg5: memref<32x16xbf16, #tpu.memory_space<vmem>>, %arg6: memref<32x1xf32, #tpu.memory_space<vmem>>, %arg7: memref<4x64x160xbf16, #tpu.memory_space<vmem>>, %arg8: memref<4x64x1xf32, #tpu.memory_space<vmem>>, %arg9: memref<4x64x32xbf16, #tpu.memory_space<vmem>>, %arg10: memref<4x64x1xf32, #tpu.memory_space<vmem>>, %arg11: memref<16x32xbf16, #tpu.memory_space<vmem>>, %arg12: memref<16x1xf32, #tpu.memory_space<vmem>>, %arg13: memref<1x8x128xf32, #tpu.memory_space<vmem>>, %arg14: memref<1x8x128xf32, #tpu.memory_space<vmem>>, %arg15: memref<1x8x128xf32, #tpu.memory_space<vmem>>, %arg16: memref<32x148xf32, #tpu.memory_space<vmem>>, %arg17: memref<32x144xf32, #tpu.memory_space<vmem>>, %arg18: memref<160x144xbf16, #tpu.memory_space<vmem>>) attributes {dimension_semantics = [#tpu.dimension_semantics<parallel>, #tpu.dimension_semantics<parallel>], iteration_bounds = array<i64: 2, 2>, scalar_prefetch = 0 : i64, scratch_operands = 3 : i64, tpu.core_type = #tpu.core_type<tc>, window_params = [{transform_indices = @transform_0, window_bounds = array<i64: 1, 1, 16, 144>}, {transform_indices = @transform_1, window_bounds = array<i64: 1, 1, 1, 144>}, {transform_indices = @transform_2, window_bounds = array<i64: 1, 8, 128>}, {pipeline_mode = #tpu.pipeline_mode<synchronous>, transform_indices = @transform_3, window_bounds = array<i64: 32, 16>}, {pipeline_mode = #tpu.pipeline_mode<synchronous>, transform_indices = @transform_4, window_bounds = array<i64: 32, 1>}, {pipeline_mode = #tpu.pipeline_mode<synchronous>, transform_indices = @transform_5, window_bounds = array<i64: 4, 64, 160>}, {pipeline_mode = #tpu.pipeline_mode<synchronous>, transform_indices = @transform_6, window_bounds = array<i64: 4, 64, 1>}, {pipeline_mode = #tpu.pipeline_mode<synchronous>, transform_indices = @transform_7, window_bounds = array<i64: 4, 64, 32>}, {pipeline_mode = #tpu.pipeline_mode<synchronous>, transform_indices = @transform_8, window_bounds = array<i64: 4, 64, 1>}, {pipeline_mode = #tpu.pipeline_mode<synchronous>, transform_indices = @transform_9, window_bounds = array<i64: 16, 32>}, {pipeline_mode = #tpu.pipeline_mode<synchronous>, transform_indices = @transform_10, window_bounds = array<i64: 16, 1>}, {transform_indices = @transform_11, window_bounds = array<i64: 1, 8, 128>}, {transform_indices = @transform_12, window_bounds = array<i64: 1, 8, 128>}, {transform_indices = @transform_13, window_bounds = array<i64: 1, 8, 128>}]} {
    %c0 = arith.constant 0 : index
    %c0_0 = arith.constant 0 : index
    %c0_1 = arith.constant 0 : index
    %c0_2 = arith.constant 0 : index
    %0 = vector.load %arg2[%c0, %c0_0, %c0_1, %c0_2] : memref<1x1x16x144xbf16, #tpu.memory_space<vmem>>, vector<1x1x16x144xbf16>
    %1 = vector.shape_cast %0 : vector<1x1x16x144xbf16> to vector<16x144xbf16>
    %c0_3 = arith.constant 0 : index
    %c0_4 = arith.constant 0 : index
    %c0_5 = arith.constant 0 : index
    %c0_6 = arith.constant 0 : index
    %2 = vector.load %arg3[%c0_3, %c0_4, %c0_5, %c0_6] : memref<1x1x1x144xf32, #tpu.memory_space<vmem>>, vector<1x1x1x144xf32>
    %3 = vector.shape_cast %2 : vector<1x1x1x144xf32> to vector<1x144xf32>
    %4 = vector.shape_cast %3 : vector<1x144xf32> to vector<1x144xf32>
    %5 = vector.broadcast %4 : vector<1x144xf32> to vector<32x144xf32>
    %c0_7 = arith.constant 0 : index
    %c0_8 = arith.constant 0 : index
    %6 = vector.load %arg5[%c0_7, %c0_8] : memref<32x16xbf16, #tpu.memory_space<vmem>>, vector<32x16xbf16>
    %cst = arith.constant dense<0.000000e+00> : vector<32x144xf32>
    %7 = tpu.matmul %6, %1, %cst {dimension_numbers = #tpu.dot_dimension_numbers<[1], [0], [0], [1], [0, 0, 1, 1], [], []>} : vector<32x16xbf16>, vector<16x144xbf16>, vector<32x144xf32> -> vector<32x144xf32>
    %c0_9 = arith.constant 0 : index
    %c0_10 = arith.constant 0 : index
    %8 = vector.load %arg6[%c0_9, %c0_10] : memref<32x1xf32, #tpu.memory_space<vmem>>, vector<32x1xf32>
    %9 = vector.broadcast %8 : vector<32x1xf32> to vector<32x144xf32>
    %10 = arith.addf %7, %9 : vector<32x144xf32>
    %11 = arith.mulf %10, %5 : vector<32x144xf32>
    %cst_11 = arith.constant 0.000000e+00 : f32
    %12 = vector.broadcast %cst_11 : f32 to vector<32x2xf32>
    %c0_12 = arith.constant 0 : index
    %c0_13 = arith.constant 0 : index
    %13 = vector.load %arg16[%c0_12, %c0_13] : memref<32x148xf32, #tpu.memory_space<vmem>>, vector<32x2xf32>
    tpu.vector_store %arg16[%c0_12, %c0_13], %12 {strides = array<i32>} : memref<32x148xf32, #tpu.memory_space<vmem>>, vector<32x2xf32>,
    %c0_14 = arith.constant 0 : index
    %c146 = arith.constant 146 : index
    %14 = vector.load %arg16[%c0_14, %c146] : memref<32x148xf32, #tpu.memory_space<vmem>>, vector<32x2xf32>
    tpu.vector_store %arg16[%c0_14, %c146], %12 {strides = array<i32>} : memref<32x148xf32, #tpu.memory_space<vmem>>, vector<32x2xf32>,
    %c0_15 = arith.constant 0 : index
    %c2 = arith.constant 2 : index
    %15 = vector.load %arg16[%c0_15, %c2] : memref<32x148xf32, #tpu.memory_space<vmem>>, vector<32x144xf32>
    tpu.vector_store %arg16[%c0_15, %c2], %11 {strides = array<i32>} : memref<32x148xf32, #tpu.memory_space<vmem>>, vector<32x144xf32>,
    %cst_16 = arith.constant 0.000000e+00 : f32
    %16 = vector.broadcast %cst_16 : f32 to vector<32x144xf32>
    %c0_17 = arith.constant 0 : index
    %c0_18 = arith.constant 0 : index
    %17 = vector.load %arg17[%c0_17, %c0_18] : memref<32x144xf32, #tpu.memory_space<vmem>>, vector<32x144xf32>
    tpu.vector_store %arg17[%c0_17, %c0_18], %16 {strides = array<i32>} : memref<32x144xf32, #tpu.memory_space<vmem>>, vector<32x144xf32>,
    %c0_i32 = arith.constant 0 : i32
    %c4_i32 = arith.constant 4 : i32
    %18 = arith.addi %c0_i32, %c4_i32 : i32
    %c1_i32 = arith.constant 1 : i32
    scf.for %arg19 = %c0_i32 to %18 step %c1_i32  : i32 {
      %c0_39 = arith.constant 0 : index
      %c0_40 = arith.constant 0 : index
      %51 = vector.load %arg16[%c0_39, %c0_40] : memref<32x148xf32, #tpu.memory_space<vmem>>, vector<32x144xf32>
      %52 = arith.truncf %51 : vector<32x144xf32> to vector<32x144xbf16>
      %c0_41 = arith.constant 0 : index
      %c0_42 = arith.constant 0 : index
      %53 = vector.load %arg18[%c0_41, %c0_42] : memref<160x144xbf16, #tpu.memory_space<vmem>>, vector<32x144xbf16>
      tpu.vector_store %arg18[%c0_41, %c0_42], %52 {strides = array<i32>} : memref<160x144xbf16, #tpu.memory_space<vmem>>, vector<32x144xbf16>,
      %c0_43 = arith.constant 0 : index
      %c1 = arith.constant 1 : index
      %54 = vector.load %arg16[%c0_43, %c1] : memref<32x148xf32, #tpu.memory_space<vmem>>, vector<32x144xf32>
      %55 = arith.truncf %54 : vector<32x144xf32> to vector<32x144xbf16>
      %c32 = arith.constant 32 : index
      %c0_44 = arith.constant 0 : index
      %56 = vector.load %arg18[%c32, %c0_44] : memref<160x144xbf16, #tpu.memory_space<vmem>>, vector<32x144xbf16>
      tpu.vector_store %arg18[%c32, %c0_44], %55 {strides = array<i32>} : memref<160x144xbf16, #tpu.memory_space<vmem>>, vector<32x144xbf16>,
      %c0_45 = arith.constant 0 : index
      %c2_46 = arith.constant 2 : index
      %57 = vector.load %arg16[%c0_45, %c2_46] : memref<32x148xf32, #tpu.memory_space<vmem>>, vector<32x144xf32>
      %58 = arith.truncf %57 : vector<32x144xf32> to vector<32x144xbf16>
      %c64 = arith.constant 64 : index
      %c0_47 = arith.constant 0 : index
      %59 = vector.load %arg18[%c64, %c0_47] : memref<160x144xbf16, #tpu.memory_space<vmem>>, vector<32x144xbf16>
      tpu.vector_store %arg18[%c64, %c0_47], %58 {strides = array<i32>} : memref<160x144xbf16, #tpu.memory_space<vmem>>, vector<32x144xbf16>,
      %c0_48 = arith.constant 0 : index
      %c3 = arith.constant 3 : index
      %60 = vector.load %arg16[%c0_48, %c3] : memref<32x148xf32, #tpu.memory_space<vmem>>, vector<32x144xf32>
      %61 = arith.truncf %60 : vector<32x144xf32> to vector<32x144xbf16>
      %c96 = arith.constant 96 : index
      %c0_49 = arith.constant 0 : index
      %62 = vector.load %arg18[%c96, %c0_49] : memref<160x144xbf16, #tpu.memory_space<vmem>>, vector<32x144xbf16>
      tpu.vector_store %arg18[%c96, %c0_49], %61 {strides = array<i32>} : memref<160x144xbf16, #tpu.memory_space<vmem>>, vector<32x144xbf16>,
      %c0_50 = arith.constant 0 : index
      %c4 = arith.constant 4 : index
      %63 = vector.load %arg16[%c0_50, %c4] : memref<32x148xf32, #tpu.memory_space<vmem>>, vector<32x144xf32>
      %64 = arith.truncf %63 : vector<32x144xf32> to vector<32x144xbf16>
      %c128 = arith.constant 128 : index
      %c0_51 = arith.constant 0 : index
      %65 = vector.load %arg18[%c128, %c0_51] : memref<160x144xbf16, #tpu.memory_space<vmem>>, vector<32x144xbf16>
      tpu.vector_store %arg18[%c128, %c0_51], %64 {strides = array<i32>} : memref<160x144xbf16, #tpu.memory_space<vmem>>, vector<32x144xbf16>,
      %66 = arith.index_cast %arg19 : i32 to index
      %c0_52 = arith.constant 0 : index
      %c0_53 = arith.constant 0 : index
      %67 = vector.load %arg7[%66, %c0_52, %c0_53] : memref<4x64x160xbf16, #tpu.memory_space<vmem>>, vector<1x64x160xbf16>
      %68 = vector.shape_cast %67 : vector<1x64x160xbf16> to vector<64x160xbf16>
      %c0_54 = arith.constant 0 : index
      %c0_55 = arith.constant 0 : index
      %69 = vector.load %arg18[%c0_54, %c0_55] : memref<160x144xbf16, #tpu.memory_space<vmem>>, vector<160x144xbf16>
      %cst_56 = arith.constant dense<0.000000e+00> : vector<64x144xf32>
      %70 = tpu.matmul %68, %69, %cst_56 {dimension_numbers = #tpu.dot_dimension_numbers<[1], [0], [0], [1], [0, 0, 1, 1], [], []>} : vector<64x160xbf16>, vector<160x144xbf16>, vector<64x144xf32> -> vector<64x144xf32>
      %71 = arith.index_cast %arg19 : i32 to index
      %c0_57 = arith.constant 0 : index
      %c0_58 = arith.constant 0 : index
      %72 = vector.load %arg8[%71, %c0_57, %c0_58] : memref<4x64x1xf32, #tpu.memory_space<vmem>>, vector<1x64x1xf32>
      %73 = vector.shape_cast %72 : vector<1x64x1xf32> to vector<64x1xf32>
      %74 = vector.broadcast %73 : vector<64x1xf32> to vector<64x144xf32>
      %75 = arith.addf %70, %74 : vector<64x144xf32>
      %76 = vector.extract_strided_slice %75 {offsets = [0, 0], sizes = [32, 144], strides = [1, 1]} : vector<64x144xf32> to vector<32x144xf32>
      %77 = math.tanh %76 : vector<32x144xf32>
      %78 = vector.extract_strided_slice %75 {offsets = [32, 0], sizes = [32, 144], strides = [1, 1]} : vector<64x144xf32> to vector<32x144xf32>
      %79 = arith.negf %78 : vector<32x144xf32>
      %80 = math.exp %79 : vector<32x144xf32>
      %cst_59 = arith.constant 1.000000e+00 : f32
      %81 = vector.broadcast %cst_59 : f32 to vector<32x144xf32>
      %82 = arith.addf %81, %80 : vector<32x144xf32>
      %83 = arith.divf %81, %82 : vector<32x144xf32>
      %84 = arith.mulf %77, %83 : vector<32x144xf32>
      %85 = arith.index_cast %arg19 : i32 to index
      %c0_60 = arith.constant 0 : index
      %c0_61 = arith.constant 0 : index
      %86 = vector.load %arg9[%85, %c0_60, %c0_61] : memref<4x64x32xbf16, #tpu.memory_space<vmem>>, vector<1x64x32xbf16>
      %87 = vector.shape_cast %86 : vector<1x64x32xbf16> to vector<64x32xbf16>
      %88 = arith.truncf %84 : vector<32x144xf32> to vector<32x144xbf16>
      %cst_62 = arith.constant dense<0.000000e+00> : vector<64x144xf32>
      %89 = tpu.matmul %87, %88, %cst_62 {dimension_numbers = #tpu.dot_dimension_numbers<[1], [0], [0], [1], [0, 0, 1, 1], [], []>} : vector<64x32xbf16>, vector<32x144xbf16>, vector<64x144xf32> -> vector<64x144xf32>
      %90 = arith.index_cast %arg19 : i32 to index
      %c0_63 = arith.constant 0 : index
      %c0_64 = arith.constant 0 : index
      %91 = vector.load %arg10[%90, %c0_63, %c0_64] : memref<4x64x1xf32, #tpu.memory_space<vmem>>, vector<1x64x1xf32>
      %92 = vector.shape_cast %91 : vector<1x64x1xf32> to vector<64x1xf32>
      %93 = vector.broadcast %92 : vector<64x1xf32> to vector<64x144xf32>
      %94 = arith.addf %89, %93 : vector<64x144xf32>
      %c0_65 = arith.constant 0 : index
      %c2_66 = arith.constant 2 : index
      %95 = vector.load %arg16[%c0_65, %c2_66] : memref<32x148xf32, #tpu.memory_space<vmem>>, vector<32x144xf32>
      %96 = vector.extract_strided_slice %94 {offsets = [0, 0], sizes = [32, 144], strides = [1, 1]} : vector<64x144xf32> to vector<32x144xf32>
      %97 = arith.addf %95, %96 : vector<32x144xf32>
      %98 = arith.mulf %97, %5 : vector<32x144xf32>
      %c0_67 = arith.constant 0 : index
      %c2_68 = arith.constant 2 : index
      %99 = vector.load %arg16[%c0_67, %c2_68] : memref<32x148xf32, #tpu.memory_space<vmem>>, vector<32x144xf32>
      tpu.vector_store %arg16[%c0_67, %c2_68], %98 {strides = array<i32>} : memref<32x148xf32, #tpu.memory_space<vmem>>, vector<32x144xf32>,
      %c0_69 = arith.constant 0 : index
      %c0_70 = arith.constant 0 : index
      %100 = vector.load %arg17[%c0_69, %c0_70] : memref<32x144xf32, #tpu.memory_space<vmem>>, vector<32x144xf32>
      %101 = vector.extract_strided_slice %94 {offsets = [32, 0], sizes = [32, 144], strides = [1, 1]} : vector<64x144xf32> to vector<32x144xf32>
      %102 = arith.addf %100, %101 : vector<32x144xf32>
      %c0_71 = arith.constant 0 : index
      %c0_72 = arith.constant 0 : index
      %103 = vector.load %arg17[%c0_71, %c0_72] : memref<32x144xf32, #tpu.memory_space<vmem>>, vector<32x144xf32>
      tpu.vector_store %arg17[%c0_71, %c0_72], %102 {strides = array<i32>} : memref<32x144xf32, #tpu.memory_space<vmem>>, vector<32x144xf32>,
    }
    %c4_i32_19 = arith.constant 4 : i32
    %c0_20 = arith.constant 0 : index
    %c8 = arith.constant 8 : index
    %19 = vector.load %arg17[%c0_20, %c8] : memref<32x144xf32, #tpu.memory_space<vmem>>, vector<32x128xf32>
    %20 = vector.extract_strided_slice %5 {offsets = [0, 8], sizes = [32, 128], strides = [1, 1]} : vector<32x144xf32> to vector<32x128xf32>
    %21 = arith.mulf %19, %20 : vector<32x128xf32>
    %22 = arith.truncf %21 : vector<32x128xf32> to vector<32x128xbf16>
    %23 = vector.extract_strided_slice %3 {offsets = [0, 8], sizes = [1, 128], strides = [1, 1]} : vector<1x144xf32> to vector<1x128xf32>
    %c0_21 = arith.constant 0 : index
    %c0_22 = arith.constant 0 : index
    %24 = vector.load %arg11[%c0_21, %c0_22] : memref<16x32xbf16, #tpu.memory_space<vmem>>, vector<16x32xbf16>
    %cst_23 = arith.constant dense<0.000000e+00> : vector<16x128xf32>
    %25 = tpu.matmul %24, %22, %cst_23 {dimension_numbers = #tpu.dot_dimension_numbers<[1], [0], [0], [1], [0, 0, 1, 1], [], []>} : vector<16x32xbf16>, vector<32x128xbf16>, vector<16x128xf32> -> vector<16x128xf32>
    %c0_24 = arith.constant 0 : index
    %c0_25 = arith.constant 0 : index
    %26 = vector.load %arg12[%c0_24, %c0_25] : memref<16x1xf32, #tpu.memory_space<vmem>>, vector<16x1xf32>
    %27 = vector.broadcast %26 : vector<16x1xf32> to vector<16x128xf32>
    %28 = arith.addf %25, %27 : vector<16x128xf32>
    %29 = vector.broadcast %23 : vector<1x128xf32> to vector<16x128xf32>
    %30 = arith.mulf %28, %29 : vector<16x128xf32>
    %31 = vector.extract_strided_slice %30 {offsets = [0, 0], sizes = [8, 128], strides = [1, 1]} : vector<16x128xf32> to vector<8x128xf32>
    %32 = vector.extract_strided_slice %30 {offsets = [8, 0], sizes = [8, 128], strides = [1, 1]} : vector<16x128xf32> to vector<8x128xf32>
    %c0_26 = arith.constant 0 : index
    %c0_27 = arith.constant 0 : index
    %c0_28 = arith.constant 0 : index
    %33 = vector.load %arg4[%c0_26, %c0_27, %c0_28] : memref<1x8x128xf32, #tpu.memory_space<vmem>>, vector<1x8x128xf32>
    %34 = vector.shape_cast %33 : vector<1x8x128xf32> to vector<8x128xf32>
    %cst_29 = arith.constant 1.000000e+00 : f32
    %35 = vector.broadcast %cst_29 : f32 to vector<8x128xf32>
    %36 = arith.mulf %34, %35 : vector<8x128xf32>
    %37 = math.exp %32 : vector<8x128xf32>
    %38 = arith.mulf %36, %37 : vector<8x128xf32>
    %39 = arith.addf %31, %38 : vector<8x128xf32>
    %40 = vector.broadcast %23 : vector<1x128xf32> to vector<8x128xf32>
    %41 = arith.mulf %39, %40 : vector<8x128xf32>
    %c0_30 = arith.constant 0 : index
    %c0_31 = arith.constant 0 : index
    %c0_32 = arith.constant 0 : index
    %42 = vector.load %arg13[%c0_30, %c0_31, %c0_32] : memref<1x8x128xf32, #tpu.memory_space<vmem>>, vector<1x8x128xf32>
    %43 = vector.shape_cast %42 : vector<1x8x128xf32> to vector<8x128xf32>
    %44 = vector.shape_cast %41 : vector<8x128xf32> to vector<1x8x128xf32>
    tpu.vector_store %arg13[%c0_30, %c0_31, %c0_32], %44 {strides = array<i32>} : memref<1x8x128xf32, #tpu.memory_space<vmem>>, vector<1x8x128xf32>,
    %c0_33 = arith.constant 0 : index
    %c0_34 = arith.constant 0 : index
    %c0_35 = arith.constant 0 : index
    %45 = vector.load %arg14[%c0_33, %c0_34, %c0_35] : memref<1x8x128xf32, #tpu.memory_space<vmem>>, vector<1x8x128xf32>
    %46 = vector.shape_cast %45 : vector<1x8x128xf32> to vector<8x128xf32>
    %47 = vector.shape_cast %31 : vector<8x128xf32> to vector<1x8x128xf32>
    tpu.vector_store %arg14[%c0_33, %c0_34, %c0_35], %47 {strides = array<i32>} : memref<1x8x128xf32, #tpu.memory_space<vmem>>, vector<1x8x128xf32>,
    %c0_36 = arith.constant 0 : index
    %c0_37 = arith.constant 0 : index
    %c0_38 = arith.constant 0 : index
    %48 = vector.load %arg15[%c0_36, %c0_37, %c0_38] : memref<1x8x128xf32, #tpu.memory_space<vmem>>, vector<1x8x128xf32>
    %49 = vector.shape_cast %48 : vector<1x8x128xf32> to vector<8x128xf32>
    %50 = vector.shape_cast %32 : vector<8x128xf32> to vector<1x8x128xf32>
    tpu.vector_store %arg15[%c0_36, %c0_37, %c0_38], %50 {strides = array<i32>} : memref<1x8x128xf32, #tpu.memory_space<vmem>>, vector<1x8x128xf32>,
    return
  }
  func.func @transform_0(%arg0: i32, %arg1: i32) -> (i32, i32, i32, i32) {
    %c0_i32 = arith.constant 0 : i32
    %c0_i32_0 = arith.constant 0 : i32
    %c0_i32_1 = arith.constant 0 : i32
    return %arg0, %arg1, %c0_i32, %c0_i32_0 : i32, i32, i32, i32
  }
  func.func @transform_1(%arg0: i32, %arg1: i32) -> (i32, i32, i32, i32) {
    %c0_i32 = arith.constant 0 : i32
    %c0_i32_0 = arith.constant 0 : i32
    %c0_i32_1 = arith.constant 0 : i32
    return %arg0, %arg1, %c0_i32, %c0_i32_0 : i32, i32, i32, i32
  }
  func.func @transform_2(%arg0: i32, %arg1: i32) -> (i32, i32, i32) {
    %c0_i32 = arith.constant 0 : i32
    %c0_i32_0 = arith.constant 0 : i32
    return %arg0, %c0_i32, %arg1 : i32, i32, i32
  }
  func.func @transform_3(%arg0: i32, %arg1: i32) -> (i32, i32) {
    %c0_i32 = arith.constant 0 : i32
    %c0_i32_0 = arith.constant 0 : i32
    %c0_i32_1 = arith.constant 0 : i32
    return %c0_i32, %c0_i32_0 : i32, i32
  }
  func.func @transform_4(%arg0: i32, %arg1: i32) -> (i32, i32) {
    %c0_i32 = arith.constant 0 : i32
    %c0_i32_0 = arith.constant 0 : i32
    %c0_i32_1 = arith.constant 0 : i32
    return %c0_i32, %c0_i32_0 : i32, i32
  }
  func.func @transform_5(%arg0: i32, %arg1: i32) -> (i32, i32, i32) {
    %c0_i32 = arith.constant 0 : i32
    %c0_i32_0 = arith.constant 0 : i32
    %c0_i32_1 = arith.constant 0 : i32
    %c0_i32_2 = arith.constant 0 : i32
    return %c0_i32, %c0_i32_0, %c0_i32_1 : i32, i32, i32
  }
  func.func @transform_6(%arg0: i32, %arg1: i32) -> (i32, i32, i32) {
    %c0_i32 = arith.constant 0 : i32
    %c0_i32_0 = arith.constant 0 : i32
    %c0_i32_1 = arith.constant 0 : i32
    %c0_i32_2 = arith.constant 0 : i32
    return %c0_i32, %c0_i32_0, %c0_i32_1 : i32, i32, i32
  }
  func.func @transform_7(%arg0: i32, %arg1: i32) -> (i32, i32, i32) {
    %c0_i32 = arith.constant 0 : i32
    %c0_i32_0 = arith.constant 0 : i32
    %c0_i32_1 = arith.constant 0 : i32
    %c0_i32_2 = arith.constant 0 : i32
    return %c0_i32, %c0_i32_0, %c0_i32_1 : i32, i32, i32
  }
  func.func @transform_8(%arg0: i32, %arg1: i32) -> (i32, i32, i32) {
    %c0_i32 = arith.constant 0 : i32
    %c0_i32_0 = arith.constant 0 : i32
    %c0_i32_1 = arith.constant 0 : i32
    %c0_i32_2 = arith.constant 0 : i32
    return %c0_i32, %c0_i32_0, %c0_i32_1 : i32, i32, i32
  }
  func.func @transform_9(%arg0: i32, %arg1: i32) -> (i32, i32) {
    %c0_i32 = arith.constant 0 : i32
    %c0_i32_0 = arith.constant 0 : i32
    %c0_i32_1 = arith.constant 0 : i32
    return %c0_i32, %c0_i32_0 : i32, i32
  }
  func.func @transform_10(%arg0: i32, %arg1: i32) -> (i32, i32) {
    %c0_i32 = arith.constant 0 : i32
    %c0_i32_0 = arith.constant 0 : i32
    %c0_i32_1 = arith.constant 0 : i32
    return %c0_i32, %c0_i32_0 : i32, i32
  }
  func.func @transform_11(%arg0: i32, %arg1: i32) -> (i32, i32, i32) {
    %c0_i32 = arith.constant 0 : i32
    %c0_i32_0 = arith.constant 0 : i32
    return %arg0, %c0_i32, %arg1 : i32, i32, i32
  }
  func.func @transform_12(%arg0: i32, %arg1: i32) -> (i32, i32, i32) {
    %c0_i32 = arith.constant 0 : i32
    %c0_i32_0 = arith.constant 0 : i32
    return %arg0, %c0_i32, %arg1 : i32, i32, i32
  }
  func.func @transform_13(%arg0: i32, %arg1: i32) -> (i32, i32, i32) {
    %c0_i32 = arith.constant 0 : i32
    %c0_i32_0 = arith.constant 0 : i32
    return %arg0, %c0_i32, %arg1 : i32, i32, i32
  }
}

</mosaic_0001>

<llo_original>
// kernel: tpu_custom_call.1
$region0: #{tpu_custom_call.1}
  #allocation0 [shape = 'u32[]', space=smem, size = 0x4, offset = 0x4, fixed_abs, tag = 'smem constant byte address 0x4 - core index']
  #allocation1 [shape = 'u32[144,128]{1,0:T(1,128)}', space=vmem, size = 0x12000, scoped, tag = 'internal scratch']
  #allocation2 [shape = 'f32[32,148]{1,0:T(8,128)}', space=vmem, size = 0x8000, scoped, tag = 'scratch operand']
  #allocation3 [shape = 'f32[32,144]{1,0:T(8,128)}', space=vmem, size = 0x8000, scoped, tag = 'scratch operand']
  #allocation4 [shape = 'bf16[160,144]{1,0:T(16,128)(2,1)}', space=vmem, size = 0x14000, scoped, tag = 'scratch operand']
  %s0 = inlined_call_operand.vmem [shape: bf16[2,2,16,144], index: 0, kind: input, shape index: {}]
  %s1 = inlined_call_operand.vmem [shape: f32[2,2,1,144], index: 1, kind: input, shape index: {}]
  %s2 = inlined_call_operand.vmem [shape: f32[2,8,256], index: 2, kind: input, shape index: {}]
  %s3 = inlined_call_operand.vmem [shape: bf16[32,16], index: 3, kind: input, shape index: {}]
  %s4 = inlined_call_operand.vmem [shape: f32[32,1], index: 4, kind: input, shape index: {}]
  %s5 = inlined_call_operand.vmem [shape: bf16[4,64,160], index: 5, kind: input, shape index: {}]
  %s6 = inlined_call_operand.vmem [shape: f32[4,64,1], index: 6, kind: input, shape index: {}]
  %s7 = inlined_call_operand.vmem [shape: bf16[4,64,32], index: 7, kind: input, shape index: {}]
  %s8 = inlined_call_operand.vmem [shape: f32[4,64,1], index: 8, kind: input, shape index: {}]
  %s9 = inlined_call_operand.vmem [shape: bf16[16,32], index: 9, kind: input, shape index: {}]
  %s10 = inlined_call_operand.vmem [shape: f32[16,1], index: 10, kind: input, shape index: {}]
  %s11 = inlined_call_operand.hbm [shape: f32[2,8,256], index: 11, kind: output, shape index: {0}]
  %s12 = inlined_call_operand.hbm [shape: f32[2,8,256], index: 12, kind: output, shape index: {1}]
  %s13 = inlined_call_operand.hbm [shape: f32[2,8,256], index: 13, kind: output, shape index: {2}]
  %14 = xla_tuple %s11, %s12, %s13
  %s15 = sld [smem:[#allocation0]]
  $region100: #{tpu_custom_call.1} parent=0
    _
  %s17 = ssub.s32 1, %s15
  %s18 = scalar_select 0, %s17, %s15
  $region1: #{tpu_custom_call.1} parent=0
    #allocation5 [shape = 'u8[8192]{0}', space=vmem, size = 0x2000, scoped, tag = 'output window, operand 0']
    #allocation6 [shape = 's32[2]{0}', space=sflag, size = 0x8, scoped, tag = 'scoped memory for tpu_custom_call.1']
    #allocation7 [shape = 'u8[8192]{0}', space=vmem, size = 0x2000, scoped, tag = 'output window, operand 1']
    #allocation8 [shape = 's32[2]{0}', space=sflag, size = 0x8, scoped, tag = 'scoped memory for tpu_custom_call.1']
    #allocation9 [shape = 'u8[8192]{0}', space=vmem, size = 0x2000, scoped, tag = 'output window, operand 2']
    %19 = vsyncpa [#allocation6], 0
    %s20 = scalar_lea.sflag [#allocation6], 1
    %21 = vsyncpa %s20, 0
    %22 = vsyncpa [#allocation8], 0
    %s23 = scalar_lea.sflag [#allocation8], 1
    %24 = vsyncpa %s23, 0
    loop: start=0, step=1, limit=6
    $region2: #{tpu_custom_call.1} parent=1 // loop_pre_header
      _
    $region3: #{tpu_custom_call.1} parent=1 // loop_header
      %s26 = sphi 0, %s30
      %p27 = scmp.ge.s32.totalorder %s26, 6
      %s33 = sphi 0, %s45
      %s34 = sphi 0, %s41
      %s35 = sphi 0, %s33
      %s36 = sphi 0, %s34
      %s37 = sphi 0, %s35
      %s38 = sphi 0, %s36
      %s50 = sphi 0, %s52
      %s53 = sphi 0, %s50
      %s54 = sphi 0, %s53
      %s70 = sphi 0, %s54
      %s78 = sphi 0, %s80
      %s81 = sphi 0, %s78
      %s82 = sphi 0, %s81
      %s98 = sphi 0, %s82
      %s106 = sphi 0, %s108
      %s109 = sphi 0, %s106
      %s110 = sphi 0, %s109
      %s126 = sphi 0, %s110
      %s130 = sphi 0, %s130
      %s132 = sphi 0, %s130
      %s133 = sphi 0, %s132
      %s147 = sphi 0, %s133
      %s151 = sphi 0, %s151
      %s153 = sphi 0, %s151
      %s154 = sphi 0, %s153
      %s168 = sphi 0, %s154
      %s172 = sphi 0, %s172
      %s174 = sphi 0, %s172
      %s175 = sphi 0, %s174
      %s189 = sphi 0, %s175
      %s193 = sphi 0, %s193
      %s195 = sphi 0, %s193
      %s196 = sphi 0, %s195
      %s210 = sphi 0, %s196
      %s214 = sphi 0, %s214
      %s216 = sphi 0, %s214
      %s217 = sphi 0, %s216
      %s231 = sphi 0, %s217
      %s235 = sphi 0, %s235
      %s237 = sphi 0, %s235
      %s238 = sphi 0, %s237
      %s252 = sphi 0, %s238
      %s256 = sphi 0, %s256
      %s258 = sphi 0, %s256
      %s259 = sphi 0, %s258
      %s273 = sphi 0, %s259
      %s277 = sphi 0, %s277
      %s279 = sphi 0, %s277
      %s280 = sphi 0, %s279
      %s294 = sphi 0, %s280
      %s302 = sphi 0, %s304
      %s305 = sphi 0, %s302
      %s306 = sphi 0, %s305
      %s322 = sphi 0, %s306
      %s330 = sphi 0, %s332
      %s333 = sphi 0, %s330
      %s334 = sphi 0, %s333
      %s350 = sphi 0, %s334
      %s358 = sphi 0, %s360
      %s361 = sphi 0, %s358
      %s362 = sphi 0, %s361
      %s378 = sphi 0, %s362
    $region4: #{tpu_custom_call.1} parent=1 // loop_header_branch
      %29 = sbr.rel (%p27) target = $region8
    $region5: #{tpu_custom_call.1} parent=1 // loop_body
      %s31 = ssub.s32 %s26, 1
      %s32 = ssub.s32 %s26, 2
      %s39 = sadd.s32 1, %s34
      %p40 = scmp.ge.s32.totalorder %s39, 2
      %s41 = scalar_select %p40, 0, %s39
      %s42 = sadd.s32 1, %s33
      %s43 = scalar_select %p40, %s42, %s33
      %p44 = scmp.ge.s32.totalorder %s43, 2
      %s45 = scalar_select %p44, 0, %s43
      %s46 = ssub.s32 %s33, %s45
      %s47 = ssub.s32 %s34, %s41
      %s48 = sor.u32 %s46, %s47
      %p49 = scmp.eq.s32.totalorder %s48, 0
      %s51 = sadd.s32 %s50, 1
      %s52 = scalar_select %p49, %s50, %s51
      %p55 = pneg %p49
      %p56 = scmp.eq.s32.totalorder %s26, 3
      %p57 = por %p55, %p56
      %p58 = scmp.ne.s32.totalorder %s50, %s53
      %p59 = scmp.eq.s32.totalorder %s26, 0
      %p60 = por %p58, %p59
      %p61 = scmp.ne.s32.totalorder %s50, %s53
      %p62 = scmp.eq.s32.totalorder %s31, 3
      %p63 = por %p61, %p62
      %p64 = scmp.ne.s32.totalorder %s53, %s54
      %p65 = scmp.eq.s32.totalorder %s31, 0
      %p66 = por %p64, %p65
      %p67 = scmp.ne.s32.totalorder %s53, %s54
      %p68 = scmp.eq.s32.totalorder %s32, 3
      %p69 = por %p67, %p68
      %p71 = scmp.ne.s32.totalorder %s54, %s70
      %p72 = scmp.eq.s32.totalorder %s32, 0
      %p73 = por %p71, %p72
      %s74 = ssub.s32 %s33, %s45
      %s75 = ssub.s32 %s34, %s41
      %s76 = sor.u32 %s74, %s75
      %p77 = scmp.eq.s32.totalorder %s76, 0
      %s79 = sadd.s32 %s78, 1
      %s80 = scalar_select %p77, %s78, %s79
      %p83 = pneg %p77
      %p84 = scmp.eq.s32.totalorder %s26, 3
      %p85 = por %p83, %p84
      %p86 = scmp.ne.s32.totalorder %s78, %s81
      %p87 = scmp.eq.s32.totalorder %s26, 0
      %p88 = por %p86, %p87
      %p89 = scmp.ne.s32.totalorder %s78, %s81
      %p90 = scmp.eq.s32.totalorder %s31, 3
      %p91 = por %p89, %p90
      %p92 = scmp.ne.s32.totalorder %s81, %s82
      %p93 = scmp.eq.s32.totalorder %s31, 0
      %p94 = por %p92, %p93
      %p95 = scmp.ne.s32.totalorder %s81, %s82
      %p96 = scmp.eq.s32.totalorder %s32, 3
      %p97 = por %p95, %p96
      %p99 = scmp.ne.s32.totalorder %s82, %s98
      %p100 = scmp.eq.s32.totalorder %s32, 0
      %p101 = por %p99, %p100
      %s102 = ssub.s32 %s33, %s45
      %s103 = ssub.s32 %s34, %s41
      %s104 = sor.u32 %s102, %s103
      %p105 = scmp.eq.s32.totalorder %s104, 0
      %s107 = sadd.s32 %s106, 1
      %s108 = scalar_select %p105, %s106, %s107
      %p111 = pneg %p105
      %p112 = scmp.eq.s32.totalorder %s26, 3
      %p113 = por %p111, %p112
      %p114 = scmp.ne.s32.totalorder %s106, %s109
      %p115 = scmp.eq.s32.totalorder %s26, 0
      %p116 = por %p114, %p115
      %p117 = scmp.ne.s32.totalorder %s106, %s109
      %p118 = scmp.eq.s32.totalorder %s31, 3
      %p119 = por %p117, %p118
      %p120 = scmp.ne.s32.totalorder %s109, %s110
      %p121 = scmp.eq.s32.totalorder %s31, 0
      %p122 = por %p120, %p121
      %p123 = scmp.ne.s32.totalorder %s109, %s110
      %p124 = scmp.eq.s32.totalorder %s32, 3
      %p125 = por %p123, %p124
      %p127 = scmp.ne.s32.totalorder %s110, %s126
      %p128 = scmp.eq.s32.totalorder %s32, 0
      %p129 = por %p127, %p128
      %s131 = sadd.s32 %s130, 1
      %p134 = scmp.eq.s32.totalorder %s26, 3
      %p135 = scmp.ne.s32.totalorder %s130, %s132
      %p136 = scmp.eq.s32.totalorder %s26, 0
      %p137 = por %p135, %p136
      %p138 = scmp.ne.s32.totalorder %s130, %s132
      %p139 = scmp.eq.s32.totalorder %s31, 3
      %p140 = por %p138, %p139
      %p141 = scmp.ne.s32.totalorder %s132, %s133
      %p142 = scmp.eq.s32.totalorder %s31, 0
      %p143 = por %p141, %p142
      %p144 = scmp.ne.s32.totalorder %s132, %s133
      %p145 = scmp.eq.s32.totalorder %s32, 3
      %p146 = por %p144, %p145
      %p148 = scmp.ne.s32.totalorder %s133, %s147
      %p149 = scmp.eq.s32.totalorder %s32, 0
      %p150 = por %p148, %p149
      %s152 = sadd.s32 %s151, 1
      %p155 = scmp.eq.s32.totalorder %s26, 3
      %p156 = scmp.ne.s32.totalorder %s151, %s153
      %p157 = scmp.eq.s32.totalorder %s26, 0
      %p158 = por %p156, %p157
      %p159 = scmp.ne.s32.totalorder %s151, %s153
      %p160 = scmp.eq.s32.totalorder %s31, 3
      %p161 = por %p159, %p160
      %p162 = scmp.ne.s32.totalorder %s153, %s154
      %p163 = scmp.eq.s32.totalorder %s31, 0
      %p164 = por %p162, %p163
      %p165 = scmp.ne.s32.totalorder %s153, %s154
      %p166 = scmp.eq.s32.totalorder %s32, 3
      %p167 = por %p165, %p166
      %p169 = scmp.ne.s32.totalorder %s154, %s168
      %p170 = scmp.eq.s32.totalorder %s32, 0
      %p171 = por %p169, %p170
      %s173 = sadd.s32 %s172, 1
      %p176 = scmp.eq.s32.totalorder %s26, 3
      %p177 = scmp.ne.s32.totalorder %s172, %s174
      %p178 = scmp.eq.s32.totalorder %s26, 0
      %p179 = por %p177, %p178
      %p180 = scmp.ne.s32.totalorder %s172, %s174
      %p181 = scmp.eq.s32.totalorder %s31, 3
      %p182 = por %p180, %p181
      %p183 = scmp.ne.s32.totalorder %s174, %s175
      %p184 = scmp.eq.s32.totalorder %s31, 0
      %p185 = por %p183, %p184
      %p186 = scmp.ne.s32.totalorder %s174, %s175
      %p187 = scmp.eq.s32.totalorder %s32, 3
      %p188 = por %p186, %p187
      %p190 = scmp.ne.s32.totalorder %s175, %s189
      %p191 = scmp.eq.s32.totalorder %s32, 0
      %p192 = por %p190, %p191
      %s194 = sadd.s32 %s193, 1
      %p197 = scmp.eq.s32.totalorder %s26, 3
      %p198 = scmp.ne.s32.totalorder %s193, %s195
      %p199 = scmp.eq.s32.totalorder %s26, 0
      %p200 = por %p198, %p199
      %p201 = scmp.ne.s32.totalorder %s193, %s195
      %p202 = scmp.eq.s32.totalorder %s31, 3
      %p203 = por %p201, %p202
      %p204 = scmp.ne.s32.totalorder %s195, %s196
      %p205 = scmp.eq.s32.totalorder %s31, 0
      %p206 = por %p204, %p205
      %p207 = scmp.ne.s32.totalorder %s195, %s196
      %p208 = scmp.eq.s32.totalorder %s32, 3
      %p209 = por %p207, %p208
      %p211 = scmp.ne.s32.totalorder %s196, %s210
      %p212 = scmp.eq.s32.totalorder %s32, 0
      %p213 = por %p211, %p212
      %s215 = sadd.s32 %s214, 1
      %p218 = scmp.eq.s32.totalorder %s26, 3
      %p219 = scmp.ne.s32.totalorder %s214, %s216
      %p220 = scmp.eq.s32.totalorder %s26, 0
      %p221 = por %p219, %p220
      %p222 = scmp.ne.s32.totalorder %s214, %s216
      %p223 = scmp.eq.s32.totalorder %s31, 3
      %p224 = por %p222, %p223
      %p225 = scmp.ne.s32.totalorder %s216, %s217
      %p226 = scmp.eq.s32.totalorder %s31, 0
      %p227 = por %p225, %p226
      %p228 = scmp.ne.s32.totalorder %s216, %s217
      %p229 = scmp.eq.s32.totalorder %s32, 3
      %p230 = por %p228, %p229
      %p232 = scmp.ne.s32.totalorder %s217, %s231
      %p233 = scmp.eq.s32.totalorder %s32, 0
      %p234 = por %p232, %p233
      %s236 = sadd.s32 %s235, 1
      %p239 = scmp.eq.s32.totalorder %s26, 3
      %p240 = scmp.ne.s32.totalorder %s235, %s237
      %p241 = scmp.eq.s32.totalorder %s26, 0
      %p242 = por %p240, %p241
      %p243 = scmp.ne.s32.totalorder %s235, %s237
      %p244 = scmp.eq.s32.totalorder %s31, 3
      %p245 = por %p243, %p244
      %p246 = scmp.ne.s32.totalorder %s237, %s238
      %p247 = scmp.eq.s32.totalorder %s31, 0
      %p248 = por %p246, %p247
      %p249 = scmp.ne.s32.totalorder %s237, %s238
      %p250 = scmp.eq.s32.totalorder %s32, 3
      %p251 = por %p249, %p250
      %p253 = scmp.ne.s32.totalorder %s238, %s252
      %p254 = scmp.eq.s32.totalorder %s32, 0
      %p255 = por %p253, %p254
      %s257 = sadd.s32 %s256, 1
      %p260 = scmp.eq.s32.totalorder %s26, 3
      %p261 = scmp.ne.s32.totalorder %s256, %s258
      %p262 = scmp.eq.s32.totalorder %s26, 0
      %p263 = por %p261, %p262
      %p264 = scmp.ne.s32.totalorder %s256, %s258
      %p265 = scmp.eq.s32.totalorder %s31, 3
      %p266 = por %p264, %p265
      %p267 = scmp.ne.s32.totalorder %s258, %s259
      %p268 = scmp.eq.s32.totalorder %s31, 0
      %p269 = por %p267, %p268
      %p270 = scmp.ne.s32.totalorder %s258, %s259
      %p271 = scmp.eq.s32.totalorder %s32, 3
      %p272 = por %p270, %p271
      %p274 = scmp.ne.s32.totalorder %s259, %s273
      %p275 = scmp.eq.s32.totalorder %s32, 0
      %p276 = por %p274, %p275
      %s278 = sadd.s32 %s277, 1
      %p281 = scmp.eq.s32.totalorder %s26, 3
      %p282 = scmp.ne.s32.totalorder %s277, %s279
      %p283 = scmp.eq.s32.totalorder %s26, 0
      %p284 = por %p282, %p283
      %p285 = scmp.ne.s32.totalorder %s277, %s279
      %p286 = scmp.eq.s32.totalorder %s31, 3
      %p287 = por %p285, %p286
      %p288 = scmp.ne.s32.totalorder %s279, %s280
      %p289 = scmp.eq.s32.totalorder %s31, 0
      %p290 = por %p288, %p289
      %p291 = scmp.ne.s32.totalorder %s279, %s280
      %p292 = scmp.eq.s32.totalorder %s32, 3
      %p293 = por %p291, %p292
      %p295 = scmp.ne.s32.totalorder %s280, %s294
      %p296 = scmp.eq.s32.totalorder %s32, 0
      %p297 = por %p295, %p296
      %s298 = ssub.s32 %s33, %s45
      %s299 = ssub.s32 %s34, %s41
      %s300 = sor.u32 %s298, %s299
      %p301 = scmp.eq.s32.totalorder %s300, 0
      %s303 = sadd.s32 %s302, 1
      %s304 = scalar_select %p301, %s302, %s303
      %p307 = pneg %p301
      %p308 = scmp.eq.s32.totalorder %s26, 3
      %p309 = por %p307, %p308
      %p310 = scmp.ne.s32.totalorder %s302, %s305
      %p311 = scmp.eq.s32.totalorder %s26, 0
      %p312 = por %p310, %p311
      %p313 = scmp.ne.s32.totalorder %s302, %s305
      %p314 = scmp.eq.s32.totalorder %s31, 3
      %p315 = por %p313, %p314
      %p316 = scmp.ne.s32.totalorder %s305, %s306
      %p317 = scmp.eq.s32.totalorder %s31, 0
      %p318 = por %p316, %p317
      %p319 = scmp.ne.s32.totalorder %s305, %s306
      %p320 = scmp.eq.s32.totalorder %s32, 3
      %p321 = por %p319, %p320
      %p323 = scmp.ne.s32.totalorder %s306, %s322
      %p324 = scmp.eq.s32.totalorder %s32, 0
      %p325 = por %p323, %p324
      %s326 = ssub.s32 %s33, %s45
      %s327 = ssub.s32 %s34, %s41
      %s328 = sor.u32 %s326, %s327
      %p329 = scmp.eq.s32.totalorder %s328, 0
      %s331 = sadd.s32 %s330, 1
      %s332 = scalar_select %p329, %s330, %s331
      %p335 = pneg %p329
      %p336 = scmp.eq.s32.totalorder %s26, 3
      %p337 = por %p335, %p336
      %p338 = scmp.ne.s32.totalorder %s330, %s333
      %p339 = scmp.eq.s32.totalorder %s26, 0
      %p340 = por %p338, %p339
      %p341 = scmp.ne.s32.totalorder %s330, %s333
      %p342 = scmp.eq.s32.totalorder %s31, 3
      %p343 = por %p341, %p342
      %p344 = scmp.ne.s32.totalorder %s333, %s334
      %p345 = scmp.eq.s32.totalorder %s31, 0
      %p346 = por %p344, %p345
      %p347 = scmp.ne.s32.totalorder %s333, %s334
      %p348 = scmp.eq.s32.totalorder %s32, 3
      %p349 = por %p347, %p348
      %p351 = scmp.ne.s32.totalorder %s334, %s350
      %p352 = scmp.eq.s32.totalorder %s32, 0
      %p353 = por %p351, %p352
      %s354 = ssub.s32 %s33, %s45
      %s355 = ssub.s32 %s34, %s41
      %s356 = sor.u32 %s354, %s355
      %p357 = scmp.eq.s32.totalorder %s356, 0
      %s359 = sadd.s32 %s358, 1
      %s360 = scalar_select %p357, %s358, %s359
      %p363 = pneg %p357
      %p364 = scmp.eq.s32.totalorder %s26, 3
      %p365 = por %p363, %p364
      %p366 = scmp.ne.s32.totalorder %s358, %s361
      %p367 = scmp.eq.s32.totalorder %s26, 0
      %p368 = por %p366, %p367
      %p369 = scmp.ne.s32.totalorder %s358, %s361
      %p370 = scmp.eq.s32.totalorder %s31, 3
      %p371 = por %p369, %p370
      %p372 = scmp.ne.s32.totalorder %s361, %s362
      %p373 = scmp.eq.s32.totalorder %s31, 0
      %p374 = por %p372, %p373
      %p375 = scmp.ne.s32.totalorder %s361, %s362
      %p376 = scmp.eq.s32.totalorder %s32, 3
      %p377 = por %p375, %p376
      %p379 = scmp.ne.s32.totalorder %s362, %s378
      %p380 = scmp.eq.s32.totalorder %s32, 0
      %p381 = por %p379, %p380
      %p382 = scmp.le.s32.totalorder 1, %s26
      %p383 = scmp.lt.s32.totalorder %s26, 5
      %p384 = pnand %p382, %p383
      %p385 = pneg %p384
      // Predicated region
      $region9: #{tpu_custom_call.1} parent=5 // pred_check
        _
      $region10: #{tpu_custom_call.1} parent=5 // pred_check_branch
        %387 = sbr.rel (%p384) target = $region12
      $region11: #{tpu_custom_call.1} parent=5 // pred_region
        %s388 = ssub.s32 %s26, 1
        // Predicated region
        $region13: #{tpu_custom_call.1} parent=11 // pred_check
          %p389 = pneg %p143
        $region14: #{tpu_custom_call.1} parent=11 // pred_check_branch
          %391 = sbr.rel (%p389) target = $region16
        $region15: #{tpu_custom_call.1} parent=11 // pred_region
          _
        $region16: #{tpu_custom_call.1} parent=11 // pred_fallthru
          _
        // Predicated region
        $region17: #{tpu_custom_call.1} parent=11 // pred_check
          %p392 = pneg %p164
        $region18: #{tpu_custom_call.1} parent=11 // pred_check_branch
          %394 = sbr.rel (%p392) target = $region20
        $region19: #{tpu_custom_call.1} parent=11 // pred_region
          _
        $region20: #{tpu_custom_call.1} parent=11 // pred_fallthru
          _
        // Predicated region
        $region21: #{tpu_custom_call.1} parent=11 // pred_check
          %p395 = pneg %p185
        $region22: #{tpu_custom_call.1} parent=11 // pred_check_branch
          %397 = sbr.rel (%p395) target = $region24
        $region23: #{tpu_custom_call.1} parent=11 // pred_region
          _
        $region24: #{tpu_custom_call.1} parent=11 // pred_fallthru
          _
        // Predicated region
        $region25: #{tpu_custom_call.1} parent=11 // pred_check
          %p398 = pneg %p206
        $region26: #{tpu_custom_call.1} parent=11 // pred_check_branch
          %400 = sbr.rel (%p398) target = $region28
        $region27: #{tpu_custom_call.1} parent=11 // pred_region
          _
        $region28: #{tpu_custom_call.1} parent=11 // pred_fallthru
          _
        // Predicated region
        $region29: #{tpu_custom_call.1} parent=11 // pred_check
          %p401 = pneg %p227
        $region30: #{tpu_custom_call.1} parent=11 // pred_check_branch
          %403 = sbr.rel (%p401) target = $region32
        $region31: #{tpu_custom_call.1} parent=11 // pred_region
          _
        $region32: #{tpu_custom_call.1} parent=11 // pred_fallthru
          _
        // Predicated region
        $region33: #{tpu_custom_call.1} parent=11 // pred_check
          %p404 = pneg %p248
        $region34: #{tpu_custom_call.1} parent=11 // pred_check_branch
          %406 = sbr.rel (%p404) target = $region36
        $region35: #{tpu_custom_call.1} parent=11 // pred_region
          _
        $region36: #{tpu_custom_call.1} parent=11 // pred_fallthru
          _
        // Predicated region
        $region37: #{tpu_custom_call.1} parent=11 // pred_check
          %p407 = pneg %p269
        $region38: #{tpu_custom_call.1} parent=11 // pred_check_branch
          %409 = sbr.rel (%p407) target = $region40
        $region39: #{tpu_custom_call.1} parent=11 // pred_region
          _
        $region40: #{tpu_custom_call.1} parent=11 // pred_fallthru
          _
        // Predicated region
        $region41: #{tpu_custom_call.1} parent=11 // pred_check
          %p410 = pneg %p290
        $region42: #{tpu_custom_call.1} parent=11 // pred_check_branch
          %412 = sbr.rel (%p410) target = $region44
        $region43: #{tpu_custom_call.1} parent=11 // pred_region
          _
        $region44: #{tpu_custom_call.1} parent=11 // pred_fallthru
          _
      $region12: #{tpu_custom_call.1} parent=5 // pred_fallthru
        _
      %p413 = scmp.lt.s32.totalorder %s26, 4
      // Predicated region
      $region45: #{tpu_custom_call.1} parent=5 // pred_check
        %p414 = pneg %p413
      $region46: #{tpu_custom_call.1} parent=5 // pred_check_branch
        %416 = sbr.rel (%p414) target = $region48
      $region47: #{tpu_custom_call.1} parent=5 // pred_region
        // Predicated region
        $region49: #{tpu_custom_call.1} parent=47 // pred_check
          %p417 = pneg %p60
        $region50: #{tpu_custom_call.1} parent=47 // pred_check_branch
          %419 = sbr.rel (%p417) target = $region52
        $region51: #{tpu_custom_call.1} parent=47 // pred_region
          %p420 = scmp.lt.s32.totalorder %s33, 1
          %s421 = scalar_select %p420, %s33, 1
          %p422 = scmp.lt.s32.totalorder %s34, 1
          %s423 = scalar_select %p422, %s34, 1
          %s424 = smul.addr %s423, 4
          %s425 = smul.addr %s421, 8
          %s426 = sadd.s32 %s424, %s425
          %s427 = smul.addr %s426, 4
          %s428 = scalar_lea.vmem %s0, %s427
        $region52: #{tpu_custom_call.1} parent=47 // pred_fallthru
          _
        // Predicated region
        $region53: #{tpu_custom_call.1} parent=47 // pred_check
          %p429 = pneg %p88
        $region54: #{tpu_custom_call.1} parent=47 // pred_check_branch
          %431 = sbr.rel (%p429) target = $region56
        $region55: #{tpu_custom_call.1} parent=47 // pred_region
          %p432 = scmp.lt.s32.totalorder %s33, 1
          %s433 = scalar_select %p432, %s33, 1
          %p434 = scmp.lt.s32.totalorder %s34, 1
          %s435 = scalar_select %p434, %s34, 1
          %s436 = smul.addr %s435, 2
          %s437 = smul.addr %s433, 4
          %s438 = sadd.s32 %s436, %s437
          %s439 = scalar_lea.vmem %s1, %s438
        $region56: #{tpu_custom_call.1} parent=47 // pred_fallthru
          _
        // Predicated region
        $region57: #{tpu_custom_call.1} parent=47 // pred_check
          %p440 = pneg %p116
        $region58: #{tpu_custom_call.1} parent=47 // pred_check_branch
          %442 = sbr.rel (%p440) target = $region60
        $region59: #{tpu_custom_call.1} parent=47 // pred_region
          %p443 = scmp.lt.s32.totalorder %s33, 1
          %s444 = scalar_select %p443, %s33, 1
          %p445 = scmp.lt.s32.totalorder %s34, 1
          %s446 = scalar_select %p445, %s34, 1
          %s447 = smul.addr %s444, 2
          %s448 = sadd.s32 %s446, %s447
          %s449 = smul.addr %s448, 8
          %s450 = scalar_lea.vmem %s2, %s449
        $region60: #{tpu_custom_call.1} parent=47 // pred_fallthru
          _
      $region48: #{tpu_custom_call.1} parent=5 // pred_fallthru
        _
      %p451 = scmp.le.s32.totalorder 1, %s26
      %p452 = scmp.lt.s32.totalorder %s26, 5
      %p453 = pnand %p451, %p452
      %p454 = pneg %p453
      // Predicated region
      $region61: #{tpu_custom_call.1} parent=5 // pred_check
        _
      $region62: #{tpu_custom_call.1} parent=5 // pred_check_branch
        %456 = sbr.rel (%p453) target = $region64
      $region63: #{tpu_custom_call.1} parent=5 // pred_region
        %s457 = ssub.s32 %s26, 1
        %p458 = scmp.lt.s32.totalorder %s35, 1
        %s459 = scalar_select %p458, %s35, 1
        %p460 = scmp.lt.s32.totalorder %s36, 1
        %s461 = scalar_select %p460, %s36, 1
        %s462 = smul.addr %s461, 4
        %s463 = smul.addr %s459, 8
        %s464 = sadd.s32 %s462, %s463
        %s465 = smul.addr %s464, 4
        %s466 = scalar_lea.vmem %s0, %s465
        %p467 = pneg %p66
        %p468 = pneg %p63
        %p469 = scmp.lt.s32.totalorder %s35, 1
        %s470 = scalar_select %p469, %s35, 1
        %p471 = scmp.lt.s32.totalorder %s36, 1
        %s472 = scalar_select %p471, %s36, 1
        %s473 = smul.addr %s472, 2
        %s474 = smul.addr %s470, 4
        %s475 = sadd.s32 %s473, %s474
        %s476 = scalar_lea.vmem %s1, %s475
        %p477 = pneg %p94
        %p478 = pneg %p91
        %p479 = scmp.lt.s32.totalorder %s35, 1
        %s480 = scalar_select %p479, %s35, 1
        %p481 = scmp.lt.s32.totalorder %s36, 1
        %s482 = scalar_select %p481, %s36, 1
        %s483 = smul.addr %s480, 2
        %s484 = sadd.s32 %s482, %s483
        %s485 = smul.addr %s484, 8
        %s486 = scalar_lea.vmem %s2, %s485
        %p487 = pneg %p122
        %p488 = pneg %p119
        %p489 = pneg %p143
        %p490 = pneg %p140
        %p491 = pneg %p164
        %p492 = pneg %p161
        %p493 = pneg %p185
        %p494 = pneg %p182
        %p495 = pneg %p206
        %p496 = pneg %p203
        %p497 = pneg %p227
        %p498 = pneg %p224
        %p499 = pneg %p248
        %p500 = pneg %p245
        %p501 = pneg %p269
        %p502 = pneg %p266
        %p503 = pneg %p290
        %p504 = pneg %p287
        %p505 = pneg %p318
        %p506 = pneg %p315
        %s507 = sand.u32 %s305, 1
        %s508 = scalar_lea.sflag [#allocation6], %s507
        %s509 = sand.u32 %s305, 1
        %s510 = smul.addr %s509, 8
        %s511 = scalar_lea.vmem [#allocation5], %s510
        %p512 = pneg %p346
        %p513 = pneg %p343
        %s514 = sand.u32 %s31, 1
        %s515 = scalar_lea.sflag [#allocation8], %s514
        %s516 = sand.u32 %s333, 1
        %s517 = smul.addr %s516, 8
        %s518 = scalar_lea.vmem [#allocation7], %s517
        %p519 = pneg %p374
        %p520 = pneg %p371
        %s521 = sand.u32 %s31, 1
        %s522 = scalar_lea.sflag [#allocation8], %s521
        %s523 = sand.u32 %s361, 1
        %s524 = smul.addr %s523, 8
        %s525 = scalar_lea.vmem [#allocation9], %s524
        %p526 = scmp.lt.s32.totalorder %s35, 1
        %s527 = scalar_select %p526, %s35, 1
        %p528 = scmp.lt.s32.totalorder %s36, 1
        %s529 = scalar_select %p528, %s36, 1
        %s530 = smul.addr %s529, 4
        %s531 = smul.addr %s527, 8
        %s532 = sadd.s32 %s530, %s531
        %s533 = smul.addr %s532, 4
        %s534 = scalar_lea.vmem %s0, %s533
        %p535 = scmp.lt.s32.totalorder %s35, 1
        %s536 = scalar_select %p535, %s35, 1
        %p537 = scmp.lt.s32.totalorder %s36, 1
        %s538 = scalar_select %p537, %s36, 1
        %s539 = smul.addr %s538, 2
        %s540 = smul.addr %s536, 4
        %s541 = sadd.s32 %s539, %s540
        %s542 = scalar_lea.vmem %s1, %s541
        %p543 = scmp.lt.s32.totalorder %s35, 1
        %s544 = scalar_select %p543, %s35, 1
        %p545 = scmp.lt.s32.totalorder %s36, 1
        %s546 = scalar_select %p545, %s36, 1
        %s547 = smul.addr %s544, 2
        %s548 = sadd.s32 %s546, %s547
        %s549 = smul.addr %s548, 8
        %s550 = scalar_lea.vmem %s2, %s549
        %v552 = vld [vmem:[%s534] sm:$0xff]
        %v553 = vld [vmem:[%s534 + $0x8] sm:$0xff]
        %v554 = vld [vmem:[%s542] sm:$0x3]
        %v556 = vlaneseq
        %v557 = vshrl.u32 %v556, 7
        %v558 = vsub.s32 0, %v557
        %v559 = vrot.slane %v554, %v558
        %v560 = vlaneseq
        %v561 = vshrl.u32 %v560, 7
        %v562 = vsub.s32 1, %v561
        %v563 = vrot.slane %v554, %v562
        %v566 = vld [vmem:[%s3] sm:$0xf]
        %v567 = vld [vmem:[%s3 + $0x4] sm:$0xf]
        %v568 = vld [vmem:[%s3 + $0x8] sm:$0xf]
        %v569 = vld [vmem:[%s3 + $0xc] sm:$0xf]
        %v570 = vld [vmem:[%s4] sm:$0xff]
        %v571 = vld [vmem:[%s4 + $0x8] sm:$0xff]
        %v572 = vld [vmem:[%s4 + $0x10] sm:$0xff]
        %v573 = vld [vmem:[%s4 + $0x18] sm:$0xff]
        %575 = vset.pattern.permute.xlu0 0
        %576 = vperm.xlu0 %575, %v570
        %v577 = vpop.permute.xlu0 %576
        %580 = vset.pattern.permute.xlu0 0
        %581 = vperm.xlu0 %580, %v571
        %v582 = vpop.permute.xlu0 %581
        %585 = vset.pattern.permute.xlu0 0
        %586 = vperm.xlu0 %585, %v572
        %v587 = vpop.permute.xlu0 %586
        %590 = vset.pattern.permute.xlu0 0
        %591 = vperm.xlu0 %590, %v573
        %v592 = vpop.permute.xlu0 %591
        %v598 = vunpack.c.l.b16 %v566
        %v599 = vunpack.c.l.b16 %v567
        %v600 = vunpack.c.l.b16 %v568
        %v601 = vunpack.c.l.b16 %v569
        %v602 = vpack.c.b16 %v599, %v598
        %v603 = vpack.c.b16 %v601, %v600
        %v606 = vunpack.c.l.b16 %v552
        %v607 = vunpack.c.h.b16 %v552
        %v608 = vunpack.c.l.b16 %v553
        %v609 = vunpack.c.h.b16 %v553
        %v610 = vpack.c.b16 %v608, %v606
        %v611 = vpack.c.b16 %v609, %v607
        %vm614 = vcmask 130048
        %v616 = vsel %vm614, %v602, 0
        %v619 = vsel %vm614, %v603, 0
        %621 = vmatprep.subr.bf16.mxu0 %v611
        %622 = vmatpush1.bf16.msra.mxu0 %v610
        %623 = vmatprep.subr.bf16.mxu0 0
        %624 = vmatpush1.bf16.msra.mxu0 0
        %625 = vmatprep.subr.bf16.mxu0 0
        %626 = vmatpush1.bf16.msra.mxu0 0
        %627 = vmatprep.subr.bf16.mxu0 0
        %628 = vmatpush1.bf16.msra.mxu0 0
        %629 = vmatprep.subr.bf16.mxu0 0
        %630 = vmatpush1.bf16.msra.mxu0 0
        %631 = vmatprep.subr.bf16.mxu0 0
        %632 = vmatpush1.bf16.msra.mxu0 0
        %633 = vmatprep.subr.bf16.mxu0 0
        %634 = vmatpush1.bf16.msra.mxu0 0
        %635 = vmatprep.subr.bf16.mxu0 0
        %636 = vmatpush1.bf16.msra.mxu0 0
        %637 = vmatprep.subr.bf16.mxu0 0
        %638 = vmatpush1.bf16.msra.mxu0 0
        %639 = vmatprep.subr.bf16.mxu0 0
        %640 = vmatpush1.bf16.msra.mxu0 0
        %641 = vmatprep.subr.bf16.mxu0 0
        %642 = vmatpush1.bf16.msra.mxu0 0
        %643 = vmatprep.subr.bf16.mxu0 0
        %644 = vmatpush1.bf16.msra.mxu0 0
        %645 = vmatprep.subr.bf16.mxu0 0
        %646 = vmatpush1.bf16.msra.mxu0 0
        %647 = vmatprep.subr.bf16.mxu0 0
        %648 = vmatpush1.bf16.msra.mxu0 0
        %649 = vmatprep.subr.bf16.mxu0 0
        %650 = vmatpush1.bf16.msra.mxu0 0
        %651 = vmatprep.subr.bf16.mxu0 0
        %652 = vmatpush1.bf16.msra.mxu0 0
        %653 = vmatprep.mubr.bf16.mxu0 0
        %654 = vmatmul.mubr.bf16.gmra.mrb[0].mxu0 %v616
        %v655 = vpop.f32.mrb[0].mxu0
        %v656 = vadd.f32 %v577, %v655
        %v657 = vpop.f32.mrb[0].mxu0
        %v658 = vadd.f32 %v577, %v657
        %v659 = vpop.f32.mrb[0].mxu0
        %v660 = vadd.f32 %v582, %v659
        %v661 = vpop.f32.mrb[0].mxu0
        %v662 = vadd.f32 %v582, %v661
        %663 = vmatprep.mubr.bf16.mxu0 0
        %664 = vmatmul.mubr.bf16.gmra.mrb[0].mxu0 %v619
        %v665 = vpop.f32.mrb[0].mxu0
        %v666 = vadd.f32 %v587, %v665
        %v667 = vpop.f32.mrb[0].mxu0
        %v668 = vadd.f32 %v587, %v667
        %v669 = vpop.f32.mrb[0].mxu0
        %v670 = vadd.f32 %v592, %v669
        %v671 = vpop.f32.mrb[0].mxu0
        %v672 = vadd.f32 %v592, %v671
        %673 = vdwg.mxu0
        %v674 = vmul.f32 %v656, %v559
        %v675 = vmul.f32 %v658, %v563
        %v676 = vmul.f32 %v660, %v559
        %v677 = vmul.f32 %v662, %v563
        %v678 = vmul.f32 %v666, %v559
        %v679 = vmul.f32 %v668, %v563
        %v680 = vmul.f32 %v670, %v559
        %v681 = vmul.f32 %v672, %v563
        %vm682 = vcmask 15360
        %683 = vst.msk [vmem:[#allocation2] sm:$0xff] %vm682, 0.0
        %684 = vst.msk [vmem:[#allocation2 + $0x10] sm:$0xff] %vm682, 0.0
        %685 = vst.msk [vmem:[#allocation2 + $0x20] sm:$0xff] %vm682, 0.0
        %686 = vst.msk [vmem:[#allocation2 + $0x30] sm:$0xff] %vm682, 0.0
        %vm687 = vcmask 162960
        %688 = vst.msk [vmem:[#allocation2 + $0x8] sm:$0xff] %vm687, 0.0
        %689 = vst.msk [vmem:[#allocation2 + $0x18] sm:$0xff] %vm687, 0.0
        %690 = vst.msk [vmem:[#allocation2 + $0x28] sm:$0xff] %vm687, 0.0
        %691 = vst.msk [vmem:[#allocation2 + $0x38] sm:$0xff] %vm687, 0.0
        %700 = vrot.lane.b32.xlu0 %v674, 2
        %v701 = vpop.permute.xlu0 %700
        %702 = vrot.lane.b32.xlu0 %v675, 2
        %v703 = vpop.permute.xlu0 %702
        %704 = vrot.lane.b32.xlu0 %v676, 2
        %v705 = vpop.permute.xlu0 %704
        %706 = vrot.lane.b32.xlu0 %v677, 2
        %v707 = vpop.permute.xlu0 %706
        %708 = vrot.lane.b32.xlu0 %v678, 2
        %v709 = vpop.permute.xlu0 %708
        %710 = vrot.lane.b32.xlu0 %v679, 2
        %v711 = vpop.permute.xlu0 %710
        %712 = vrot.lane.b32.xlu0 %v680, 2
        %v713 = vpop.permute.xlu0 %712
        %714 = vrot.lane.b32.xlu0 %v681, 2
        %v715 = vpop.permute.xlu0 %714
        %v716 = vsel %vm682, %v701, %v703
        %v717 = vsel %vm682, %v705, %v707
        %v718 = vsel %vm682, %v709, %v711
        %v719 = vsel %vm682, %v713, %v715
        %vm728 = vcmask 1047568
        %729 = vst.msk [vmem:[#allocation2] sm:$0xff] %vm728, %v701
        %vm730 = vcmask 146432
        %731 = vst.msk [vmem:[#allocation2 + $0x8] sm:$0xff] %vm730, %v716
        %732 = vst.msk [vmem:[#allocation2 + $0x10] sm:$0xff] %vm728, %v705
        %733 = vst.msk [vmem:[#allocation2 + $0x18] sm:$0xff] %vm730, %v717
        %734 = vst.msk [vmem:[#allocation2 + $0x20] sm:$0xff] %vm728, %v709
        %735 = vst.msk [vmem:[#allocation2 + $0x28] sm:$0xff] %vm730, %v718
        %736 = vst.msk [vmem:[#allocation2 + $0x30] sm:$0xff] %vm728, %v713
        %737 = vst.msk [vmem:[#allocation2 + $0x38] sm:$0xff] %vm730, %v719
        %738 = vst [vmem:[#allocation3] sm:$0xff] 0.0
        %739 = vst.msk [vmem:[#allocation3 + $0x8] sm:$0xff] %vm614, 0.0
        %740 = vst [vmem:[#allocation3 + $0x10] sm:$0xff] 0.0
        %741 = vst.msk [vmem:[#allocation3 + $0x18] sm:$0xff] %vm614, 0.0
        %742 = vst [vmem:[#allocation3 + $0x20] sm:$0xff] 0.0
        %743 = vst.msk [vmem:[#allocation3 + $0x28] sm:$0xff] %vm614, 0.0
        %744 = vst [vmem:[#allocation3 + $0x30] sm:$0xff] 0.0
        %745 = vst.msk [vmem:[#allocation3 + $0x38] sm:$0xff] %vm614, 0.0
        loop: start=0, step=1, limit=4
        $region65: #{tpu_custom_call.1} parent=63 // loop_pre_header
          _
        $region66: #{tpu_custom_call.1} parent=63 // loop_header
          %s747 = sphi 0, %s751
          %p748 = scmp.ge.s32.totalorder %s747, 4
        $region67: #{tpu_custom_call.1} parent=63 // loop_header_branch
          %750 = sbr.rel (%p748) target = $region71
        $region68: #{tpu_custom_call.1} parent=63 // loop_body
          %v752 = vld [vmem:[#allocation2] sm:$0xff]
          %v753 = vld [vmem:[#allocation2 + $0x8] sm:$0xff]
          %v754 = vld [vmem:[#allocation2 + $0x10] sm:$0xff]
          %v755 = vld [vmem:[#allocation2 + $0x18] sm:$0xff]
          %v756 = vld [vmem:[#allocation2 + $0x20] sm:$0xff]
          %v757 = vld [vmem:[#allocation2 + $0x28] sm:$0xff]
          %v758 = vld [vmem:[#allocation2 + $0x30] sm:$0xff]
          %v759 = vld [vmem:[#allocation2 + $0x38] sm:$0xff]
          %v760 = vpack.c.bf16 %v754, %v752
          %v761 = vpack.c.bf16 %v755, %v753
          %v762 = vpack.c.bf16 %v758, %v756
          %v763 = vpack.c.bf16 %v759, %v757
          %764 = vst [vmem:[#allocation4] sm:$0xff] %v760
          %765 = vst.msk [vmem:[#allocation4 + $0x8] sm:$0xff] %vm614, %v761
          %766 = vst [vmem:[#allocation4 + $0x10] sm:$0xff] %v762
          %767 = vst.msk [vmem:[#allocation4 + $0x18] sm:$0xff] %vm614, %v763
          %v768 = vld [vmem:[#allocation2] sm:$0xff]
          %v769 = vld [vmem:[#allocation2 + $0x8] sm:$0xff]
          %v770 = vld [vmem:[#allocation2 + $0x10] sm:$0xff]
          %v771 = vld [vmem:[#allocation2 + $0x18] sm:$0xff]
          %v772 = vld [vmem:[#allocation2 + $0x20] sm:$0xff]
          %v773 = vld [vmem:[#allocation2 + $0x28] sm:$0xff]
          %v774 = vld [vmem:[#allocation2 + $0x30] sm:$0xff]
          %v775 = vld [vmem:[#allocation2 + $0x38] sm:$0xff]
          %v776 = vpack.c.bf16 %v770, %v768
          %v777 = vpack.c.bf16 %v771, %v769
          %v778 = vpack.c.bf16 %v774, %v772
          %v779 = vpack.c.bf16 %v775, %v773
          %784 = vrot.lane.b32.xlu0 %v776, 127
          %v785 = vpop.permute.xlu0 %784
          %786 = vrot.lane.b32.xlu0 %v777, 127
          %v787 = vpop.permute.xlu0 %786
          %788 = vrot.lane.b32.xlu0 %v778, 127
          %v789 = vpop.permute.xlu0 %788
          %790 = vrot.lane.b32.xlu0 %v779, 127
          %v791 = vpop.permute.xlu0 %790
          %vm792 = vcmask 1039360
          %v793 = vsel %vm792, %v785, %v787
          %v794 = vsel %vm792, %v789, %v791
          %799 = vst [vmem:[#allocation4 + $0x20] sm:$0xff] %v793
          %800 = vst.msk [vmem:[#allocation4 + $0x28] sm:$0xff] %vm614, %v787
          %801 = vst [vmem:[#allocation4 + $0x30] sm:$0xff] %v794
          %802 = vst.msk [vmem:[#allocation4 + $0x38] sm:$0xff] %vm614, %v791
          %v803 = vld [vmem:[#allocation2] sm:$0xff]
          %v804 = vld [vmem:[#allocation2 + $0x8] sm:$0xff]
          %v805 = vld [vmem:[#allocation2 + $0x10] sm:$0xff]
          %v806 = vld [vmem:[#allocation2 + $0x18] sm:$0xff]
          %v807 = vld [vmem:[#allocation2 + $0x20] sm:$0xff]
          %v808 = vld [vmem:[#allocation2 + $0x28] sm:$0xff]
          %v809 = vld [vmem:[#allocation2 + $0x30] sm:$0xff]
          %v810 = vld [vmem:[#allocation2 + $0x38] sm:$0xff]
          %v811 = vpack.c.bf16 %v805, %v803
          %v812 = vpack.c.bf16 %v806, %v804
          %v813 = vpack.c.bf16 %v809, %v807
          %v814 = vpack.c.bf16 %v810, %v808
          %819 = vrot.lane.b32.xlu0 %v811, 126
          %v820 = vpop.permute.xlu0 %819
          %821 = vrot.lane.b32.xlu0 %v812, 126
          %v822 = vpop.permute.xlu0 %821
          %823 = vrot.lane.b32.xlu0 %v813, 126
          %v824 = vpop.permute.xlu0 %823
          %825 = vrot.lane.b32.xlu0 %v814, 126
          %v826 = vpop.permute.xlu0 %825
          %vm827 = vcmask 1031168
          %v828 = vsel %vm827, %v820, %v822
          %v829 = vsel %vm827, %v824, %v826
          %834 = vst [vmem:[#allocation4 + $0x40] sm:$0xff] %v828
          %835 = vst.msk [vmem:[#allocation4 + $0x48] sm:$0xff] %vm614, %v822
          %836 = vst [vmem:[#allocation4 + $0x50] sm:$0xff] %v829
          %837 = vst.msk [vmem:[#allocation4 + $0x58] sm:$0xff] %vm614, %v826
          %v838 = vld [vmem:[#allocation2] sm:$0xff]
          %v839 = vld [vmem:[#allocation2 + $0x8] sm:$0xff]
          %v840 = vld [vmem:[#allocation2 + $0x10] sm:$0xff]
          %v841 = vld [vmem:[#allocation2 + $0x18] sm:$0xff]
          %v842 = vld [vmem:[#allocation2 + $0x20] sm:$0xff]
          %v843 = vld [vmem:[#allocation2 + $0x28] sm:$0xff]
          %v844 = vld [vmem:[#allocation2 + $0x30] sm:$0xff]
          %v845 = vld [vmem:[#allocation2 + $0x38] sm:$0xff]
          %v846 = vpack.c.bf16 %v840, %v838
          %v847 = vpack.c.bf16 %v841, %v839
          %v848 = vpack.c.bf16 %v844, %v842
          %v849 = vpack.c.bf16 %v845, %v843
          %854 = vrot.lane.b32.xlu0 %v846, 125
          %v855 = vpop.permute.xlu0 %854
          %856 = vrot.lane.b32.xlu0 %v847, 125
          %v857 = vpop.permute.xlu0 %856
          %858 = vrot.lane.b32.xlu0 %v848, 125
          %v859 = vpop.permute.xlu0 %858
          %860 = vrot.lane.b32.xlu0 %v849, 125
          %v861 = vpop.permute.xlu0 %860
          %vm862 = vcmask 1022976
          %v863 = vsel %vm862, %v855, %v857
          %v864 = vsel %vm862, %v859, %v861
          %869 = vst [vmem:[#allocation4 + $0x60] sm:$0xff] %v863
          %870 = vst.msk [vmem:[#allocation4 + $0x68] sm:$0xff] %vm614, %v857
          %871 = vst [vmem:[#allocation4 + $0x70] sm:$0xff] %v864
          %872 = vst.msk [vmem:[#allocation4 + $0x78] sm:$0xff] %vm614, %v861
          %v873 = vld [vmem:[#allocation2] sm:$0xff]
          %v874 = vld [vmem:[#allocation2 + $0x8] sm:$0xff]
          %v875 = vld [vmem:[#allocation2 + $0x10] sm:$0xff]
          %v876 = vld [vmem:[#allocation2 + $0x18] sm:$0xff]
          %v877 = vld [vmem:[#allocation2 + $0x20] sm:$0xff]
          %v878 = vld [vmem:[#allocation2 + $0x28] sm:$0xff]
          %v879 = vld [vmem:[#allocation2 + $0x30] sm:$0xff]
          %v880 = vld [vmem:[#allocation2 + $0x38] sm:$0xff]
          %v881 = vpack.c.bf16 %v875, %v873
          %v882 = vpack.c.bf16 %v876, %v874
          %v883 = vpack.c.bf16 %v879, %v877
          %v884 = vpack.c.bf16 %v880, %v878
          %889 = vrot.lane.b32.xlu0 %v881, 124
          %v890 = vpop.permute.xlu0 %889
          %891 = vrot.lane.b32.xlu0 %v882, 124
          %v892 = vpop.permute.xlu0 %891
          %893 = vrot.lane.b32.xlu0 %v883, 124
          %v894 = vpop.permute.xlu0 %893
          %895 = vrot.lane.b32.xlu0 %v884, 124
          %v896 = vpop.permute.xlu0 %895
          %vm897 = vcmask 1014784
          %v898 = vsel %vm897, %v890, %v892
          %v899 = vsel %vm897, %v894, %v896
          %904 = vst [vmem:[#allocation4 + $0x80] sm:$0xff] %v898
          %905 = vst.msk [vmem:[#allocation4 + $0x88] sm:$0xff] %vm614, %v892
          %906 = vst [vmem:[#allocation4 + $0x90] sm:$0xff] %v899
          %907 = vst.msk [vmem:[#allocation4 + $0x98] sm:$0xff] %vm614, %v896
          %s908 = smul.u32 %s747, 16
          %s909 = smul.addr %s908, 4
          %s910 = scalar_lea.vmem %s5, %s909
          %v911 = vld [vmem:[%s910] sm:$0xff]
          %v912 = vld [vmem:[%s910 + $0x8] sm:$0xff]
          %v913 = vld [vmem:[%s910 + $0x10] sm:$0xff]
          %v914 = vld [vmem:[%s910 + $0x18] sm:$0xff]
          %v915 = vld [vmem:[%s910 + $0x20] sm:$0xff]
          %v916 = vld [vmem:[%s910 + $0x28] sm:$0xff]
          %v917 = vld [vmem:[%s910 + $0x30] sm:$0xff]
          %v918 = vld [vmem:[%s910 + $0x38] sm:$0xff]
          %v919 = vld [vmem:[#allocation4] sm:$0xff]
          %v920 = vld [vmem:[#allocation4 + $0x8] sm:$0xff]
          %v921 = vld [vmem:[#allocation4 + $0x10] sm:$0xff]
          %v922 = vld [vmem:[#allocation4 + $0x18] sm:$0xff]
          %v923 = vld [vmem:[#allocation4 + $0x20] sm:$0xff]
          %v924 = vld [vmem:[#allocation4 + $0x28] sm:$0xff]
          %v925 = vld [vmem:[#allocation4 + $0x30] sm:$0xff]
          %v926 = vld [vmem:[#allocation4 + $0x38] sm:$0xff]
          %v927 = vld [vmem:[#allocation4 + $0x40] sm:$0xff]
          %v928 = vld [vmem:[#allocation4 + $0x48] sm:$0xff]
          %v929 = vld [vmem:[#allocation4 + $0x50] sm:$0xff]
          %v930 = vld [vmem:[#allocation4 + $0x58] sm:$0xff]
          %v931 = vld [vmem:[#allocation4 + $0x60] sm:$0xff]
          %v932 = vld [vmem:[#allocation4 + $0x68] sm:$0xff]
          %v933 = vld [vmem:[#allocation4 + $0x70] sm:$0xff]
          %v934 = vld [vmem:[#allocation4 + $0x78] sm:$0xff]
          %v935 = vld [vmem:[#allocation4 + $0x80] sm:$0xff]
          %v936 = vld [vmem:[#allocation4 + $0x88] sm:$0xff]
          %v937 = vld [vmem:[#allocation4 + $0x90] sm:$0xff]
          %v938 = vld [vmem:[#allocation4 + $0x98] sm:$0xff]
          %s939 = smul.u32 %s747, 64
          %s940 = scalar_lea.vmem %s6, %s939
          %v941 = vld [vmem:[%s940] sm:$0xff]
          %v942 = vld [vmem:[%s940 + $0x8] sm:$0xff]
          %v943 = vld [vmem:[%s940 + $0x10] sm:$0xff]
          %v944 = vld [vmem:[%s940 + $0x18] sm:$0xff]
          %v945 = vld [vmem:[%s940 + $0x20] sm:$0xff]
          %v946 = vld [vmem:[%s940 + $0x28] sm:$0xff]
          %v947 = vld [vmem:[%s940 + $0x30] sm:$0xff]
          %v948 = vld [vmem:[%s940 + $0x38] sm:$0xff]
          %950 = vset.pattern.permute.xlu0 0
          %951 = vperm.xlu0 %950, %v941
          %v952 = vpop.permute.xlu0 %951
          %955 = vset.pattern.permute.xlu0 0
          %956 = vperm.xlu0 %955, %v942
          %v957 = vpop.permute.xlu0 %956
          %960 = vset.pattern.permute.xlu0 0
          %961 = vperm.xlu0 %960, %v943
          %v962 = vpop.permute.xlu0 %961
          %965 = vset.pattern.permute.xlu0 0
          %966 = vperm.xlu0 %965, %v944
          %v967 = vpop.permute.xlu0 %966
          %970 = vset.pattern.permute.xlu0 0
          %971 = vperm.xlu0 %970, %v945
          %v972 = vpop.permute.xlu0 %971
          %975 = vset.pattern.permute.xlu0 0
          %976 = vperm.xlu0 %975, %v946
          %v977 = vpop.permute.xlu0 %976
          %980 = vset.pattern.permute.xlu0 0
          %981 = vperm.xlu0 %980, %v947
          %v982 = vpop.permute.xlu0 %981
          %985 = vset.pattern.permute.xlu0 0
          %986 = vperm.xlu0 %985, %v948
          %v987 = vpop.permute.xlu0 %986
          %v997 = vunpack.c.l.b16 %v911
          %v998 = vunpack.c.h.b16 %v911
          %v999 = vunpack.c.l.b16 %v912
          %v1000 = vunpack.c.h.b16 %v912
          %v1001 = vunpack.c.l.b16 %v913
          %v1002 = vunpack.c.h.b16 %v913
          %v1003 = vunpack.c.l.b16 %v914
          %v1004 = vunpack.c.h.b16 %v914
          %v1005 = vunpack.c.l.b16 %v915
          %v1006 = vunpack.c.h.b16 %v915
          %v1007 = vunpack.c.l.b16 %v916
          %v1008 = vunpack.c.h.b16 %v916
          %v1009 = vunpack.c.l.b16 %v917
          %v1010 = vunpack.c.h.b16 %v917
          %v1011 = vunpack.c.l.b16 %v918
          %v1012 = vunpack.c.h.b16 %v918
          %v1013 = vpack.c.b16 %v999, %v997
          %v1014 = vpack.c.b16 %v1000, %v998
          %v1015 = vpack.c.b16 %v1003, %v1001
          %v1016 = vpack.c.b16 %v1004, %v1002
          %v1017 = vpack.c.b16 %v1007, %v1005
          %v1018 = vpack.c.b16 %v1008, %v1006
          %v1019 = vpack.c.b16 %v1011, %v1009
          %v1020 = vpack.c.b16 %v1012, %v1010
          %vm1025 = vcmask 261120
          %v1027 = vsel %vm1025, %v1014, 0
          %v1030 = vsel %vm1025, %v1016, 0
          %v1033 = vsel %vm1025, %v1018, 0
          %v1036 = vsel %vm1025, %v1020, 0
          %1038 = vmatprep.subr.bf16.mxu0 %v920
          %1039 = vmatpush1.bf16.msra.mxu0 %v919
          %1040 = vmatprep.subr.bf16.mxu0 %v922
          %1041 = vmatpush1.bf16.msra.mxu0 %v921
          %1042 = vmatprep.subr.bf16.mxu0 %v924
          %1043 = vmatpush1.bf16.msra.mxu0 %v923
          %1044 = vmatprep.subr.bf16.mxu0 %v926
          %1045 = vmatpush1.bf16.msra.mxu0 %v925
          %1046 = vmatprep.subr.bf16.mxu0 %v928
          %1047 = vmatpush1.bf16.msra.mxu0 %v927
          %1048 = vmatprep.subr.bf16.mxu0 %v930
          %1049 = vmatpush1.bf16.msra.mxu0 %v929
          %1050 = vmatprep.subr.bf16.mxu0 %v932
          %1051 = vmatpush1.bf16.msra.mxu0 %v931
          %1052 = vmatprep.subr.bf16.mxu0 %v934
          %1053 = vmatpush1.bf16.msra.mxu0 %v933
          %1054 = vmatprep.subr.bf16.mxu0 %v936
          %1055 = vmatpush1.bf16.msra.mxu0 %v935
          %1056 = vmatprep.subr.bf16.mxu0 %v938
          %1057 = vmatpush1.bf16.msra.mxu0 %v937
          %1058 = vmatprep.subr.bf16.mxu0 0
          %1059 = vmatpush1.bf16.msra.mxu0 0
          %1060 = vmatprep.subr.bf16.mxu0 0
          %1061 = vmatpush1.bf16.msra.mxu0 0
          %1062 = vmatprep.subr.bf16.mxu0 0
          %1063 = vmatpush1.bf16.msra.mxu0 0
          %1064 = vmatprep.subr.bf16.mxu0 0
          %1065 = vmatpush1.bf16.msra.mxu0 0
          %1066 = vmatprep.subr.bf16.mxu0 0
          %1067 = vmatpush1.bf16.msra.mxu0 0
          %1068 = vmatprep.subr.bf16.mxu0 0
          %1069 = vmatpush1.bf16.msra.mxu0 0
          %1070 = vmatprep.mubr.bf16.mxu0 %v1027
          %1071 = vmatmul.mubr.bf16.gmra.mrb[0].mxu0 %v1013
          %v1072 = vpop.f32.mrb[0].mxu0
          %v1073 = vadd.f32 %v952, %v1072
          %v1074 = vpop.f32.mrb[0].mxu0
          %v1075 = vadd.f32 %v952, %v1074
          %v1076 = vpop.f32.mrb[0].mxu0
          %v1077 = vadd.f32 %v957, %v1076
          %v1078 = vpop.f32.mrb[0].mxu0
          %v1079 = vadd.f32 %v957, %v1078
          %1080 = vmatprep.mubr.bf16.mxu0 %v1030
          %1081 = vmatmul.mubr.bf16.gmra.mrb[0].mxu0 %v1015
          %v1082 = vpop.f32.mrb[0].mxu0
          %v1083 = vadd.f32 %v962, %v1082
          %v1084 = vpop.f32.mrb[0].mxu0
          %v1085 = vadd.f32 %v962, %v1084
          %v1086 = vpop.f32.mrb[0].mxu0
          %v1087 = vadd.f32 %v967, %v1086
          %v1088 = vpop.f32.mrb[0].mxu0
          %v1089 = vadd.f32 %v967, %v1088
          %1090 = vmatprep.mubr.bf16.mxu0 %v1033
          %1091 = vmatmul.mubr.bf16.gmra.mrb[0].mxu0 %v1017
          %v1092 = vpop.f32.mrb[0].mxu0
          %v1093 = vadd.f32 %v972, %v1092
          %v1094 = vpop.f32.mrb[0].mxu0
          %v1095 = vadd.f32 %v972, %v1094
          %v1096 = vpop.f32.mrb[0].mxu0
          %v1097 = vadd.f32 %v977, %v1096
          %v1098 = vpop.f32.mrb[0].mxu0
          %v1099 = vadd.f32 %v977, %v1098
          %1100 = vmatprep.mubr.bf16.mxu0 %v1036
          %1101 = vmatmul.mubr.bf16.gmra.mrb[0].mxu0 %v1019
          %v1102 = vpop.f32.mrb[0].mxu0
          %v1103 = vadd.f32 %v982, %v1102
          %v1104 = vpop.f32.mrb[0].mxu0
          %v1105 = vadd.f32 %v982, %v1104
          %v1106 = vpop.f32.mrb[0].mxu0
          %v1107 = vadd.f32 %v987, %v1106
          %v1108 = vpop.f32.mrb[0].mxu0
          %v1109 = vadd.f32 %v987, %v1108
          %1110 = vdwg.mxu0
          %v1111 = vtanh.pop %v1073
          %v1112 = vtanh.pop %v1075
          %v1113 = vtanh.pop %v1077
          %v1114 = vtanh.pop %v1079
          %v1115 = vtanh.pop %v1083
          %v1116 = vtanh.pop %v1085
          %v1117 = vtanh.pop %v1087
          %v1118 = vtanh.pop %v1089
          %v1119 = vxor.u32 %v1093, 2147483648
          %v1120 = vxor.u32 %v1095, 2147483648
          %v1121 = vxor.u32 %v1097, 2147483648
          %v1122 = vxor.u32 %v1099, 2147483648
          %v1123 = vxor.u32 %v1103, 2147483648
          %v1124 = vxor.u32 %v1105, 2147483648
          %v1125 = vxor.u32 %v1107, 2147483648
          %v1126 = vxor.u32 %v1109, 2147483648
          %v1127 = vmul.f32 %v1119, 1.442695
          %v1128 = vpow.pop %v1127
          %v1129 = vmul.f32 %v1120, 1.442695
          %v1130 = vpow.pop %v1129
          %v1131 = vmul.f32 %v1121, 1.442695
          %v1132 = vpow.pop %v1131
          %v1133 = vmul.f32 %v1122, 1.442695
          %v1134 = vpow.pop %v1133
          %v1135 = vmul.f32 %v1123, 1.442695
          %v1136 = vpow.pop %v1135
          %v1137 = vmul.f32 %v1124, 1.442695
          %v1138 = vpow.pop %v1137
          %v1139 = vmul.f32 %v1125, 1.442695
          %v1140 = vpow.pop %v1139
          %v1141 = vmul.f32 %v1126, 1.442695
          %v1142 = vpow.pop %v1141
          %v1143 = vadd.f32 %v1128, 1.0
          %v1144 = vadd.f32 %v1130, 1.0
          %v1145 = vadd.f32 %v1132, 1.0
          %v1146 = vadd.f32 %v1134, 1.0
          %v1147 = vadd.f32 %v1136, 1.0
          %v1148 = vadd.f32 %v1138, 1.0
          %v1149 = vadd.f32 %v1140, 1.0
          %v1150 = vadd.f32 %v1142, 1.0
          %v1151 = vrcp.pop %v1143
          %v1152 = vmul.f32 1.0, %v1151
          %v1153 = vrcp.pop %v1144
          %v1154 = vmul.f32 1.0, %v1153
          %v1155 = vrcp.pop %v1145
          %v1156 = vmul.f32 1.0, %v1155
          %v1157 = vrcp.pop %v1146
          %v1158 = vmul.f32 1.0, %v1157
          %v1159 = vrcp.pop %v1147
          %v1160 = vmul.f32 1.0, %v1159
          %v1161 = vrcp.pop %v1148
          %v1162 = vmul.f32 1.0, %v1161
          %v1163 = vrcp.pop %v1149
          %v1164 = vmul.f32 1.0, %v1163
          %v1165 = vrcp.pop %v1150
          %v1166 = vmul.f32 1.0, %v1165
          %v1167 = vmul.f32 %v1111, %v1152
          %v1168 = vmul.f32 %v1112, %v1154
          %v1169 = vmul.f32 %v1113, %v1156
          %v1170 = vmul.f32 %v1114, %v1158
          %v1171 = vmul.f32 %v1115, %v1160
          %v1172 = vmul.f32 %v1116, %v1162
          %v1173 = vmul.f32 %v1117, %v1164
          %v1174 = vmul.f32 %v1118, %v1166
          %s1175 = smul.u32 %s747, 8
          %s1176 = smul.addr %s1175, 4
          %s1177 = scalar_lea.vmem %s7, %s1176
          %v1178 = vld [vmem:[%s1177] sm:$0xf]
          %v1179 = vld [vmem:[%s1177 + $0x4] sm:$0xf]
          %v1180 = vld [vmem:[%s1177 + $0x8] sm:$0xf]
          %v1181 = vld [vmem:[%s1177 + $0xc] sm:$0xf]
          %v1182 = vld [vmem:[%s1177 + $0x10] sm:$0xf]
          %v1183 = vld [vmem:[%s1177 + $0x14] sm:$0xf]
          %v1184 = vld [vmem:[%s1177 + $0x18] sm:$0xf]
          %v1185 = vld [vmem:[%s1177 + $0x1c] sm:$0xf]
          %v1186 = vpack.c.bf16 %v1169, %v1167
          %v1187 = vpack.c.bf16 %v1170, %v1168
          %v1188 = vpack.c.bf16 %v1173, %v1171
          %v1189 = vpack.c.bf16 %v1174, %v1172
          %s1190 = scalar_lea.vmem %s8, %s939
          %v1191 = vld [vmem:[%s1190] sm:$0xff]
          %v1192 = vld [vmem:[%s1190 + $0x8] sm:$0xff]
          %v1193 = vld [vmem:[%s1190 + $0x10] sm:$0xff]
          %v1194 = vld [vmem:[%s1190 + $0x18] sm:$0xff]
          %v1195 = vld [vmem:[%s1190 + $0x20] sm:$0xff]
          %v1196 = vld [vmem:[%s1190 + $0x28] sm:$0xff]
          %v1197 = vld [vmem:[%s1190 + $0x30] sm:$0xff]
          %v1198 = vld [vmem:[%s1190 + $0x38] sm:$0xff]
          %1200 = vset.pattern.permute.xlu0 0
          %1201 = vperm.xlu0 %1200, %v1191
          %v1202 = vpop.permute.xlu0 %1201
          %1205 = vset.pattern.permute.xlu0 0
          %1206 = vperm.xlu0 %1205, %v1192
          %v1207 = vpop.permute.xlu0 %1206
          %1210 = vset.pattern.permute.xlu0 0
          %1211 = vperm.xlu0 %1210, %v1193
          %v1212 = vpop.permute.xlu0 %1211
          %1215 = vset.pattern.permute.xlu0 0
          %1216 = vperm.xlu0 %1215, %v1194
          %v1217 = vpop.permute.xlu0 %1216
          %1220 = vset.pattern.permute.xlu0 0
          %1221 = vperm.xlu0 %1220, %v1195
          %v1222 = vpop.permute.xlu0 %1221
          %1225 = vset.pattern.permute.xlu0 0
          %1226 = vperm.xlu0 %1225, %v1196
          %v1227 = vpop.permute.xlu0 %1226
          %1230 = vset.pattern.permute.xlu0 0
          %1231 = vperm.xlu0 %1230, %v1197
          %v1232 = vpop.permute.xlu0 %1231
          %1235 = vset.pattern.permute.xlu0 0
          %1236 = vperm.xlu0 %1235, %v1198
          %v1237 = vpop.permute.xlu0 %1236
          %v1247 = vunpack.c.l.b16 %v1178
          %v1248 = vunpack.c.l.b16 %v1179
          %v1249 = vunpack.c.l.b16 %v1180
          %v1250 = vunpack.c.l.b16 %v1181
          %v1251 = vunpack.c.l.b16 %v1182
          %v1252 = vunpack.c.l.b16 %v1183
          %v1253 = vunpack.c.l.b16 %v1184
          %v1254 = vunpack.c.l.b16 %v1185
          %v1255 = vpack.c.b16 %v1248, %v1247
          %v1256 = vpack.c.b16 %v1250, %v1249
          %v1257 = vpack.c.b16 %v1252, %v1251
          %v1258 = vpack.c.b16 %v1254, %v1253
          %v1260 = vsel %vm1025, %v1255, 0
          %v1263 = vsel %vm1025, %v1256, 0
          %v1266 = vsel %vm1025, %v1257, 0
          %v1269 = vsel %vm1025, %v1258, 0
          %1271 = vmatprep.subr.bf16.mxu0 %v1187
          %1272 = vmatpush1.bf16.msra.mxu0 %v1186
          %1273 = vmatprep.subr.bf16.mxu0 %v1189
          %1274 = vmatpush1.bf16.msra.mxu0 %v1188
          %1275 = vmatprep.subr.bf16.mxu0 0
          %1276 = vmatpush1.bf16.msra.mxu0 0
          %1277 = vmatprep.subr.bf16.mxu0 0
          %1278 = vmatpush1.bf16.msra.mxu0 0
          %1279 = vmatprep.subr.bf16.mxu0 0
          %1280 = vmatpush1.bf16.msra.mxu0 0
          %1281 = vmatprep.subr.bf16.mxu0 0
          %1282 = vmatpush1.bf16.msra.mxu0 0
          %1283 = vmatprep.subr.bf16.mxu0 0
          %1284 = vmatpush1.bf16.msra.mxu0 0
          %1285 = vmatprep.subr.bf16.mxu0 0
          %1286 = vmatpush1.bf16.msra.mxu0 0
          %1287 = vmatprep.subr.bf16.mxu0 0
          %1288 = vmatpush1.bf16.msra.mxu0 0
          %1289 = vmatprep.subr.bf16.mxu0 0
          %1290 = vmatpush1.bf16.msra.mxu0 0
          %1291 = vmatprep.subr.bf16.mxu0 0
          %1292 = vmatpush1.bf16.msra.mxu0 0
          %1293 = vmatprep.subr.bf16.mxu0 0
          %1294 = vmatpush1.bf16.msra.mxu0 0
          %1295 = vmatprep.subr.bf16.mxu0 0
          %1296 = vmatpush1.bf16.msra.mxu0 0
          %1297 = vmatprep.subr.bf16.mxu0 0
          %1298 = vmatpush1.bf16.msra.mxu0 0
          %1299 = vmatprep.subr.bf16.mxu0 0
          %1300 = vmatpush1.bf16.msra.mxu0 0
          %1301 = vmatprep.subr.bf16.mxu0 0
          %1302 = vmatpush1.bf16.msra.mxu0 0
          %1303 = vmatprep.mubr.bf16.mxu0 0
          %1304 = vmatmul.mubr.bf16.gmra.mrb[0].mxu0 %v1260
          %v1305 = vpop.f32.mrb[0].mxu0
          %v1306 = vadd.f32 %v1202, %v1305
          %v1307 = vpop.f32.mrb[0].mxu0
          %v1308 = vadd.f32 %v1202, %v1307
          %v1309 = vpop.f32.mrb[0].mxu0
          %v1310 = vadd.f32 %v1207, %v1309
          %v1311 = vpop.f32.mrb[0].mxu0
          %v1312 = vadd.f32 %v1207, %v1311
          %1313 = vmatprep.mubr.bf16.mxu0 0
          %1314 = vmatmul.mubr.bf16.gmra.mrb[0].mxu0 %v1263
          %v1315 = vpop.f32.mrb[0].mxu0
          %v1316 = vadd.f32 %v1212, %v1315
          %v1317 = vpop.f32.mrb[0].mxu0
          %v1318 = vadd.f32 %v1212, %v1317
          %v1319 = vpop.f32.mrb[0].mxu0
          %v1320 = vadd.f32 %v1217, %v1319
          %v1321 = vpop.f32.mrb[0].mxu0
          %v1322 = vadd.f32 %v1217, %v1321
          %1323 = vmatprep.mubr.bf16.mxu0 0
          %1324 = vmatmul.mubr.bf16.gmra.mrb[0].mxu0 %v1266
          %v1325 = vpop.f32.mrb[0].mxu0
          %v1326 = vadd.f32 %v1222, %v1325
          %v1327 = vpop.f32.mrb[0].mxu0
          %v1328 = vadd.f32 %v1222, %v1327
          %v1329 = vpop.f32.mrb[0].mxu0
          %v1330 = vadd.f32 %v1227, %v1329
          %v1331 = vpop.f32.mrb[0].mxu0
          %v1332 = vadd.f32 %v1227, %v1331
          %1333 = vmatprep.mubr.bf16.mxu0 0
          %1334 = vmatmul.mubr.bf16.gmra.mrb[0].mxu0 %v1269
          %v1335 = vpop.f32.mrb[0].mxu0
          %v1336 = vadd.f32 %v1232, %v1335
          %v1337 = vpop.f32.mrb[0].mxu0
          %v1338 = vadd.f32 %v1232, %v1337
          %v1339 = vpop.f32.mrb[0].mxu0
          %v1340 = vadd.f32 %v1237, %v1339
          %v1341 = vpop.f32.mrb[0].mxu0
          %v1342 = vadd.f32 %v1237, %v1341
          %1343 = vdwg.mxu0
          %v1344 = vld [vmem:[#allocation2] sm:$0xff]
          %v1345 = vld [vmem:[#allocation2 + $0x8] sm:$0xff]
          %v1346 = vld [vmem:[#allocation2 + $0x10] sm:$0xff]
          %v1347 = vld [vmem:[#allocation2 + $0x18] sm:$0xff]
          %v1348 = vld [vmem:[#allocation2 + $0x20] sm:$0xff]
          %v1349 = vld [vmem:[#allocation2 + $0x28] sm:$0xff]
          %v1350 = vld [vmem:[#allocation2 + $0x30] sm:$0xff]
          %v1351 = vld [vmem:[#allocation2 + $0x38] sm:$0xff]
          %1360 = vrot.lane.b32.xlu0 %v1306, 2
          %v1361 = vpop.permute.xlu0 %1360
          %1362 = vrot.lane.b32.xlu0 %v1308, 2
          %v1363 = vpop.permute.xlu0 %1362
          %1364 = vrot.lane.b32.xlu0 %v1310, 2
          %v1365 = vpop.permute.xlu0 %1364
          %1366 = vrot.lane.b32.xlu0 %v1312, 2
          %v1367 = vpop.permute.xlu0 %1366
          %1368 = vrot.lane.b32.xlu0 %v1316, 2
          %v1369 = vpop.permute.xlu0 %1368
          %1370 = vrot.lane.b32.xlu0 %v1318, 2
          %v1371 = vpop.permute.xlu0 %1370
          %1372 = vrot.lane.b32.xlu0 %v1320, 2
          %v1373 = vpop.permute.xlu0 %1372
          %1374 = vrot.lane.b32.xlu0 %v1322, 2
          %v1375 = vpop.permute.xlu0 %1374
          %v1376 = vsel %vm682, %v1361, %v1363
          %v1377 = vsel %vm682, %v1365, %v1367
          %v1378 = vsel %vm682, %v1369, %v1371
          %v1379 = vsel %vm682, %v1373, %v1375
          %v1388 = vadd.f32 %v1344, %v1361
          %v1389 = vadd.f32 %v1345, %v1376
          %v1390 = vadd.f32 %v1346, %v1365
          %v1391 = vadd.f32 %v1347, %v1377
          %v1392 = vadd.f32 %v1348, %v1369
          %v1393 = vadd.f32 %v1349, %v1378
          %v1394 = vadd.f32 %v1350, %v1373
          %v1395 = vadd.f32 %v1351, %v1379
          %1396 = vrot.lane.b32.xlu0 %v559, 2
          %v1397 = vpop.permute.xlu0 %1396
          %1398 = vrot.lane.b32.xlu0 %v563, 2
          %v1399 = vpop.permute.xlu0 %1398
          %v1400 = vsel %vm682, %v1397, %v1399
          %v1403 = vmul.f32 %v1388, %v1397
          %v1404 = vmul.f32 %v1389, %v1400
          %v1405 = vmul.f32 %v1390, %v1397
          %v1406 = vmul.f32 %v1391, %v1400
          %v1407 = vmul.f32 %v1392, %v1397
          %v1408 = vmul.f32 %v1393, %v1400
          %v1409 = vmul.f32 %v1394, %v1397
          %v1410 = vmul.f32 %v1395, %v1400
          %1411 = vst.msk [vmem:[#allocation2] sm:$0xff] %vm728, %v1403
          %1412 = vst.msk [vmem:[#allocation2 + $0x8] sm:$0xff] %vm730, %v1404
          %1413 = vst.msk [vmem:[#allocation2 + $0x10] sm:$0xff] %vm728, %v1405
          %1414 = vst.msk [vmem:[#allocation2 + $0x18] sm:$0xff] %vm730, %v1406
          %1415 = vst.msk [vmem:[#allocation2 + $0x20] sm:$0xff] %vm728, %v1407
          %1416 = vst.msk [vmem:[#allocation2 + $0x28] sm:$0xff] %vm730, %v1408
          %1417 = vst.msk [vmem:[#allocation2 + $0x30] sm:$0xff] %vm728, %v1409
          %1418 = vst.msk [vmem:[#allocation2 + $0x38] sm:$0xff] %vm730, %v1410
          %v1419 = vld [vmem:[#allocation3] sm:$0xff]
          %v1420 = vld [vmem:[#allocation3 + $0x8] sm:$0xff]
          %v1421 = vld [vmem:[#allocation3 + $0x10] sm:$0xff]
          %v1422 = vld [vmem:[#allocation3 + $0x18] sm:$0xff]
          %v1423 = vld [vmem:[#allocation3 + $0x20] sm:$0xff]
          %v1424 = vld [vmem:[#allocation3 + $0x28] sm:$0xff]
          %v1425 = vld [vmem:[#allocation3 + $0x30] sm:$0xff]
          %v1426 = vld [vmem:[#allocation3 + $0x38] sm:$0xff]
          %v1427 = vadd.f32 %v1419, %v1326
          %v1428 = vadd.f32 %v1420, %v1328
          %v1429 = vadd.f32 %v1421, %v1330
          %v1430 = vadd.f32 %v1422, %v1332
          %v1431 = vadd.f32 %v1423, %v1336
          %v1432 = vadd.f32 %v1424, %v1338
          %v1433 = vadd.f32 %v1425, %v1340
          %v1434 = vadd.f32 %v1426, %v1342
          %1435 = vst [vmem:[#allocation3] sm:$0xff] %v1427
          %1436 = vst.msk [vmem:[#allocation3 + $0x8] sm:$0xff] %vm614, %v1428
          %1437 = vst [vmem:[#allocation3 + $0x10] sm:$0xff] %v1429
          %1438 = vst.msk [vmem:[#allocation3 + $0x18] sm:$0xff] %vm614, %v1430
          %1439 = vst [vmem:[#allocation3 + $0x20] sm:$0xff] %v1431
          %1440 = vst.msk [vmem:[#allocation3 + $0x28] sm:$0xff] %vm614, %v1432
          %1441 = vst [vmem:[#allocation3 + $0x30] sm:$0xff] %v1433
          %1442 = vst.msk [vmem:[#allocation3 + $0x38] sm:$0xff] %vm614, %v1434
        $region69: #{tpu_custom_call.1} parent=63 // loop_footer
          %s751 = sadd.s32 1, %s747
        $region70: #{tpu_custom_call.1} parent=63 // loop_footer_branch
          %746 = sbr.rel target = $region66
        $region71: #{tpu_custom_call.1} parent=63 // loop_exit
          _
        %v1443 = vld [vmem:[#allocation3] sm:$0xff]
        %v1444 = vld [vmem:[#allocation3 + $0x8] sm:$0xff]
        %v1445 = vld [vmem:[#allocation3 + $0x10] sm:$0xff]
        %v1446 = vld [vmem:[#allocation3 + $0x18] sm:$0xff]
        %v1447 = vld [vmem:[#allocation3 + $0x20] sm:$0xff]
        %v1448 = vld [vmem:[#allocation3 + $0x28] sm:$0xff]
        %v1449 = vld [vmem:[#allocation3 + $0x30] sm:$0xff]
        %v1450 = vld [vmem:[#allocation3 + $0x38] sm:$0xff]
        %v1451 = vmul.f32 %v1443, %v559
        %v1452 = vmul.f32 %v1444, %v563
        %v1453 = vmul.f32 %v1445, %v559
        %v1454 = vmul.f32 %v1446, %v563
        %v1455 = vmul.f32 %v1447, %v559
        %v1456 = vmul.f32 %v1448, %v563
        %v1457 = vmul.f32 %v1449, %v559
        %v1458 = vmul.f32 %v1450, %v563
        %v1459 = vpack.c.bf16 %v1453, %v1451
        %v1460 = vpack.c.bf16 %v1454, %v1452
        %v1461 = vpack.c.bf16 %v1457, %v1455
        %v1462 = vpack.c.bf16 %v1458, %v1456
        %v1463 = vld [vmem:[%s9] sm:$0xf]
        %v1464 = vld [vmem:[%s9 + $0x4] sm:$0xf]
        %v1465 = vld [vmem:[%s10] sm:$0xff]
        %v1466 = vld [vmem:[%s10 + $0x8] sm:$0xff]
        %1468 = vset.pattern.permute.xlu0 0
        %1469 = vperm.xlu0 %1468, %v1465
        %v1470 = vpop.permute.xlu0 %1469
        %1473 = vset.pattern.permute.xlu0 0
        %1474 = vperm.xlu0 %1473, %v1466
        %v1475 = vpop.permute.xlu0 %1474
        %v1479 = vunpack.c.l.b16 %v1463
        %v1480 = vunpack.c.l.b16 %v1464
        %v1481 = vpack.c.b16 %v1480, %v1479
        %1486 = vrot.lane.b32.xlu0 %v1459, 120
        %v1487 = vpop.permute.xlu0 %1486
        %1488 = vrot.lane.b32.xlu0 %v1460, 120
        %v1489 = vpop.permute.xlu0 %1488
        %1490 = vrot.lane.b32.xlu0 %v1461, 120
        %v1491 = vpop.permute.xlu0 %1490
        %1492 = vrot.lane.b32.xlu0 %v1462, 120
        %v1493 = vpop.permute.xlu0 %1492
        %vm1494 = vcmask 982016
        %v1495 = vsel %vm1494, %v1487, %v1489
        %v1496 = vsel %vm1494, %v1491, %v1493
        %vm1499 = vcmask 261120
        %v1501 = vsel %vm1499, %v1481, 0
        %1503 = vmatprep.subr.bf16.mxu0 0
        %1504 = vmatpush1.bf16.msra.mxu0 %v1495
        %1505 = vmatprep.subr.bf16.mxu0 0
        %1506 = vmatpush1.bf16.msra.mxu0 %v1496
        %1507 = vmatprep.subr.bf16.mxu0 0
        %1508 = vmatpush1.bf16.msra.mxu0 0
        %1509 = vmatprep.subr.bf16.mxu0 0
        %1510 = vmatpush1.bf16.msra.mxu0 0
        %1511 = vmatprep.subr.bf16.mxu0 0
        %1512 = vmatpush1.bf16.msra.mxu0 0
        %1513 = vmatprep.subr.bf16.mxu0 0
        %1514 = vmatpush1.bf16.msra.mxu0 0
        %1515 = vmatprep.subr.bf16.mxu0 0
        %1516 = vmatpush1.bf16.msra.mxu0 0
        %1517 = vmatprep.subr.bf16.mxu0 0
        %1518 = vmatpush1.bf16.msra.mxu0 0
        %1519 = vmatprep.subr.bf16.mxu0 0
        %1520 = vmatpush1.bf16.msra.mxu0 0
        %1521 = vmatprep.subr.bf16.mxu0 0
        %1522 = vmatpush1.bf16.msra.mxu0 0
        %1523 = vmatprep.subr.bf16.mxu0 0
        %1524 = vmatpush1.bf16.msra.mxu0 0
        %1525 = vmatprep.subr.bf16.mxu0 0
        %1526 = vmatpush1.bf16.msra.mxu0 0
        %1527 = vmatprep.subr.bf16.mxu0 0
        %1528 = vmatpush1.bf16.msra.mxu0 0
        %1529 = vmatprep.subr.bf16.mxu0 0
        %1530 = vmatpush1.bf16.msra.mxu0 0
        %1531 = vmatprep.subr.bf16.mxu0 0
        %1532 = vmatpush1.bf16.msra.mxu0 0
        %1533 = vmatprep.subr.bf16.mxu0 0
        %1534 = vmatpush1.bf16.msra.mxu0 0
        %1535 = vmatprep.mubr.bf16.mxu0 0
        %1536 = vmatmul.mubr.bf16.gmra.mrb[0].mxu0 %v1501
        %v1537 = vpop.f32.mrb[0].mxu0
        %v1538 = vadd.f32 %v1470, %v1537
        %v1539 = vpop.f32.mrb[0].mxu0
        %v1540 = vpop.f32.mrb[0].mxu0
        %v1541 = vadd.f32 %v1475, %v1540
        %v1542 = vpop.f32.mrb[0].mxu0
        %1543 = vdwg.mxu0
        %1544 = vrot.lane.b32.xlu0 %v559, 120
        %v1545 = vpop.permute.xlu0 %1544
        %1546 = vrot.lane.b32.xlu0 %v563, 120
        %v1547 = vpop.permute.xlu0 %1546
        %vm1548 = vcmask 982016
        %v1549 = vsel %vm1548, %v1545, %v1547
        %v1551 = vmul.f32 %v1538, %v1549
        %v1552 = vmul.f32 %v1541, %v1549
        %v1553 = vld [vmem:[%s550] sm:$0xff]
        %v1554 = vmul.f32 %v1552, 1.442695
        %v1555 = vpow.pop %v1554
        %v1556 = vmul.f32 %v1553, %v1555
        %v1557 = vadd.f32 %v1551, %v1556
        %v1558 = vmul.f32 %v1557, %v1549
        %1559 = vst [vmem:[%s511] sm:$0xff] %v1558
        %1560 = vst [vmem:[%s518] sm:$0xff] %v1551
        %1561 = vst [vmem:[%s525] sm:$0xff] %v1552
        %s1562 = sand.u32 %s305, 1
        %s1563 = scalar_lea.sflag [#allocation6], %s1562
        %s1564 = sand.u32 %s305, 1
        %s1565 = smul.addr %s1564, 8
        %s1566 = scalar_lea.vmem [#allocation5], %s1565
        %s1567 = sand.u32 %s31, 1
        %s1568 = scalar_lea.sflag [#allocation8], %s1567
        %s1569 = sand.u32 %s333, 1
        %s1570 = smul.addr %s1569, 8
        %s1571 = scalar_lea.vmem [#allocation7], %s1570
        %s1572 = sand.u32 %s31, 1
        %s1573 = scalar_lea.sflag [#allocation8], %s1572
        %s1574 = sand.u32 %s361, 1
        %s1575 = smul.addr %s1574, 8
        %s1576 = scalar_lea.vmem [#allocation9], %s1575
        // Predicated region
        $region72: #{tpu_custom_call.1} parent=63 // pred_check
          %p1577 = pneg %p315
        $region73: #{tpu_custom_call.1} parent=63 // pred_check_branch
          %1579 = sbr.rel (%p1577) target = $region75
        $region74: #{tpu_custom_call.1} parent=63 // pred_region
          %s1581 = ssub.s32 128, 128
          %1582 = vsyncadd %s1563, %s1581
          %s1583 = smul.addr %s35, 2
          %s1584 = sadd.s32 %s36, %s1583
          %s1585 = smul.addr %s1584, 128
          %s1586 = scalar_lea.hbm %s11, %s1585
          %s1588 = sshll.u32 %s1566, 4
          %s1589 = int_to_ptr.vmem [resolvable:$true] %s1588
          %1591 = dma.vmem_to_hbm [thread:$0]  %s1589, 128, %s1586, %s1563
        $region75: #{tpu_custom_call.1} parent=63 // pred_fallthru
          _
        // Predicated region
        $region76: #{tpu_custom_call.1} parent=63 // pred_check
          %p1592 = pneg %p343
        $region77: #{tpu_custom_call.1} parent=63 // pred_check_branch
          %1594 = sbr.rel (%p1592) target = $region79
        $region78: #{tpu_custom_call.1} parent=63 // pred_region
          %s1596 = ssub.s32 128, 128
          %1597 = vsyncadd %s1568, %s1596
          %s1598 = smul.addr %s35, 2
          %s1599 = sadd.s32 %s36, %s1598
          %s1600 = smul.addr %s1599, 128
          %s1601 = scalar_lea.hbm %s12, %s1600
          %s1603 = sshll.u32 %s1571, 4
          %s1604 = int_to_ptr.vmem [resolvable:$true] %s1603
          %1606 = dma.vmem_to_hbm [thread:$0]  %s1604, 128, %s1601, %s1568
        $region79: #{tpu_custom_call.1} parent=63 // pred_fallthru
          _
        // Predicated region
        $region80: #{tpu_custom_call.1} parent=63 // pred_check
          %p1607 = pneg %p371
        $region81: #{tpu_custom_call.1} parent=63 // pred_check_branch
          %1609 = sbr.rel (%p1607) target = $region83
        $region82: #{tpu_custom_call.1} parent=63 // pred_region
          %s1611 = ssub.s32 128, 128
          %1612 = vsyncadd %s1573, %s1611
          %s1613 = smul.addr %s35, 2
          %s1614 = sadd.s32 %s36, %s1613
          %s1615 = smul.addr %s1614, 128
          %s1616 = scalar_lea.hbm %s13, %s1615
          %s1618 = sshll.u32 %s1576, 4
          %s1619 = int_to_ptr.vmem [resolvable:$true] %s1618
          %1621 = dma.vmem_to_hbm [thread:$0]  %s1619, 128, %s1616, %s1573
        $region83: #{tpu_custom_call.1} parent=63 // pred_fallthru
          _
      $region64: #{tpu_custom_call.1} parent=5 // pred_fallthru
        _
      %p1622 = scmp.le.s32.totalorder 2, %s26
      // Predicated region
      $region84: #{tpu_custom_call.1} parent=5 // pred_check
        %p1623 = pneg %p1622
      $region85: #{tpu_custom_call.1} parent=5 // pred_check_branch
        %1625 = sbr.rel (%p1623) target = $region87
      $region86: #{tpu_custom_call.1} parent=5 // pred_region
        %s1626 = ssub.s32 %s26, 2
        // Predicated region
        $region88: #{tpu_custom_call.1} parent=86 // pred_check
          %p1627 = pneg %p321
        $region89: #{tpu_custom_call.1} parent=86 // pred_check_branch
          %1629 = sbr.rel (%p1627) target = $region91
        $region90: #{tpu_custom_call.1} parent=86 // pred_region
          %s1630 = sand.u32 %s306, 1
          %s1631 = scalar_lea.sflag [#allocation6], %s1630
          %s1632 = sand.u32 %s306, 1
          %s1633 = smul.addr %s1632, 8
          %s1634 = scalar_lea.vmem [#allocation5], %s1633
          %1635 = dma.done %s1631, 128
        $region91: #{tpu_custom_call.1} parent=86 // pred_fallthru
          _
        // Predicated region
        $region92: #{tpu_custom_call.1} parent=86 // pred_check
          %p1636 = pneg %p349
        $region93: #{tpu_custom_call.1} parent=86 // pred_check_branch
          %1638 = sbr.rel (%p1636) target = $region95
        $region94: #{tpu_custom_call.1} parent=86 // pred_region
          %s1639 = sand.u32 %s32, 1
          %s1640 = scalar_lea.sflag [#allocation8], %s1639
          %s1641 = sand.u32 %s334, 1
          %s1642 = smul.addr %s1641, 8
          %s1643 = scalar_lea.vmem [#allocation7], %s1642
          %1644 = dma.done %s1640, 128
        $region95: #{tpu_custom_call.1} parent=86 // pred_fallthru
          _
        // Predicated region
        $region96: #{tpu_custom_call.1} parent=86 // pred_check
          %p1645 = pneg %p377
        $region97: #{tpu_custom_call.1} parent=86 // pred_check_branch
          %1647 = sbr.rel (%p1645) target = $region99
        $region98: #{tpu_custom_call.1} parent=86 // pred_region
          %s1648 = sand.u32 %s32, 1
          %s1649 = scalar_lea.sflag [#allocation8], %s1648
          %s1650 = sand.u32 %s362, 1
          %s1651 = smul.addr %s1650, 8
          %s1652 = scalar_lea.vmem [#allocation9], %s1651
          %1653 = dma.done %s1649, 128
        $region99: #{tpu_custom_call.1} parent=86 // pred_fallthru
          _
      $region87: #{tpu_custom_call.1} parent=5 // pred_fallthru
        _
    $region6: #{tpu_custom_call.1} parent=1 // loop_footer
      %s30 = sadd.s32 1, %s26
    $region7: #{tpu_custom_call.1} parent=1 // loop_footer_branch
      %25 = sbr.rel target = $region3
    $region8: #{tpu_custom_call.1} parent=1 // loop_exit
      _
    %1654 = vsyncpa [#allocation6], 1
    %s1655 = scalar_lea.sflag [#allocation6], 1
    %1656 = vsyncpa %s1655, 1
    %1657 = vsyncpa [#allocation8], 1
    %s1658 = scalar_lea.sflag [#allocation8], 1
    %1659 = vsyncpa %s1658, 1

// kernel: tpu_custom_call.1
$region0: #{tpu_custom_call.1}
  #allocation0 [shape = 'u32[]', space=smem, size = 0x4, offset = 0x4, fixed_abs, tag = 'smem constant byte address 0x4 - core index']
  #allocation1 [shape = 'u32[144,128]{1,0:T(1,128)}', space=vmem, size = 0x12000, scoped, tag = 'internal scratch']
  #allocation2 [shape = 'f32[32,148]{1,0:T(8,128)}', space=vmem, size = 0x8000, scoped, tag = 'scratch operand']
  #allocation3 [shape = 'f32[32,144]{1,0:T(8,128)}', space=vmem, size = 0x8000, scoped, tag = 'scratch operand']
  #allocation4 [shape = 'bf16[160,144]{1,0:T(16,128)(2,1)}', space=vmem, size = 0x14000, scoped, tag = 'scratch operand']
  %s0 = inlined_call_operand.vmem [shape: bf16[2,2,16,144], index: 0, kind: input, shape index: {}]
  %s1 = inlined_call_operand.vmem [shape: f32[2,2,1,144], index: 1, kind: input, shape index: {}]
  %s2 = inlined_call_operand.vmem [shape: f32[2,8,256], index: 2, kind: input, shape index: {}]
  %s3 = inlined_call_operand.vmem [shape: bf16[32,16], index: 3, kind: input, shape index: {}]
  %s4 = inlined_call_operand.vmem [shape: f32[32,1], index: 4, kind: input, shape index: {}]
  %s5 = inlined_call_operand.vmem [shape: bf16[4,64,160], index: 5, kind: input, shape index: {}]
  %s6 = inlined_call_operand.vmem [shape: f32[4,64,1], index: 6, kind: input, shape index: {}]
  %s7 = inlined_call_operand.vmem [shape: bf16[4,64,32], index: 7, kind: input, shape index: {}]
  %s8 = inlined_call_operand.vmem [shape: f32[4,64,1], index: 8, kind: input, shape index: {}]
  %s9 = inlined_call_operand.vmem [shape: bf16[16,32], index: 9, kind: input, shape index: {}]
  %s10 = inlined_call_operand.vmem [shape: f32[16,1], index: 10, kind: input, shape index: {}]
  %s11 = inlined_call_operand.hbm [shape: f32[2,8,256], index: 11, kind: output, shape index: {0}]
  %s12 = inlined_call_operand.hbm [shape: f32[2,8,256], index: 12, kind: output, shape index: {1}]
  %s13 = inlined_call_operand.hbm [shape: f32[2,8,256], index: 13, kind: output, shape index: {2}]
  %14 = xla_tuple %s11, %s12, %s13
  %s15 = sld [smem:[#allocation0]]
  $region100: #{tpu_custom_call.1} parent=0
    _
  %s17 = ssub.s32 1, %s15
  %s18 = scalar_select 0, %s17, %s15
  $region1: #{tpu_custom_call.1} parent=0
    #allocation5 [shape = 'u8[8192]{0}', space=vmem, size = 0x2000, scoped, tag = 'output window, operand 0']
    #allocation6 [shape = 's32[2]{0}', space=sflag, size = 0x8, scoped, tag = 'scoped memory for tpu_custom_call.1']
    #allocation7 [shape = 'u8[8192]{0}', space=vmem, size = 0x2000, scoped, tag = 'output window, operand 1']
    #allocation8 [shape = 's32[2]{0}', space=sflag, size = 0x8, scoped, tag = 'scoped memory for tpu_custom_call.1']
    #allocation9 [shape = 'u8[8192]{0}', space=vmem, size = 0x2000, scoped, tag = 'output window, operand 2']
    %19 = vsyncpa [#allocation6], 0
    %s20 = scalar_lea.sflag [#allocation6], 1
    %21 = vsyncpa %s20, 0
    %22 = vsyncpa [#allocation8], 0
    %s23 = scalar_lea.sflag [#allocation8], 1
    %24 = vsyncpa %s23, 0
    loop: start=0, step=1, limit=6
    $region2: #{tpu_custom_call.1} parent=1 // loop_pre_header
      _
    $region3: #{tpu_custom_call.1} parent=1 // loop_header
      %s26 = sphi 0, %s30
      %p27 = scmp.ge.s32.totalorder %s26, 6
      %s33 = sphi 0, %s45
      %s34 = sphi 0, %s41
      %s35 = sphi 0, %s33
      %s36 = sphi 0, %s34
      %s37 = sphi 0, %s35
      %s38 = sphi 0, %s36
      %s50 = sphi 0, %s52
      %s53 = sphi 0, %s50
      %s54 = sphi 0, %s53
      %s70 = sphi 0, %s54
      %s78 = sphi 0, %s80
      %s81 = sphi 0, %s78
      %s82 = sphi 0, %s81
      %s98 = sphi 0, %s82
      %s106 = sphi 0, %s108
      %s109 = sphi 0, %s106
      %s110 = sphi 0, %s109
      %s126 = sphi 0, %s110
      %s130 = sphi 0, %s130
      %s132 = sphi 0, %s130
      %s133 = sphi 0, %s132
      %s147 = sphi 0, %s133
      %s151 = sphi 0, %s151
      %s153 = sphi 0, %s151
      %s154 = sphi 0, %s153
      %s168 = sphi 0, %s154
      %s172 = sphi 0, %s172
      %s174 = sphi 0, %s172
      %s175 = sphi 0, %s174
      %s189 = sphi 0, %s175
      %s193 = sphi 0, %s193
      %s195 = sphi 0, %s193
      %s196 = sphi 0, %s195
      %s210 = sphi 0, %s196
      %s214 = sphi 0, %s214
      %s216 = sphi 0, %s214
      %s217 = sphi 0, %s216
      %s231 = sphi 0, %s217
      %s235 = sphi 0, %s235
      %s237 = sphi 0, %s235
      %s238 = sphi 0, %s237
      %s252 = sphi 0, %s238
      %s256 = sphi 0, %s256
      %s258 = sphi 0, %s256
      %s259 = sphi 0, %s258
      %s273 = sphi 0, %s259
      %s277 = sphi 0, %s277
      %s279 = sphi 0, %s277
      %s280 = sphi 0, %s279
      %s294 = sphi 0, %s280
      %s302 = sphi 0, %s304
      %s305 = sphi 0, %s302
      %s306 = sphi 0, %s305
      %s322 = sphi 0, %s306
      %s330 = sphi 0, %s332
      %s333 = sphi 0, %s330
      %s334 = sphi 0, %s333
      %s350 = sphi 0, %s334
      %s358 = sphi 0, %s360
      %s361 = sphi 0, %s358
      %s362 = sphi 0, %s361
      %s378 = sphi 0, %s362
    $region4: #{tpu_custom_call.1} parent=1 // loop_header_branch
      %29 = sbr.rel (%p27) target = $region8
    $region5: #{tpu_custom_call.1} parent=1 // loop_body
      %s31 = ssub.s32 %s26, 1
      %s32 = ssub.s32 %s26, 2
      %s39 = sadd.s32 1, %s34
      %p40 = scmp.ge.s32.totalorder %s39, 2
      %s41 = scalar_select %p40, 0, %s39
      %s42 = sadd.s32 1, %s33
      %s43 = scalar_select %p40, %s42, %s33
      %p44 = scmp.ge.s32.totalorder %s43, 2
      %s45 = scalar_select %p44, 0, %s43
      %s46 = ssub.s32 %s33, %s45
      %s47 = ssub.s32 %s34, %s41
      %s48 = sor.u32 %s46, %s47
      %p49 = scmp.eq.s32.totalorder %s48, 0
      %s51 = sadd.s32 %s50, 1
      %s52 = scalar_select %p49, %s50, %s51
      %p55 = pneg %p49
      %p56 = scmp.eq.s32.totalorder %s26, 3
      %p57 = por %p55, %p56
      %p58 = scmp.ne.s32.totalorder %s50, %s53
      %p59 = scmp.eq.s32.totalorder %s26, 0
      %p60 = por %p58, %p59
      %p61 = scmp.ne.s32.totalorder %s50, %s53
      %p62 = scmp.eq.s32.totalorder %s31, 3
      %p63 = por %p61, %p62
      %p64 = scmp.ne.s32.totalorder %s53, %s54
      %p65 = scmp.eq.s32.totalorder %s31, 0
      %p66 = por %p64, %p65
      %p67 = scmp.ne.s32.totalorder %s53, %s54
      %p68 = scmp.eq.s32.totalorder %s32, 3
      %p69 = por %p67, %p68
      %p71 = scmp.ne.s32.totalorder %s54, %s70
      %p72 = scmp.eq.s32.totalorder %s32, 0
      %p73 = por %p71, %p72
      %s74 = ssub.s32 %s33, %s45
      %s75 = ssub.s32 %s34, %s41
      %s76 = sor.u32 %s74, %s75
      %p77 = scmp.eq.s32.totalorder %s76, 0
      %s79 = sadd.s32 %s78, 1
      %s80 = scalar_select %p77, %s78, %s79
      %p83 = pneg %p77
      %p84 = scmp.eq.s32.totalorder %s26, 3
      %p85 = por %p83, %p84
      %p86 = scmp.ne.s32.totalorder %s78, %s81
      %p87 = scmp.eq.s32.totalorder %s26, 0
      %p88 = por %p86, %p87
      %p89 = scmp.ne.s32.totalorder %s78, %s81
      %p90 = scmp.eq.s32.totalorder %s31, 3
      %p91 = por %p89, %p90
      %p92 = scmp.ne.s32.totalorder %s81, %s82
      %p93 = scmp.eq.s32.totalorder %s31, 0
      %p94 = por %p92, %p93
      %p95 = scmp.ne.s32.totalorder %s81, %s82
      %p96 = scmp.eq.s32.totalorder %s32, 3
      %p97 = por %p95, %p96
      %p99 = scmp.ne.s32.totalorder %s82, %s98
      %p100 = scmp.eq.s32.totalorder %s32, 0
      %p101 = por %p99, %p100
      %s102 = ssub.s32 %s33, %s45
      %s103 = ssub.s32 %s34, %s41
      %s104 = sor.u32 %s102, %s103
      %p105 = scmp.eq.s32.totalorder %s104, 0
      %s107 = sadd.s32 %s106, 1
      %s108 = scalar_select %p105, %s106, %s107
      %p111 = pneg %p105
      %p112 = scmp.eq.s32.totalorder %s26, 3
      %p113 = por %p111, %p112
      %p114 = scmp.ne.s32.totalorder %s106, %s109
      %p115 = scmp.eq.s32.totalorder %s26, 0
      %p116 = por %p114, %p115
      %p117 = scmp.ne.s32.totalorder %s106, %s109
      %p118 = scmp.eq.s32.totalorder %s31, 3
      %p119 = por %p117, %p118
      %p120 = scmp.ne.s32.totalorder %s109, %s110
      %p121 = scmp.eq.s32.totalorder %s31, 0
      %p122 = por %p120, %p121
      %p123 = scmp.ne.s32.totalorder %s109, %s110
      %p124 = scmp.eq.s32.totalorder %s32, 3
      %p125 = por %p123, %p124
      %p127 = scmp.ne.s32.totalorder %s110, %s126
      %p128 = scmp.eq.s32.totalorder %s32, 0
      %p129 = por %p127, %p128
      %s131 = sadd.s32 %s130, 1
      %p134 = scmp.eq.s32.totalorder %s26, 3
      %p135 = scmp.ne.s32.totalorder %s130, %s132
      %p136 = scmp.eq.s32.totalorder %s26, 0
      %p137 = por %p135, %p136
      %p138 = scmp.ne.s32.totalorder %s130, %s132
      %p139 = scmp.eq.s32.totalorder %s31, 3
      %p140 = por %p138, %p139
      %p141 = scmp.ne.s32.totalorder %s132, %s133
      %p142 = scmp.eq.s32.totalorder %s31, 0
      %p143 = por %p141, %p142
      %p144 = scmp.ne.s32.totalorder %s132, %s133
      %p145 = scmp.eq.s32.totalorder %s32, 3
      %p146 = por %p144, %p145
      %p148 = scmp.ne.s32.totalorder %s133, %s147
      %p149 = scmp.eq.s32.totalorder %s32, 0
      %p150 = por %p148, %p149
      %s152 = sadd.s32 %s151, 1
      %p155 = scmp.eq.s32.totalorder %s26, 3
      %p156 = scmp.ne.s32.totalorder %s151, %s153
      %p157 = scmp.eq.s32.totalorder %s26, 0
      %p158 = por %p156, %p157
      %p159 = scmp.ne.s32.totalorder %s151, %s153
      %p160 = scmp.eq.s32.totalorder %s31, 3
      %p161 = por %p159, %p160
      %p162 = scmp.ne.s32.totalorder %s153, %s154
      %p163 = scmp.eq.s32.totalorder %s31, 0
      %p164 = por %p162, %p163
      %p165 = scmp.ne.s32.totalorder %s153, %s154
      %p166 = scmp.eq.s32.totalorder %s32, 3
      %p167 = por %p165, %p166
      %p169 = scmp.ne.s32.totalorder %s154, %s168
      %p170 = scmp.eq.s32.totalorder %s32, 0
      %p171 = por %p169, %p170
      %s173 = sadd.s32 %s172, 1
      %p176 = scmp.eq.s32.totalorder %s26, 3
      %p177 = scmp.ne.s32.totalorder %s172, %s174
      %p178 = scmp.eq.s32.totalorder %s26, 0
      %p179 = por %p177, %p178
      %p180 = scmp.ne.s32.totalorder %s172, %s174
      %p181 = scmp.eq.s32.totalorder %s31, 3
      %p182 = por %p180, %p181
      %p183 = scmp.ne.s32.totalorder %s174, %s175
      %p184 = scmp.eq.s32.totalorder %s31, 0
      %p185 = por %p183, %p184
      %p186 = scmp.ne.s32.totalorder %s174, %s175
      %p187 = scmp.eq.s32.totalorder %s32, 3
      %p188 = por %p186, %p187
      %p190 = scmp.ne.s32.totalorder %s175, %s189
      %p191 = scmp.eq.s32.totalorder %s32, 0
      %p192 = por %p190, %p191
      %s194 = sadd.s32 %s193, 1
      %p197 = scmp.eq.s32.totalorder %s26, 3
      %p198 = scmp.ne.s32.totalorder %s193, %s195
      %p199 = scmp.eq.s32.totalorder %s26, 0
      %p200 = por %p198, %p199
      %p201 = scmp.ne.s32.totalorder %s193, %s195
      %p202 = scmp.eq.s32.totalorder %s31, 3
      %p203 = por %p201, %p202
      %p204 = scmp.ne.s32.totalorder %s195, %s196
      %p205 = scmp.eq.s32.totalorder %s31, 0
      %p206 = por %p204, %p205
      %p207 = scmp.ne.s32.totalorder %s195, %s196
      %p208 = scmp.eq.s32.totalorder %s32, 3
      %p209 = por %p207, %p208
      %p211 = scmp.ne.s32.totalorder %s196, %s210
      %p212 = scmp.eq.s32.totalorder %s32, 0
      %p213 = por %p211, %p212
      %s215 = sadd.s32 %s214, 1
      %p218 = scmp.eq.s32.totalorder %s26, 3
      %p219 = scmp.ne.s32.totalorder %s214, %s216
      %p220 = scmp.eq.s32.totalorder %s26, 0
      %p221 = por %p219, %p220
      %p222 = scmp.ne.s32.totalorder %s214, %s216
      %p223 = scmp.eq.s32.totalorder %s31, 3
      %p224 = por %p222, %p223
      %p225 = scmp.ne.s32.totalorder %s216, %s217
      %p226 = scmp.eq.s32.totalorder %s31, 0
      %p227 = por %p225, %p226
      %p228 = scmp.ne.s32.totalorder %s216, %s217
      %p229 = scmp.eq.s32.totalorder %s32, 3
      %p230 = por %p228, %p229
      %p232 = scmp.ne.s32.totalorder %s217, %s231
      %p233 = scmp.eq.s32.totalorder %s32, 0
      %p234 = por %p232, %p233
      %s236 = sadd.s32 %s235, 1
      %p239 = scmp.eq.s32.totalorder %s26, 3
      %p240 = scmp.ne.s32.totalorder %s235, %s237
      %p241 = scmp.eq.s32.totalorder %s26, 0
      %p242 = por %p240, %p241
      %p243 = scmp.ne.s32.totalorder %s235, %s237
      %p244 = scmp.eq.s32.totalorder %s31, 3
      %p245 = por %p243, %p244
      %p246 = scmp.ne.s32.totalorder %s237, %s238
      %p247 = scmp.eq.s32.totalorder %s31, 0
      %p248 = por %p246, %p247
      %p249 = scmp.ne.s32.totalorder %s237, %s238
      %p250 = scmp.eq.s32.totalorder %s32, 3
      %p251 = por %p249, %p250
      %p253 = scmp.ne.s32.totalorder %s238, %s252
      %p254 = scmp.eq.s32.totalorder %s32, 0
      %p255 = por %p253, %p254
      %s257 = sadd.s32 %s256, 1
      %p260 = scmp.eq.s32.totalorder %s26, 3
      %p261 = scmp.ne.s32.totalorder %s256, %s258
      %p262 = scmp.eq.s32.totalorder %s26, 0
      %p263 = por %p261, %p262
      %p264 = scmp.ne.s32.totalorder %s256, %s258
      %p265 = scmp.eq.s32.totalorder %s31, 3
      %p266 = por %p264, %p265
      %p267 = scmp.ne.s32.totalorder %s258, %s259
      %p268 = scmp.eq.s32.totalorder %s31, 0
      %p269 = por %p267, %p268
      %p270 = scmp.ne.s32.totalorder %s258, %s259
      %p271 = scmp.eq.s32.totalorder %s32, 3
      %p272 = por %p270, %p271
      %p274 = scmp.ne.s32.totalorder %s259, %s273
      %p275 = scmp.eq.s32.totalorder %s32, 0
      %p276 = por %p274, %p275
      %s278 = sadd.s32 %s277, 1
      %p281 = scmp.eq.s32.totalorder %s26, 3
      %p282 = scmp.ne.s32.totalorder %s277, %s279
      %p283 = scmp.eq.s32.totalorder %s26, 0
      %p284 = por %p282, %p283
      %p285 = scmp.ne.s32.totalorder %s277, %s279
      %p286 = scmp.eq.s32.totalorder %s31, 3
      %p287 = por %p285, %p286
      %p288 = scmp.ne.s32.totalorder %s279, %s280
      %p289 = scmp.eq.s32.totalorder %s31, 0
      %p290 = por %p288, %p289
      %p291 = scmp.ne.s32.totalorder %s279, %s280
      %p292 = scmp.eq.s32.totalorder %s32, 3
      %p293 = por %p291, %p292
      %p295 = scmp.ne.s32.totalorder %s280, %s294
      %p296 = scmp.eq.s32.totalorder %s32, 0
      %p297 = por %p295, %p296
      %s298 = ssub.s32 %s33, %s45
      %s299 = ssub.s32 %s34, %s41
      %s300 = sor.u32 %s298, %s299
      %p301 = scmp.eq.s32.totalorder %s300, 0
      %s303 = sadd.s32 %s302, 1
      %s304 = scalar_select %p301, %s302, %s303
      %p307 = pneg %p301
      %p308 = scmp.eq.s32.totalorder %s26, 3
      %p309 = por %p307, %p308
      %p310 = scmp.ne.s32.totalorder %s302, %s305
      %p311 = scmp.eq.s32.totalorder %s26, 0
      %p312 = por %p310, %p311
      %p313 = scmp.ne.s32.totalorder %s302, %s305
      %p314 = scmp.eq.s32.totalorder %s31, 3
      %p315 = por %p313, %p314
      %p316 = scmp.ne.s32.totalorder %s305, %s306
      %p317 = scmp.eq.s32.totalorder %s31, 0
      %p318 = por %p316, %p317
      %p319 = scmp.ne.s32.totalorder %s305, %s306
      %p320 = scmp.eq.s32.totalorder %s32, 3
      %p321 = por %p319, %p320
      %p323 = scmp.ne.s32.totalorder %s306, %s322
      %p324 = scmp.eq.s32.totalorder %s32, 0
      %p325 = por %p323, %p324
      %s326 = ssub.s32 %s33, %s45
      %s327 = ssub.s32 %s34, %s41
      %s328 = sor.u32 %s326, %s327
      %p329 = scmp.eq.s32.totalorder %s328, 0
      %s331 = sadd.s32 %s330, 1
      %s332 = scalar_select %p329, %s330, %s331
      %p335 = pneg %p329
      %p336 = scmp.eq.s32.totalorder %s26, 3
      %p337 = por %p335, %p336
      %p338 = scmp.ne.s32.totalorder %s330, %s333
      %p339 = scmp.eq.s32.totalorder %s26, 0
      %p340 = por %p338, %p339
      %p341 = scmp.ne.s32.totalorder %s330, %s333
      %p342 = scmp.eq.s32.totalorder %s31, 3
      %p343 = por %p341, %p342
      %p344 = scmp.ne.s32.totalorder %s333, %s334
      %p345 = scmp.eq.s32.totalorder %s31, 0
      %p346 = por %p344, %p345
      %p347 = scmp.ne.s32.totalorder %s333, %s334
      %p348 = scmp.eq.s32.totalorder %s32, 3
      %p349 = por %p347, %p348
      %p351 = scmp.ne.s32.totalorder %s334, %s350
      %p352 = scmp.eq.s32.totalorder %s32, 0
      %p353 = por %p351, %p352
      %s354 = ssub.s32 %s33, %s45
      %s355 = ssub.s32 %s34, %s41
      %s356 = sor.u32 %s354, %s355
      %p357 = scmp.eq.s32.totalorder %s356, 0
      %s359 = sadd.s32 %s358, 1
      %s360 = scalar_select %p357, %s358, %s359
      %p363 = pneg %p357
      %p364 = scmp.eq.s32.totalorder %s26, 3
      %p365 = por %p363, %p364
      %p366 = scmp.ne.s32.totalorder %s358, %s361
      %p367 = scmp.eq.s32.totalorder %s26, 0
      %p368 = por %p366, %p367
      %p369 = scmp.ne.s32.totalorder %s358, %s361
      %p370 = scmp.eq.s32.totalorder %s31, 3
      %p371 = por %p369, %p370
      %p372 = scmp.ne.s32.totalorder %s361, %s362
      %p373 = scmp.eq.s32.totalorder %s31, 0
      %p374 = por %p372, %p373
      %p375 = scmp.ne.s32.totalorder %s361, %s362
      %p376 = scmp.eq.s32.totalorder %s32, 3
      %p377 = por %p375, %p376
      %p379 = scmp.ne.s32.totalorder %s362, %s378
      %p380 = scmp.eq.s32.totalorder %s32, 0
      %p381 = por %p379, %p380
      %p382 = scmp.le.s32.totalorder 1, %s26
      %p383 = scmp.lt.s32.totalorder %s26, 5
      %p384 = pnand %p382, %p383
      %p385 = pneg %p384
      // Predicated region
      $region9: #{tpu_custom_call.1} parent=5 // pred_check
        _
      $region10: #{tpu_custom_call.1} parent=5 // pred_check_branch
        %387 = sbr.rel (%p384) target = $region12
      $region11: #{tpu_custom_call.1} parent=5 // pred_region
        %s388 = ssub.s32 %s26, 1
        // Predicated region
        $region13: #{tpu_custom_call.1} parent=11 // pred_check
          %p389 = pneg %p143
        $region14: #{tpu_custom_call.1} parent=11 // pred_check_branch
          %391 = sbr.rel (%p389) target = $region16
        $region15: #{tpu_custom_call.1} parent=11 // pred_region
          _
        $region16: #{tpu_custom_call.1} parent=11 // pred_fallthru
          _
        // Predicated region
        $region17: #{tpu_custom_call.1} parent=11 // pred_check
          %p392 = pneg %p164
        $region18: #{tpu_custom_call.1} parent=11 // pred_check_branch
          %394 = sbr.rel (%p392) target = $region20
        $region19: #{tpu_custom_call.1} parent=11 // pred_region
          _
        $region20: #{tpu_custom_call.1} parent=11 // pred_fallthru
          _
        // Predicated region
        $region21: #{tpu_custom_call.1} parent=11 // pred_check
          %p395 = pneg %p185
        $region22: #{tpu_custom_call.1} parent=11 // pred_check_branch
          %397 = sbr.rel (%p395) target = $region24
        $region23: #{tpu_custom_call.1} parent=11 // pred_region
          _
        $region24: #{tpu_custom_call.1} parent=11 // pred_fallthru
          _
        // Predicated region
        $region25: #{tpu_custom_call.1} parent=11 // pred_check
          %p398 = pneg %p206
        $region26: #{tpu_custom_call.1} parent=11 // pred_check_branch
          %400 = sbr.rel (%p398) target = $region28
        $region27: #{tpu_custom_call.1} parent=11 // pred_region
          _
        $region28: #{tpu_custom_call.1} parent=11 // pred_fallthru
          _
        // Predicated region
        $region29: #{tpu_custom_call.1} parent=11 // pred_check
          %p401 = pneg %p227
        $region30: #{tpu_custom_call.1} parent=11 // pred_check_branch
          %403 = sbr.rel (%p401) target = $region32
        $region31: #{tpu_custom_call.1} parent=11 // pred_region
          _
        $region32: #{tpu_custom_call.1} parent=11 // pred_fallthru
          _
        // Predicated region
        $region33: #{tpu_custom_call.1} parent=11 // pred_check
          %p404 = pneg %p248
        $region34: #{tpu_custom_call.1} parent=11 // pred_check_branch
          %406 = sbr.rel (%p404) target = $region36
        $region35: #{tpu_custom_call.1} parent=11 // pred_region
          _
        $region36: #{tpu_custom_call.1} parent=11 // pred_fallthru
          _
        // Predicated region
        $region37: #{tpu_custom_call.1} parent=11 // pred_check
          %p407 = pneg %p269
        $region38: #{tpu_custom_call.1} parent=11 // pred_check_branch
          %409 = sbr.rel (%p407) target = $region40
        $region39: #{tpu_custom_call.1} parent=11 // pred_region
          _
        $region40: #{tpu_custom_call.1} parent=11 // pred_fallthru
          _
        // Predicated region
        $region41: #{tpu_custom_call.1} parent=11 // pred_check
          %p410 = pneg %p290
        $region42: #{tpu_custom_call.1} parent=11 // pred_check_branch
          %412 = sbr.rel (%p410) target = $region44
        $region43: #{tpu_custom_call.1} parent=11 // pred_region
          _
        $region44: #{tpu_custom_call.1} parent=11 // pred_fallthru
          _
      $region12: #{tpu_custom_call.1} parent=5 // pred_fallthru
        _
      %p413 = scmp.lt.s32.totalorder %s26, 4
      // Predicated region
      $region45: #{tpu_custom_call.1} parent=5 // pred_check
        %p414 = pneg %p413
      $region46: #{tpu_custom_call.1} parent=5 // pred_check_branch
        %416 = sbr.rel (%p414) target = $region48
      $region47: #{tpu_custom_call.1} parent=5 // pred_region
        // Predicated region
        $region49: #{tpu_custom_call.1} parent=47 // pred_check
          %p417 = pneg %p60
        $region50: #{tpu_custom_call.1} parent=47 // pred_check_branch
          %419 = sbr.rel (%p417) target = $region52
        $region51: #{tpu_custom_call.1} parent=47 // pred_region
          %p420 = scmp.lt.s32.totalorder %s33, 1
          %s421 = scalar_select %p420, %s33, 1
          %p422 = scmp.lt.s32.totalorder %s34, 1
          %s423 = scalar_select %p422, %s34, 1
          %s424 = smul.addr %s423, 4
          %s425 = smul.addr %s421, 8
          %s426 = sadd.s32 %s424, %s425
          %s427 = smul.addr %s426, 4
          %s428 = scalar_lea.vmem %s0, %s427
        $region52: #{tpu_custom_call.1} parent=47 // pred_fallthru
          _
        // Predicated region
        $region53: #{tpu_custom_call.1} parent=47 // pred_check
          %p429 = pneg %p88
        $region54: #{tpu_custom_call.1} parent=47 // pred_check_branch
          %431 = sbr.rel (%p429) target = $region56
        $region55: #{tpu_custom_call.1} parent=47 // pred_region
          %p432 = scmp.lt.s32.totalorder %s33, 1
          %s433 = scalar_select %p432, %s33, 1
          %p434 = scmp.lt.s32.totalorder %s34, 1
          %s435 = scalar_select %p434, %s34, 1
          %s436 = smul.addr %s435, 2
          %s437 = smul.addr %s433, 4
          %s438 = sadd.s32 %s436, %s437
          %s439 = scalar_lea.vmem %s1, %s438
        $region56: #{tpu_custom_call.1} parent=47 // pred_fallthru
          _
        // Predicated region
        $region57: #{tpu_custom_call.1} parent=47 // pred_check
          %p440 = pneg %p116
        $region58: #{tpu_custom_call.1} parent=47 // pred_check_branch
          %442 = sbr.rel (%p440) target = $region60
        $region59: #{tpu_custom_call.1} parent=47 // pred_region
          %p443 = scmp.lt.s32.totalorder %s33, 1
          %s444 = scalar_select %p443, %s33, 1
          %p445 = scmp.lt.s32.totalorder %s34, 1
          %s446 = scalar_select %p445, %s34, 1
          %s447 = smul.addr %s444, 2
          %s448 = sadd.s32 %s446, %s447
          %s449 = smul.addr %s448, 8
          %s450 = scalar_lea.vmem %s2, %s449
        $region60: #{tpu_custom_call.1} parent=47 // pred_fallthru
          _
      $region48: #{tpu_custom_call.1} parent=5 // pred_fallthru
        _
      %p451 = scmp.le.s32.totalorder 1, %s26
      %p452 = scmp.lt.s32.totalorder %s26, 5
      %p453 = pnand %p451, %p452
      %p454 = pneg %p453
      // Predicated region
      $region61: #{tpu_custom_call.1} parent=5 // pred_check
        _
      $region62: #{tpu_custom_call.1} parent=5 // pred_check_branch
        %456 = sbr.rel (%p453) target = $region64
      $region63: #{tpu_custom_call.1} parent=5 // pred_region
        %s457 = ssub.s32 %s26, 1
        %p458 = scmp.lt.s32.totalorder %s35, 1
        %s459 = scalar_select %p458, %s35, 1
        %p460 = scmp.lt.s32.totalorder %s36, 1
        %s461 = scalar_select %p460, %s36, 1
        %s462 = smul.addr %s461, 4
        %s463 = smul.addr %s459, 8
        %s464 = sadd.s32 %s462, %s463
        %s465 = smul.addr %s464, 4
        %s466 = scalar_lea.vmem %s0, %s465
        %p467 = pneg %p66
        %p468 = pneg %p63
        %p469 = scmp.lt.s32.totalorder %s35, 1
        %s470 = scalar_select %p469, %s35, 1
        %p471 = scmp.lt.s32.totalorder %s36, 1
        %s472 = scalar_select %p471, %s36, 1
        %s473 = smul.addr %s472, 2
        %s474 = smul.addr %s470, 4
        %s475 = sadd.s32 %s473, %s474
        %s476 = scalar_lea.vmem %s1, %s475
        %p477 = pneg %p94
        %p478 = pneg %p91
        %p479 = scmp.lt.s32.totalorder %s35, 1
        %s480 = scalar_select %p479, %s35, 1
        %p481 = scmp.lt.s32.totalorder %s36, 1
        %s482 = scalar_select %p481, %s36, 1
        %s483 = smul.addr %s480, 2
        %s484 = sadd.s32 %s482, %s483
        %s485 = smul.addr %s484, 8
        %s486 = scalar_lea.vmem %s2, %s485
        %p487 = pneg %p122
        %p488 = pneg %p119
        %p489 = pneg %p143
        %p490 = pneg %p140
        %p491 = pneg %p164
        %p492 = pneg %p161
        %p493 = pneg %p185
        %p494 = pneg %p182
        %p495 = pneg %p206
        %p496 = pneg %p203
        %p497 = pneg %p227
        %p498 = pneg %p224
        %p499 = pneg %p248
        %p500 = pneg %p245
        %p501 = pneg %p269
        %p502 = pneg %p266
        %p503 = pneg %p290
        %p504 = pneg %p287
        %p505 = pneg %p318
        %p506 = pneg %p315
        %s507 = sand.u32 %s305, 1
        %s508 = scalar_lea.sflag [#allocation6], %s507
        %s509 = sand.u32 %s305, 1
        %s510 = smul.addr %s509, 8
        %s511 = scalar_lea.vmem [#allocation5], %s510
        %p512 = pneg %p346
        %p513 = pneg %p343
        %s514 = sand.u32 %s31, 1
        %s515 = scalar_lea.sflag [#allocation8], %s514
        %s516 = sand.u32 %s333, 1
        %s517 = smul.addr %s516, 8
        %s518 = scalar_lea.vmem [#allocation7], %s517
        %p519 = pneg %p374
        %p520 = pneg %p371
        %s521 = sand.u32 %s31, 1
        %s522 = scalar_lea.sflag [#allocation8], %s521
        %s523 = sand.u32 %s361, 1
        %s524 = smul.addr %s523, 8
        %s525 = scalar_lea.vmem [#allocation9], %s524
        %p526 = scmp.lt.s32.totalorder %s35, 1
        %s527 = scalar_select %p526, %s35, 1
        %p528 = scmp.lt.s32.totalorder %s36, 1
        %s529 = scalar_select %p528, %s36, 1
        %s530 = smul.addr %s529, 4
        %s531 = smul.addr %s527, 8
        %s532 = sadd.s32 %s530, %s531
        %s533 = smul.addr %s532, 4
        %s534 = scalar_lea.vmem %s0, %s533
        %p535 = scmp.lt.s32.totalorder %s35, 1
        %s536 = scalar_select %p535, %s35, 1
        %p537 = scmp.lt.s32.totalorder %s36, 1
        %s538 = scalar_select %p537, %s36, 1
        %s539 = smul.addr %s538, 2
        %s540 = smul.addr %s536, 4
        %s541 = sadd.s32 %s539, %s540
        %s542 = scalar_lea.vmem %s1, %s541
        %p543 = scmp.lt.s32.totalorder %s35, 1
        %s544 = scalar_select %p543, %s35, 1
        %p545 = scmp.lt.s32.totalorder %s36, 1
        %s546 = scalar_select %p545, %s36, 1
        %s547 = smul.addr %s544, 2
        %s548 = sadd.s32 %s546, %s547
        %s549 = smul.addr %s548, 8
        %s550 = scalar_lea.vmem %s2, %s549
        %v552 = vld [vmem:[%s534] sm:$0xff]
        %v553 = vld [vmem:[%s534 + $0x8] sm:$0xff]
        %v554 = vld [vmem:[%s542] sm:$0x3]
        %v556 = vlaneseq
        %v557 = vshrl.u32 %v556, 7
        %v558 = vsub.s32 0, %v557
        %v559 = vrot.slane %v554, %v558
        %v560 = vlaneseq
        %v561 = vshrl.u32 %v560, 7
        %v562 = vsub.s32 1, %v561
        %v563 = vrot.slane %v554, %v562
        %v566 = vld [vmem:[%s3] sm:$0xf]
        %v567 = vld [vmem:[%s3 + $0x4] sm:$0xf]
        %v568 = vld [vmem:[%s3 + $0x8] sm:$0xf]
        %v569 = vld [vmem:[%s3 + $0xc] sm:$0xf]
        %v570 = vld [vmem:[%s4] sm:$0xff]
        %v571 = vld [vmem:[%s4 + $0x8] sm:$0xff]
        %v572 = vld [vmem:[%s4 + $0x10] sm:$0xff]
        %v573 = vld [vmem:[%s4 + $0x18] sm:$0xff]
        %575 = vset.pattern.permute.xlu0 0
        %576 = vperm.xlu0 %575, %v570
        %v577 = vpop.permute.xlu0 %576
        %580 = vset.pattern.permute.xlu0 0
        %581 = vperm.xlu0 %580, %v571
        %v582 = vpop.permute.xlu0 %581
        %585 = vset.pattern.permute.xlu0 0
        %586 = vperm.xlu0 %585, %v572
        %v587 = vpop.permute.xlu0 %586
        %590 = vset.pattern.permute.xlu0 0
        %591 = vperm.xlu0 %590, %v573
        %v592 = vpop.permute.xlu0 %591
        %v598 = vunpack.c.l.b16 %v566
        %v599 = vunpack.c.l.b16 %v567
        %v600 = vunpack.c.l.b16 %v568
        %v601 = vunpack.c.l.b16 %v569
        %v602 = vpack.c.b16 %v599, %v598
        %v603 = vpack.c.b16 %v601, %v600
        %v606 = vunpack.c.l.b16 %v552
        %v607 = vunpack.c.h.b16 %v552
        %v608 = vunpack.c.l.b16 %v553
        %v609 = vunpack.c.h.b16 %v553
        %v610 = vpack.c.b16 %v608, %v606
        %v611 = vpack.c.b16 %v609, %v607
        %vm614 = vcmask 130048
        %v616 = vsel %vm614, %v602, 0
        %v619 = vsel %vm614, %v603, 0
        %621 = vmatprep.subr.bf16.mxu0 %v611
        %622 = vmatpush1.bf16.msra.mxu0 %v610
        %623 = vmatprep.subr.bf16.mxu0 0
        %624 = vmatpush1.bf16.msra.mxu0 0
        %625 = vmatprep.subr.bf16.mxu0 0
        %626 = vmatpush1.bf16.msra.mxu0 0
        %627 = vmatprep.subr.bf16.mxu0 0
        %628 = vmatpush1.bf16.msra.mxu0 0
        %629 = vmatprep.subr.bf16.mxu0 0
        %630 = vmatpush1.bf16.msra.mxu0 0
        %631 = vmatprep.subr.bf16.mxu0 0
        %632 = vmatpush1.bf16.msra.mxu0 0
        %633 = vmatprep.subr.bf16.mxu0 0
        %634 = vmatpush1.bf16.msra.mxu0 0
        %635 = vmatprep.subr.bf16.mxu0 0
        %636 = vmatpush1.bf16.msra.mxu0 0
        %637 = vmatprep.subr.bf16.mxu0 0
        %638 = vmatpush1.bf16.msra.mxu0 0
        %639 = vmatprep.subr.bf16.mxu0 0
        %640 = vmatpush1.bf16.msra.mxu0 0
        %641 = vmatprep.subr.bf16.mxu0 0
        %642 = vmatpush1.bf16.msra.mxu0 0
        %643 = vmatprep.subr.bf16.mxu0 0
        %644 = vmatpush1.bf16.msra.mxu0 0
        %645 = vmatprep.subr.bf16.mxu0 0
        %646 = vmatpush1.bf16.msra.mxu0 0
        %647 = vmatprep.subr.bf16.mxu0 0
        %648 = vmatpush1.bf16.msra.mxu0 0
        %649 = vmatprep.subr.bf16.mxu0 0
        %650 = vmatpush1.bf16.msra.mxu0 0
        %651 = vmatprep.subr.bf16.mxu0 0
        %652 = vmatpush1.bf16.msra.mxu0 0
        %653 = vmatprep.mubr.bf16.mxu0 0
        %654 = vmatmul.mubr.bf16.gmra.mrb[0].mxu0 %v616
        %v655 = vpop.f32.mrb[0].mxu0
        %v656 = vadd.f32 %v577, %v655
        %v657 = vpop.f32.mrb[0].mxu0
        %v658 = vadd.f32 %v577, %v657
        %v659 = vpop.f32.mrb[0].mxu0
        %v660 = vadd.f32 %v582, %v659
        %v661 = vpop.f32.mrb[0].mxu0
        %v662 = vadd.f32 %v582, %v661
        %663 = vmatprep.mubr.bf16.mxu0 0
        %664 = vmatmul.mubr.bf16.gmra.mrb[0].mxu0 %v619
        %v665 = vpop.f32.mrb[0].mxu0
        %v666 = vadd.f32 %v587, %v665
        %v667 = vpop.f32.mrb[0].mxu0
        %v668 = vadd.f32 %v587, %v667
        %v669 = vpop.f32.mrb[0].mxu0
        %v670 = vadd.f32 %v592, %v669
        %v671 = vpop.f32.mrb[0].mxu0
        %v672 = vadd.f32 %v592, %v671
        %673 = vdwg.mxu0
        %v674 = vmul.f32 %v656, %v559
        %v675 = vmul.f32 %v658, %v563
        %v676 = vmul.f32 %v660, %v559
        %v677 = vmul.f32 %v662, %v563
        %v678 = vmul.f32 %v666, %v559
        %v679 = vmul.f32 %v668, %v563
        %v680 = vmul.f32 %v670, %v559
        %v681 = vmul.f32 %v672, %v563
        %vm682 = vcmask 15360
        %683 = vst.msk [vmem:[#allocation2] sm:$0xff] %vm682, 0.0
        %684 = vst.msk [vmem:[#allocation2 + $0x10] sm:$0xff] %vm682, 0.0
        %685 = vst.msk [vmem:[#allocation2 + $0x20] sm:$0xff] %vm682, 0.0
        %686 = vst.msk [vmem:[#allocation2 + $0x30] sm:$0xff] %vm682, 0.0
        %vm687 = vcmask 162960
        %688 = vst.msk [vmem:[#allocation2 + $0x8] sm:$0xff] %vm687, 0.0
        %689 = vst.msk [vmem:[#allocation2 + $0x18] sm:$0xff] %vm687, 0.0
        %690 = vst.msk [vmem:[#allocation2 + $0x28] sm:$0xff] %vm687, 0.0
        %691 = vst.msk [vmem:[#allocation2 + $0x38] sm:$0xff] %vm687, 0.0
        %700 = vrot.lane.b32.xlu0 %v674, 2
        %v701 = vpop.permute.xlu0 %700
        %702 = vrot.lane.b32.xlu0 %v675, 2
        %v703 = vpop.permute.xlu0 %702
        %704 = vrot.lane.b32.xlu0 %v676, 2
        %v705 = vpop.permute.xlu0 %704
        %706 = vrot.lane.b32.xlu0 %v677, 2
        %v707 = vpop.permute.xlu0 %706
        %708 = vrot.lane.b32.xlu0 %v678, 2
        %v709 = vpop.permute.xlu0 %708
        %710 = vrot.lane.b32.xlu0 %v679, 2
        %v711 = vpop.permute.xlu0 %710
        %712 = vrot.lane.b32.xlu0 %v680, 2
        %v713 = vpop.permute.xlu0 %712
        %714 = vrot.lane.b32.xlu0 %v681, 2
        %v715 = vpop.permute.xlu0 %714
        %v716 = vsel %vm682, %v701, %v703
        %v717 = vsel %vm682, %v705, %v707
        %v718 = vsel %vm682, %v709, %v711
        %v719 = vsel %vm682, %v713, %v715
        %vm728 = vcmask 1047568
        %729 = vst.msk [vmem:[#allocation2] sm:$0xff] %vm728, %v701
        %vm730 = vcmask 146432
        %731 = vst.msk [vmem:[#allocation2 + $0x8] sm:$0xff] %vm730, %v716
        %732 = vst.msk [vmem:[#allocation2 + $0x10] sm:$0xff] %vm728, %v705
        %733 = vst.msk [vmem:[#allocation2 + $0x18] sm:$0xff] %vm730, %v717
        %734 = vst.msk [vmem:[#allocation2 + $0x20] sm:$0xff] %vm728, %v709
        %735 = vst.msk [vmem:[#allocation2 + $0x28] sm:$0xff] %vm730, %v718
        %736 = vst.msk [vmem:[#allocation2 + $0x30] sm:$0xff] %vm728, %v713
        %737 = vst.msk [vmem:[#allocation2 + $0x38] sm:$0xff] %vm730, %v719
        %738 = vst [vmem:[#allocation3] sm:$0xff] 0.0
        %739 = vst.msk [vmem:[#allocation3 + $0x8] sm:$0xff] %vm614, 0.0
        %740 = vst [vmem:[#allocation3 + $0x10] sm:$0xff] 0.0
        %741 = vst.msk [vmem:[#allocation3 + $0x18] sm:$0xff] %vm614, 0.0
        %742 = vst [vmem:[#allocation3 + $0x20] sm:$0xff] 0.0
        %743 = vst.msk [vmem:[#allocation3 + $0x28] sm:$0xff] %vm614, 0.0
        %744 = vst [vmem:[#allocation3 + $0x30] sm:$0xff] 0.0
        %745 = vst.msk [vmem:[#allocation3 + $0x38] sm:$0xff] %vm614, 0.0
        loop: start=0, step=1, limit=4
        $region65: #{tpu_custom_call.1} parent=63 // loop_pre_header
          _
        $region66: #{tpu_custom_call.1} parent=63 // loop_header
          %s747 = sphi 0, %s751
          %p748 = scmp.ge.s32.totalorder %s747, 4
        $region67: #{tpu_custom_call.1} parent=63 // loop_header_branch
          %750 = sbr.rel (%p748) target = $region71
        $region68: #{tpu_custom_call.1} parent=63 // loop_body
          %v752 = vld [vmem:[#allocation2] sm:$0xff]
          %v753 = vld [vmem:[#allocation2 + $0x8] sm:$0xff]
          %v754 = vld [vmem:[#allocation2 + $0x10] sm:$0xff]
          %v755 = vld [vmem:[#allocation2 + $0x18] sm:$0xff]
          %v756 = vld [vmem:[#allocation2 + $0x20] sm:$0xff]
          %v757 = vld [vmem:[#allocation2 + $0x28] sm:$0xff]
          %v758 = vld [vmem:[#allocation2 + $0x30] sm:$0xff]
          %v759 = vld [vmem:[#allocation2 + $0x38] sm:$0xff]
          %v760 = vpack.c.bf16 %v754, %v752
          %v761 = vpack.c.bf16 %v755, %v753
          %v762 = vpack.c.bf16 %v758, %v756
          %v763 = vpack.c.bf16 %v759, %v757
          %764 = vst [vmem:[#allocation4] sm:$0xff] %v760
          %765 = vst.msk [vmem:[#allocation4 + $0x8] sm:$0xff] %vm614, %v761
          %766 = vst [vmem:[#allocation4 + $0x10] sm:$0xff] %v762
          %767 = vst.msk [vmem:[#allocation4 + $0x18] sm:$0xff] %vm614, %v763
          %v768 = vld [vmem:[#allocation2] sm:$0xff]
          %v769 = vld [vmem:[#allocation2 + $0x8] sm:$0xff]
          %v770 = vld [vmem:[#allocation2 + $0x10] sm:$0xff]
          %v771 = vld [vmem:[#allocation2 + $0x18] sm:$0xff]
          %v772 = vld [vmem:[#allocation2 + $0x20] sm:$0xff]
          %v773 = vld [vmem:[#allocation2 + $0x28] sm:$0xff]
          %v774 = vld [vmem:[#allocation2 + $0x30] sm:$0xff]
          %v775 = vld [vmem:[#allocation2 + $0x38] sm:$0xff]
          %v776 = vpack.c.bf16 %v770, %v768
          %v777 = vpack.c.bf16 %v771, %v769
          %v778 = vpack.c.bf16 %v774, %v772
          %v779 = vpack.c.bf16 %v775, %v773
          %784 = vrot.lane.b32.xlu0 %v776, 127
          %v785 = vpop.permute.xlu0 %784
          %786 = vrot.lane.b32.xlu0 %v777, 127
          %v787 = vpop.permute.xlu0 %786
          %788 = vrot.lane.b32.xlu0 %v778, 127
          %v789 = vpop.permute.xlu0 %788
          %790 = vrot.lane.b32.xlu0 %v779, 127
          %v791 = vpop.permute.xlu0 %790
          %vm792 = vcmask 1039360
          %v793 = vsel %vm792, %v785, %v787
          %v794 = vsel %vm792, %v789, %v791
          %799 = vst [vmem:[#allocation4 + $0x20] sm:$0xff] %v793
          %800 = vst.msk [vmem:[#allocation4 + $0x28] sm:$0xff] %vm614, %v787
          %801 = vst [vmem:[#allocation4 + $0x30] sm:$0xff] %v794
          %802 = vst.msk [vmem:[#allocation4 + $0x38] sm:$0xff] %vm614, %v791
          %v803 = vld [vmem:[#allocation2] sm:$0xff]
          %v804 = vld [vmem:[#allocation2 + $0x8] sm:$0xff]
          %v805 = vld [vmem:[#allocation2 + $0x10] sm:$0xff]
          %v806 = vld [vmem:[#allocation2 + $0x18] sm:$0xff]
          %v807 = vld [vmem:[#allocation2 + $0x20] sm:$0xff]
          %v808 = vld [vmem:[#allocation2 + $0x28] sm:$0xff]
          %v809 = vld [vmem:[#allocation2 + $0x30] sm:$0xff]
          %v810 = vld [vmem:[#allocation2 + $0x38] sm:$0xff]
          %v811 = vpack.c.bf16 %v805, %v803
          %v812 = vpack.c.bf16 %v806, %v804
          %v813 = vpack.c.bf16 %v809, %v807
          %v814 = vpack.c.bf16 %v810, %v808
          %819 = vrot.lane.b32.xlu0 %v811, 126
          %v820 = vpop.permute.xlu0 %819
          %821 = vrot.lane.b32.xlu0 %v812, 126
          %v822 = vpop.permute.xlu0 %821
          %823 = vrot.lane.b32.xlu0 %v813, 126
          %v824 = vpop.permute.xlu0 %823
          %825 = vrot.lane.b32.xlu0 %v814, 126
          %v826 = vpop.permute.xlu0 %825
          %vm827 = vcmask 1031168
          %v828 = vsel %vm827, %v820, %v822
          %v829 = vsel %vm827, %v824, %v826
          %834 = vst [vmem:[#allocation4 + $0x40] sm:$0xff] %v828
          %835 = vst.msk [vmem:[#allocation4 + $0x48] sm:$0xff] %vm614, %v822
          %836 = vst [vmem:[#allocation4 + $0x50] sm:$0xff] %v829
          %837 = vst.msk [vmem:[#allocation4 + $0x58] sm:$0xff] %vm614, %v826
          %v838 = vld [vmem:[#allocation2] sm:$0xff]
          %v839 = vld [vmem:[#allocation2 + $0x8] sm:$0xff]
          %v840 = vld [vmem:[#allocation2 + $0x10] sm:$0xff]
          %v841 = vld [vmem:[#allocation2 + $0x18] sm:$0xff]
          %v842 = vld [vmem:[#allocation2 + $0x20] sm:$0xff]
          %v843 = vld [vmem:[#allocation2 + $0x28] sm:$0xff]
          %v844 = vld [vmem:[#allocation2 + $0x30] sm:$0xff]
          %v845 = vld [vmem:[#allocation2 + $0x38] sm:$0xff]
          %v846 = vpack.c.bf16 %v840, %v838
          %v847 = vpack.c.bf16 %v841, %v839
          %v848 = vpack.c.bf16 %v844, %v842
          %v849 = vpack.c.bf16 %v845, %v843
          %854 = vrot.lane.b32.xlu0 %v846, 125
          %v855 = vpop.permute.xlu0 %854
          %856 = vrot.lane.b32.xlu0 %v847, 125
          %v857 = vpop.permute.xlu0 %856
          %858 = vrot.lane.b32.xlu0 %v848, 125
          %v859 = vpop.permute.xlu0 %858
          %860 = vrot.lane.b32.xlu0 %v849, 125
          %v861 = vpop.permute.xlu0 %860
          %vm862 = vcmask 1022976
          %v863 = vsel %vm862, %v855, %v857
          %v864 = vsel %vm862, %v859, %v861
          %869 = vst [vmem:[#allocation4 + $0x60] sm:$0xff] %v863
          %870 = vst.msk [vmem:[#allocation4 + $0x68] sm:$0xff] %vm614, %v857
          %871 = vst [vmem:[#allocation4 + $0x70] sm:$0xff] %v864
          %872 = vst.msk [vmem:[#allocation4 + $0x78] sm:$0xff] %vm614, %v861
          %v873 = vld [vmem:[#allocation2] sm:$0xff]
          %v874 = vld [vmem:[#allocation2 + $0x8] sm:$0xff]
          %v875 = vld [vmem:[#allocation2 + $0x10] sm:$0xff]
          %v876 = vld [vmem:[#allocation2 + $0x18] sm:$0xff]
          %v877 = vld [vmem:[#allocation2 + $0x20] sm:$0xff]
          %v878 = vld [vmem:[#allocation2 + $0x28] sm:$0xff]
          %v879 = vld [vmem:[#allocation2 + $0x30] sm:$0xff]
          %v880 = vld [vmem:[#allocation2 + $0x38] sm:$0xff]
          %v881 = vpack.c.bf16 %v875, %v873
          %v882 = vpack.c.bf16 %v876, %v874
          %v883 = vpack.c.bf16 %v879, %v877
          %v884 = vpack.c.bf16 %v880, %v878
          %889 = vrot.lane.b32.xlu0 %v881, 124
          %v890 = vpop.permute.xlu0 %889
          %891 = vrot.lane.b32.xlu0 %v882, 124
          %v892 = vpop.permute.xlu0 %891
          %893 = vrot.lane.b32.xlu0 %v883, 124
          %v894 = vpop.permute.xlu0 %893
          %895 = vrot.lane.b32.xlu0 %v884, 124
          %v896 = vpop.permute.xlu0 %895
          %vm897 = vcmask 1014784
          %v898 = vsel %vm897, %v890, %v892
          %v899 = vsel %vm897, %v894, %v896
          %904 = vst [vmem:[#allocation4 + $0x80] sm:$0xff] %v898
          %905 = vst.msk [vmem:[#allocation4 + $0x88] sm:$0xff] %vm614, %v892
          %906 = vst [vmem:[#allocation4 + $0x90] sm:$0xff] %v899
          %907 = vst.msk [vmem:[#allocation4 + $0x98] sm:$0xff] %vm614, %v896
          %s908 = smul.u32 %s747, 16
          %s909 = smul.addr %s908, 4
          %s910 = scalar_lea.vmem %s5, %s909
          %v911 = vld [vmem:[%s910] sm:$0xff]
          %v912 = vld [vmem:[%s910 + $0x8] sm:$0xff]
          %v913 = vld [vmem:[%s910 + $0x10] sm:$0xff]
          %v914 = vld [vmem:[%s910 + $0x18] sm:$0xff]
          %v915 = vld [vmem:[%s910 + $0x20] sm:$0xff]
          %v916 = vld [vmem:[%s910 + $0x28] sm:$0xff]
          %v917 = vld [vmem:[%s910 + $0x30] sm:$0xff]
          %v918 = vld [vmem:[%s910 + $0x38] sm:$0xff]
          %v919 = vld [vmem:[#allocation4] sm:$0xff]
          %v920 = vld [vmem:[#allocation4 + $0x8] sm:$0xff]
          %v921 = vld [vmem:[#allocation4 + $0x10] sm:$0xff]
          %v922 = vld [vmem:[#allocation4 + $0x18] sm:$0xff]
          %v923 = vld [vmem:[#allocation4 + $0x20] sm:$0xff]
          %v924 = vld [vmem:[#allocation4 + $0x28] sm:$0xff]
          %v925 = vld [vmem:[#allocation4 + $0x30] sm:$0xff]
          %v926 = vld [vmem:[#allocation4 + $0x38] sm:$0xff]
          %v927 = vld [vmem:[#allocation4 + $0x40] sm:$0xff]
          %v928 = vld [vmem:[#allocation4 + $0x48] sm:$0xff]
          %v929 = vld [vmem:[#allocation4 + $0x50] sm:$0xff]
          %v930 = vld [vmem:[#allocation4 + $0x58] sm:$0xff]
          %v931 = vld [vmem:[#allocation4 + $0x60] sm:$0xff]
          %v932 = vld [vmem:[#allocation4 + $0x68] sm:$0xff]
          %v933 = vld [vmem:[#allocation4 + $0x70] sm:$0xff]
          %v934 = vld [vmem:[#allocation4 + $0x78] sm:$0xff]
          %v935 = vld [vmem:[#allocation4 + $0x80] sm:$0xff]
          %v936 = vld [vmem:[#allocation4 + $0x88] sm:$0xff]
          %v937 = vld [vmem:[#allocation4 + $0x90] sm:$0xff]
          %v938 = vld [vmem:[#allocation4 + $0x98] sm:$0xff]
          %s939 = smul.u32 %s747, 64
          %s940 = scalar_lea.vmem %s6, %s939
          %v941 = vld [vmem:[%s940] sm:$0xff]
          %v942 = vld [vmem:[%s940 + $0x8] sm:$0xff]
          %v943 = vld [vmem:[%s940 + $0x10] sm:$0xff]
          %v944 = vld [vmem:[%s940 + $0x18] sm:$0xff]
          %v945 = vld [vmem:[%s940 + $0x20] sm:$0xff]
          %v946 = vld [vmem:[%s940 + $0x28] sm:$0xff]
          %v947 = vld [vmem:[%s940 + $0x30] sm:$0xff]
          %v948 = vld [vmem:[%s940 + $0x38] sm:$0xff]
          %950 = vset.pattern.permute.xlu0 0
          %951 = vperm.xlu0 %950, %v941
          %v952 = vpop.permute.xlu0 %951
          %955 = vset.pattern.permute.xlu0 0
          %956 = vperm.xlu0 %955, %v942
          %v957 = vpop.permute.xlu0 %956
          %960 = vset.pattern.permute.xlu0 0
          %961 = vperm.xlu0 %960, %v943
          %v962 = vpop.permute.xlu0 %961
          %965 = vset.pattern.permute.xlu0 0
          %966 = vperm.xlu0 %965, %v944
          %v967 = vpop.permute.xlu0 %966
          %970 = vset.pattern.permute.xlu0 0
          %971 = vperm.xlu0 %970, %v945
          %v972 = vpop.permute.xlu0 %971
          %975 = vset.pattern.permute.xlu0 0
          %976 = vperm.xlu0 %975, %v946
          %v977 = vpop.permute.xlu0 %976
          %980 = vset.pattern.permute.xlu0 0
          %981 = vperm.xlu0 %980, %v947
          %v982 = vpop.permute.xlu0 %981
          %985 = vset.pattern.permute.xlu0 0
          %986 = vperm.xlu0 %985, %v948
          %v987 = vpop.permute.xlu0 %986
          %v997 = vunpack.c.l.b16 %v911
          %v998 = vunpack.c.h.b16 %v911
          %v999 = vunpack.c.l.b16 %v912
          %v1000 = vunpack.c.h.b16 %v912
          %v1001 = vunpack.c.l.b16 %v913
          %v1002 = vunpack.c.h.b16 %v913
          %v1003 = vunpack.c.l.b16 %v914
          %v1004 = vunpack.c.h.b16 %v914
          %v1005 = vunpack.c.l.b16 %v915
          %v1006 = vunpack.c.h.b16 %v915
          %v1007 = vunpack.c.l.b16 %v916
          %v1008 = vunpack.c.h.b16 %v916
          %v1009 = vunpack.c.l.b16 %v917
          %v1010 = vunpack.c.h.b16 %v917
          %v1011 = vunpack.c.l.b16 %v918
          %v1012 = vunpack.c.h.b16 %v918
          %v1013 = vpack.c.b16 %v999, %v997
          %v1014 = vpack.c.b16 %v1000, %v998
          %v1015 = vpack.c.b16 %v1003, %v1001
          %v1016 = vpack.c.b16 %v1004, %v1002
          %v1017 = vpack.c.b16 %v1007, %v1005
          %v1018 = vpack.c.b16 %v1008, %v1006
          %v1019 = vpack.c.b16 %v1011, %v1009
          %v1020 = vpack.c.b16 %v1012, %v1010
          %vm1025 = vcmask 261120
          %v1027 = vsel %vm1025, %v1014, 0
          %v1030 = vsel %vm1025, %v1016, 0
          %v1033 = vsel %vm1025, %v1018, 0
          %v1036 = vsel %vm1025, %v1020, 0
          %1038 = vmatprep.subr.bf16.mxu0 %v920
          %1039 = vmatpush1.bf16.msra.mxu0 %v919
          %1040 = vmatprep.subr.bf16.mxu0 %v922
          %1041 = vmatpush1.bf16.msra.mxu0 %v921
          %1042 = vmatprep.subr.bf16.mxu0 %v924
          %1043 = vmatpush1.bf16.msra.mxu0 %v923
          %1044 = vmatprep.subr.bf16.mxu0 %v926
          %1045 = vmatpush1.bf16.msra.mxu0 %v925
          %1046 = vmatprep.subr.bf16.mxu0 %v928
          %1047 = vmatpush1.bf16.msra.mxu0 %v927
          %1048 = vmatprep.subr.bf16.mxu0 %v930
          %1049 = vmatpush1.bf16.msra.mxu0 %v929
          %1050 = vmatprep.subr.bf16.mxu0 %v932
          %1051 = vmatpush1.bf16.msra.mxu0 %v931
          %1052 = vmatprep.subr.bf16.mxu0 %v934
          %1053 = vmatpush1.bf16.msra.mxu0 %v933
          %1054 = vmatprep.subr.bf16.mxu0 %v936
          %1055 = vmatpush1.bf16.msra.mxu0 %v935
          %1056 = vmatprep.subr.bf16.mxu0 %v938
          %1057 = vmatpush1.bf16.msra.mxu0 %v937
          %1058 = vmatprep.subr.bf16.mxu0 0
          %1059 = vmatpush1.bf16.msra.mxu0 0
          %1060 = vmatprep.subr.bf16.mxu0 0
          %1061 = vmatpush1.bf16.msra.mxu0 0
          %1062 = vmatprep.subr.bf16.mxu0 0
          %1063 = vmatpush1.bf16.msra.mxu0 0
          %1064 = vmatprep.subr.bf16.mxu0 0
          %1065 = vmatpush1.bf16.msra.mxu0 0
          %1066 = vmatprep.subr.bf16.mxu0 0
          %1067 = vmatpush1.bf16.msra.mxu0 0
          %1068 = vmatprep.subr.bf16.mxu0 0
          %1069 = vmatpush1.bf16.msra.mxu0 0
          %1070 = vmatprep.mubr.bf16.mxu0 %v1027
          %1071 = vmatmul.mubr.bf16.gmra.mrb[0].mxu0 %v1013
          %v1072 = vpop.f32.mrb[0].mxu0
          %v1073 = vadd.f32 %v952, %v1072
          %v1074 = vpop.f32.mrb[0].mxu0
          %v1075 = vadd.f32 %v952, %v1074
          %v1076 = vpop.f32.mrb[0].mxu0
          %v1077 = vadd.f32 %v957, %v1076
          %v1078 = vpop.f32.mrb[0].mxu0
          %v1079 = vadd.f32 %v957, %v1078
          %1080 = vmatprep.mubr.bf16.mxu0 %v1030
          %1081 = vmatmul.mubr.bf16.gmra.mrb[0].mxu0 %v1015
          %v1082 = vpop.f32.mrb[0].mxu0
          %v1083 = vadd.f32 %v962, %v1082
          %v1084 = vpop.f32.mrb[0].mxu0
          %v1085 = vadd.f32 %v962, %v1084
          %v1086 = vpop.f32.mrb[0].mxu0
          %v1087 = vadd.f32 %v967, %v1086
          %v1088 = vpop.f32.mrb[0].mxu0
          %v1089 = vadd.f32 %v967, %v1088
          %1090 = vmatprep.mubr.bf16.mxu0 %v1033
          %1091 = vmatmul.mubr.bf16.gmra.mrb[0].mxu0 %v1017
          %v1092 = vpop.f32.mrb[0].mxu0
          %v1093 = vadd.f32 %v972, %v1092
          %v1094 = vpop.f32.mrb[0].mxu0
          %v1095 = vadd.f32 %v972, %v1094
          %v1096 = vpop.f32.mrb[0].mxu0
          %v1097 = vadd.f32 %v977, %v1096
          %v1098 = vpop.f32.mrb[0].mxu0
          %v1099 = vadd.f32 %v977, %v1098
          %1100 = vmatprep.mubr.bf16.mxu0 %v1036
          %1101 = vmatmul.mubr.bf16.gmra.mrb[0].mxu0 %v1019
          %v1102 = vpop.f32.mrb[0].mxu0
          %v1103 = vadd.f32 %v982, %v1102
          %v1104 = vpop.f32.mrb[0].mxu0
          %v1105 = vadd.f32 %v982, %v1104
          %v1106 = vpop.f32.mrb[0].mxu0
          %v1107 = vadd.f32 %v987, %v1106
          %v1108 = vpop.f32.mrb[0].mxu0
          %v1109 = vadd.f32 %v987, %v1108
          %1110 = vdwg.mxu0
          %v1111 = vtanh.pop %v1073
          %v1112 = vtanh.pop %v1075
          %v1113 = vtanh.pop %v1077
          %v1114 = vtanh.pop %v1079
          %v1115 = vtanh.pop %v1083
          %v1116 = vtanh.pop %v1085
          %v1117 = vtanh.pop %v1087
          %v1118 = vtanh.pop %v1089
          %v1119 = vxor.u32 %v1093, 2147483648
          %v1120 = vxor.u32 %v1095, 2147483648
          %v1121 = vxor.u32 %v1097, 2147483648
          %v1122 = vxor.u32 %v1099, 2147483648
          %v1123 = vxor.u32 %v1103, 2147483648
          %v1124 = vxor.u32 %v1105, 2147483648
          %v1125 = vxor.u32 %v1107, 2147483648
          %v1126 = vxor.u32 %v1109, 2147483648
          %v1127 = vmul.f32 %v1119, 1.442695
          %v1128 = vpow.pop %v1127
          %v1129 = vmul.f32 %v1120, 1.442695
          %v1130 = vpow.pop %v1129
          %v1131 = vmul.f32 %v1121, 1.442695
          %v1132 = vpow.pop %v1131
          %v1133 = vmul.f32 %v1122, 1.442695
          %v1134 = vpow.pop %v1133
          %v1135 = vmul.f32 %v1123, 1.442695
          %v1136 = vpow.pop %v1135
          %v1137 = vmul.f32 %v1124, 1.442695
          %v1138 = vpow.pop %v1137
          %v1139 = vmul.f32 %v1125, 1.442695
          %v1140 = vpow.pop %v1139
          %v1141 = vmul.f32 %v1126, 1.442695
          %v1142 = vpow.pop %v1141
          %v1143 = vadd.f32 %v1128, 1.0
          %v1144 = vadd.f32 %v1130, 1.0
          %v1145 = vadd.f32 %v1132, 1.0
          %v1146 = vadd.f32 %v1134, 1.0
          %v1147 = vadd.f32 %v1136, 1.0
          %v1148 = vadd.f32 %v1138, 1.0
          %v1149 = vadd.f32 %v1140, 1.0
          %v1150 = vadd.f32 %v1142, 1.0
          %v1151 = vrcp.pop %v1143
          %v1152 = vmul.f32 1.0, %v1151
          %v1153 = vrcp.pop %v1144
          %v1154 = vmul.f32 1.0, %v1153
          %v1155 = vrcp.pop %v1145
          %v1156 = vmul.f32 1.0, %v1155
          %v1157 = vrcp.pop %v1146
          %v1158 = vmul.f32 1.0, %v1157
          %v1159 = vrcp.pop %v1147
          %v1160 = vmul.f32 1.0, %v1159
          %v1161 = vrcp.pop %v1148
          %v1162 = vmul.f32 1.0, %v1161
          %v1163 = vrcp.pop %v1149
          %v1164 = vmul.f32 1.0, %v1163
          %v1165 = vrcp.pop %v1150
          %v1166 = vmul.f32 1.0, %v1165
          %v1167 = vmul.f32 %v1111, %v1152
          %v1168 = vmul.f32 %v1112, %v1154
          %v1169 = vmul.f32 %v1113, %v1156
          %v1170 = vmul.f32 %v1114, %v1158
          %v1171 = vmul.f32 %v1115, %v1160
          %v1172 = vmul.f32 %v1116, %v1162
          %v1173 = vmul.f32 %v1117, %v1164
          %v1174 = vmul.f32 %v1118, %v1166
          %s1175 = smul.u32 %s747, 8
          %s1176 = smul.addr %s1175, 4
          %s1177 = scalar_lea.vmem %s7, %s1176
          %v1178 = vld [vmem:[%s1177] sm:$0xf]
          %v1179 = vld [vmem:[%s1177 + $0x4] sm:$0xf]
          %v1180 = vld [vmem:[%s1177 + $0x8] sm:$0xf]
          %v1181 = vld [vmem:[%s1177 + $0xc] sm:$0xf]
          %v1182 = vld [vmem:[%s1177 + $0x10] sm:$0xf]
          %v1183 = vld [vmem:[%s1177 + $0x14] sm:$0xf]
          %v1184 = vld [vmem:[%s1177 + $0x18] sm:$0xf]
          %v1185 = vld [vmem:[%s1177 + $0x1c] sm:$0xf]
          %v1186 = vpack.c.bf16 %v1169, %v1167
          %v1187 = vpack.c.bf16 %v1170, %v1168
          %v1188 = vpack.c.bf16 %v1173, %v1171
          %v1189 = vpack.c.bf16 %v1174, %v1172
          %s1190 = scalar_lea.vmem %s8, %s939
          %v1191 = vld [vmem:[%s1190] sm:$0xff]
          %v1192 = vld [vmem:[%s1190 + $0x8] sm:$0xff]
          %v1193 = vld [vmem:[%s1190 + $0x10] sm:$0xff]
          %v1194 = vld [vmem:[%s1190 + $0x18] sm:$0xff]
          %v1195 = vld [vmem:[%s1190 + $0x20] sm:$0xff]
          %v1196 = vld [vmem:[%s1190 + $0x28] sm:$0xff]
          %v1197 = vld [vmem:[%s1190 + $0x30] sm:$0xff]
          %v1198 = vld [vmem:[%s1190 + $0x38] sm:$0xff]
          %1200 = vset.pattern.permute.xlu0 0
          %1201 = vperm.xlu0 %1200, %v1191
          %v1202 = vpop.permute.xlu0 %1201
          %1205 = vset.pattern.permute.xlu0 0
          %1206 = vperm.xlu0 %1205, %v1192
          %v1207 = vpop.permute.xlu0 %1206
          %1210 = vset.pattern.permute.xlu0 0
          %1211 = vperm.xlu0 %1210, %v1193
          %v1212 = vpop.permute.xlu0 %1211
          %1215 = vset.pattern.permute.xlu0 0
          %1216 = vperm.xlu0 %1215, %v1194
          %v1217 = vpop.permute.xlu0 %1216
          %1220 = vset.pattern.permute.xlu0 0
          %1221 = vperm.xlu0 %1220, %v1195
          %v1222 = vpop.permute.xlu0 %1221
          %1225 = vset.pattern.permute.xlu0 0
          %1226 = vperm.xlu0 %1225, %v1196
          %v1227 = vpop.permute.xlu0 %1226
          %1230 = vset.pattern.permute.xlu0 0
          %1231 = vperm.xlu0 %1230, %v1197
          %v1232 = vpop.permute.xlu0 %1231
          %1235 = vset.pattern.permute.xlu0 0
          %1236 = vperm.xlu0 %1235, %v1198
          %v1237 = vpop.permute.xlu0 %1236
          %v1247 = vunpack.c.l.b16 %v1178
          %v1248 = vunpack.c.l.b16 %v1179
          %v1249 = vunpack.c.l.b16 %v1180
          %v1250 = vunpack.c.l.b16 %v1181
          %v1251 = vunpack.c.l.b16 %v1182
          %v1252 = vunpack.c.l.b16 %v1183
          %v1253 = vunpack.c.l.b16 %v1184
          %v1254 = vunpack.c.l.b16 %v1185
          %v1255 = vpack.c.b16 %v1248, %v1247
          %v1256 = vpack.c.b16 %v1250, %v1249
          %v1257 = vpack.c.b16 %v1252, %v1251
          %v1258 = vpack.c.b16 %v1254, %v1253
          %v1260 = vsel %vm1025, %v1255, 0
          %v1263 = vsel %vm1025, %v1256, 0
          %v1266 = vsel %vm1025, %v1257, 0
          %v1269 = vsel %vm1025, %v1258, 0
          %1271 = vmatprep.subr.bf16.mxu0 %v1187
          %1272 = vmatpush1.bf16.msra.mxu0 %v1186
          %1273 = vmatprep.subr.bf16.mxu0 %v1189
          %1274 = vmatpush1.bf16.msra.mxu0 %v1188
          %1275 = vmatprep.subr.bf16.mxu0 0
          %1276 = vmatpush1.bf16.msra.mxu0 0
          %1277 = vmatprep.subr.bf16.mxu0 0
          %1278 = vmatpush1.bf16.msra.mxu0 0
          %1279 = vmatprep.subr.bf16.mxu0 0
          %1280 = vmatpush1.bf16.msra.mxu0 0
          %1281 = vmatprep.subr.bf16.mxu0 0
          %1282 = vmatpush1.bf16.msra.mxu0 0
          %1283 = vmatprep.subr.bf16.mxu0 0
          %1284 = vmatpush1.bf16.msra.mxu0 0
          %1285 = vmatprep.subr.bf16.mxu0 0
          %1286 = vmatpush1.bf16.msra.mxu0 0
          %1287 = vmatprep.subr.bf16.mxu0 0
          %1288 = vmatpush1.bf16.msra.mxu0 0
          %1289 = vmatprep.subr.bf16.mxu0 0
          %1290 = vmatpush1.bf16.msra.mxu0 0
          %1291 = vmatprep.subr.bf16.mxu0 0
          %1292 = vmatpush1.bf16.msra.mxu0 0
          %1293 = vmatprep.subr.bf16.mxu0 0
          %1294 = vmatpush1.bf16.msra.mxu0 0
          %1295 = vmatprep.subr.bf16.mxu0 0
          %1296 = vmatpush1.bf16.msra.mxu0 0
          %1297 = vmatprep.subr.bf16.mxu0 0
          %1298 = vmatpush1.bf16.msra.mxu0 0
          %1299 = vmatprep.subr.bf16.mxu0 0
          %1300 = vmatpush1.bf16.msra.mxu0 0
          %1301 = vmatprep.subr.bf16.mxu0 0
          %1302 = vmatpush1.bf16.msra.mxu0 0
          %1303 = vmatprep.mubr.bf16.mxu0 0
          %1304 = vmatmul.mubr.bf16.gmra.mrb[0].mxu0 %v1260
          %v1305 = vpop.f32.mrb[0].mxu0
          %v1306 = vadd.f32 %v1202, %v1305
          %v1307 = vpop.f32.mrb[0].mxu0
          %v1308 = vadd.f32 %v1202, %v1307
          %v1309 = vpop.f32.mrb[0].mxu0
          %v1310 = vadd.f32 %v1207, %v1309
          %v1311 = vpop.f32.mrb[0].mxu0
          %v1312 = vadd.f32 %v1207, %v1311
          %1313 = vmatprep.mubr.bf16.mxu0 0
          %1314 = vmatmul.mubr.bf16.gmra.mrb[0].mxu0 %v1263
          %v1315 = vpop.f32.mrb[0].mxu0
          %v1316 = vadd.f32 %v1212, %v1315
          %v1317 = vpop.f32.mrb[0].mxu0
          %v1318 = vadd.f32 %v1212, %v1317
          %v1319 = vpop.f32.mrb[0].mxu0
          %v1320 = vadd.f32 %v1217, %v1319
          %v1321 = vpop.f32.mrb[0].mxu0
          %v1322 = vadd.f32 %v1217, %v1321
          %1323 = vmatprep.mubr.bf16.mxu0 0
          %1324 = vmatmul.mubr.bf16.gmra.mrb[0].mxu0 %v1266
          %v1325 = vpop.f32.mrb[0].mxu0
          %v1326 = vadd.f32 %v1222, %v1325
          %v1327 = vpop.f32.mrb[0].mxu0
          %v1328 = vadd.f32 %v1222, %v1327
          %v1329 = vpop.f32.mrb[0].mxu0
          %v1330 = vadd.f32 %v1227, %v1329
          %v1331 = vpop.f32.mrb[0].mxu0
          %v1332 = vadd.f32 %v1227, %v1331
          %1333 = vmatprep.mubr.bf16.mxu0 0
          %1334 = vmatmul.mubr.bf16.gmra.mrb[0].mxu0 %v1269
          %v1335 = vpop.f32.mrb[0].mxu0
          %v1336 = vadd.f32 %v1232, %v1335
          %v1337 = vpop.f32.mrb[0].mxu0
          %v1338 = vadd.f32 %v1232, %v1337
          %v1339 = vpop.f32.mrb[0].mxu0
          %v1340 = vadd.f32 %v1237, %v1339
          %v1341 = vpop.f32.mrb[0].mxu0
          %v1342 = vadd.f32 %v1237, %v1341
          %1343 = vdwg.mxu0
          %v1344 = vld [vmem:[#allocation2] sm:$0xff]
          %v1345 = vld [vmem:[#allocation2 + $0x8] sm:$0xff]
          %v1346 = vld [vmem:[#allocation2 + $0x10] sm:$0xff]
          %v1347 = vld [vmem:[#allocation2 + $0x18] sm:$0xff]
          %v1348 = vld [vmem:[#allocation2 + $0x20] sm:$0xff]
          %v1349 = vld [vmem:[#allocation2 + $0x28] sm:$0xff]
          %v1350 = vld [vmem:[#allocation2 + $0x30] sm:$0xff]
          %v1351 = vld [vmem:[#allocation2 + $0x38] sm:$0xff]
          %1360 = vrot.lane.b32.xlu0 %v1306, 2
          %v1361 = vpop.permute.xlu0 %1360
          %1362 = vrot.lane.b32.xlu0 %v1308, 2
          %v1363 = vpop.permute.xlu0 %1362
          %1364 = vrot.lane.b32.xlu0 %v1310, 2
          %v1365 = vpop.permute.xlu0 %1364
          %1366 = vrot.lane.b32.xlu0 %v1312, 2
          %v1367 = vpop.permute.xlu0 %1366
          %1368 = vrot.lane.b32.xlu0 %v1316, 2
          %v1369 = vpop.permute.xlu0 %1368
          %1370 = vrot.lane.b32.xlu0 %v1318, 2
          %v1371 = vpop.permute.xlu0 %1370
          %1372 = vrot.lane.b32.xlu0 %v1320, 2
          %v1373 = vpop.permute.xlu0 %1372
          %1374 = vrot.lane.b32.xlu0 %v1322, 2
          %v1375 = vpop.permute.xlu0 %1374
          %v1376 = vsel %vm682, %v1361, %v1363
          %v1377 = vsel %vm682, %v1365, %v1367
          %v1378 = vsel %vm682, %v1369, %v1371
          %v1379 = vsel %vm682, %v1373, %v1375
          %v1388 = vadd.f32 %v1344, %v1361
          %v1389 = vadd.f32 %v1345, %v1376
          %v1390 = vadd.f32 %v1346, %v1365
          %v1391 = vadd.f32 %v1347, %v1377
          %v1392 = vadd.f32 %v1348, %v1369
          %v1393 = vadd.f32 %v1349, %v1378
          %v1394 = vadd.f32 %v1350, %v1373
          %v1395 = vadd.f32 %v1351, %v1379
          %1396 = vrot.lane.b32.xlu0 %v559, 2
          %v1397 = vpop.permute.xlu0 %1396
          %1398 = vrot.lane.b32.xlu0 %v563, 2
          %v1399 = vpop.permute.xlu0 %1398
          %v1400 = vsel %vm682, %v1397, %v1399
          %v1403 = vmul.f32 %v1388, %v1397
          %v1404 = vmul.f32 %v1389, %v1400
          %v1405 = vmul.f32 %v1390, %v1397
          %v1406 = vmul.f32 %v1391, %v1400
          %v1407 = vmul.f32 %v1392, %v1397
          %v1408 = vmul.f32 %v1393, %v1400
          %v1409 = vmul.f32 %v1394, %v1397
          %v1410 = vmul.f32 %v1395, %v1400
          %1411 = vst.msk [vmem:[#allocation2] sm:$0xff] %vm728, %v1403
          %1412 = vst.msk [vmem:[#allocation2 + $0x8] sm:$0xff] %vm730, %v1404
          %1413 = vst.msk [vmem:[#allocation2 + $0x10] sm:$0xff] %vm728, %v1405
          %1414 = vst.msk [vmem:[#allocation2 + $0x18] sm:$0xff] %vm730, %v1406
          %1415 = vst.msk [vmem:[#allocation2 + $0x20] sm:$0xff] %vm728, %v1407
          %1416 = vst.msk [vmem:[#allocation2 + $0x28] sm:$0xff] %vm730, %v1408
          %1417 = vst.msk [vmem:[#allocation2 + $0x30] sm:$0xff] %vm728, %v1409
          %1418 = vst.msk [vmem:[#allocation2 + $0x38] sm:$0xff] %vm730, %v1410
          %v1419 = vld [vmem:[#allocation3] sm:$0xff]
          %v1420 = vld [vmem:[#allocation3 + $0x8] sm:$0xff]
          %v1421 = vld [vmem:[#allocation3 + $0x10] sm:$0xff]
          %v1422 = vld [vmem:[#allocation3 + $0x18] sm:$0xff]
          %v1423 = vld [vmem:[#allocation3 + $0x20] sm:$0xff]
          %v1424 = vld [vmem:[#allocation3 + $0x28] sm:$0xff]
          %v1425 = vld [vmem:[#allocation3 + $0x30] sm:$0xff]
          %v1426 = vld [vmem:[#allocation3 + $0x38] sm:$0xff]
          %v1427 = vadd.f32 %v1419, %v1326
          %v1428 = vadd.f32 %v1420, %v1328
          %v1429 = vadd.f32 %v1421, %v1330
          %v1430 = vadd.f32 %v1422, %v1332
          %v1431 = vadd.f32 %v1423, %v1336
          %v1432 = vadd.f32 %v1424, %v1338
          %v1433 = vadd.f32 %v1425, %v1340
          %v1434 = vadd.f32 %v1426, %v1342
          %1435 = vst [vmem:[#allocation3] sm:$0xff] %v1427
          %1436 = vst.msk [vmem:[#allocation3 + $0x8] sm:$0xff] %vm614, %v1428
          %1437 = vst [vmem:[#allocation3 + $0x10] sm:$0xff] %v1429
          %1438 = vst.msk [vmem:[#allocation3 + $0x18] sm:$0xff] %vm614, %v1430
          %1439 = vst [vmem:[#allocation3 + $0x20] sm:$0xff] %v1431
          %1440 = vst.msk [vmem:[#allocation3 + $0x28] sm:$0xff] %vm614, %v1432
          %1441 = vst [vmem:[#allocation3 + $0x30] sm:$0xff] %v1433
          %1442 = vst.msk [vmem:[#allocation3 + $0x38] sm:$0xff] %vm614, %v1434
        $region69: #{tpu_custom_call.1} parent=63 // loop_footer
          %s751 = sadd.s32 1, %s747
        $region70: #{tpu_custom_call.1} parent=63 // loop_footer_branch
          %746 = sbr.rel target = $region66
        $region71: #{tpu_custom_call.1} parent=63 // loop_exit
          _
        %v1443 = vld [vmem:[#allocation3] sm:$0xff]
        %v1444 = vld [vmem:[#allocation3 + $0x8] sm:$0xff]
        %v1445 = vld [vmem:[#allocation3 + $0x10] sm:$0xff]
        %v1446 = vld [vmem:[#allocation3 + $0x18] sm:$0xff]
        %v1447 = vld [vmem:[#allocation3 + $0x20] sm:$0xff]
        %v1448 = vld [vmem:[#allocation3 + $0x28] sm:$0xff]
        %v1449 = vld [vmem:[#allocation3 + $0x30] sm:$0xff]
        %v1450 = vld [vmem:[#allocation3 + $0x38] sm:$0xff]
        %v1451 = vmul.f32 %v1443, %v559
        %v1452 = vmul.f32 %v1444, %v563
        %v1453 = vmul.f32 %v1445, %v559
        %v1454 = vmul.f32 %v1446, %v563
        %v1455 = vmul.f32 %v1447, %v559
        %v1456 = vmul.f32 %v1448, %v563
        %v1457 = vmul.f32 %v1449, %v559
        %v1458 = vmul.f32 %v1450, %v563
        %v1459 = vpack.c.bf16 %v1453, %v1451
        %v1460 = vpack.c.bf16 %v1454, %v1452
        %v1461 = vpack.c.bf16 %v1457, %v1455
        %v1462 = vpack.c.bf16 %v1458, %v1456
        %v1463 = vld [vmem:[%s9] sm:$0xf]
        %v1464 = vld [vmem:[%s9 + $0x4] sm:$0xf]
        %v1465 = vld [vmem:[%s10] sm:$0xff]
        %v1466 = vld [vmem:[%s10 + $0x8] sm:$0xff]
        %1468 = vset.pattern.permute.xlu0 0
        %1469 = vperm.xlu0 %1468, %v1465
        %v1470 = vpop.permute.xlu0 %1469
        %1473 = vset.pattern.permute.xlu0 0
        %1474 = vperm.xlu0 %1473, %v1466
        %v1475 = vpop.permute.xlu0 %1474
        %v1479 = vunpack.c.l.b16 %v1463
        %v1480 = vunpack.c.l.b16 %v1464
        %v1481 = vpack.c.b16 %v1480, %v1479
        %1486 = vrot.lane.b32.xlu0 %v1459, 120
        %v1487 = vpop.permute.xlu0 %1486
        %1488 = vrot.lane.b32.xlu0 %v1460, 120
        %v1489 = vpop.permute.xlu0 %1488
        %1490 = vrot.lane.b32.xlu0 %v1461, 120
        %v1491 = vpop.permute.xlu0 %1490
        %1492 = vrot.lane.b32.xlu0 %v1462, 120
        %v1493 = vpop.permute.xlu0 %1492
        %vm1494 = vcmask 982016
        %v1495 = vsel %vm1494, %v1487, %v1489
        %v1496 = vsel %vm1494, %v1491, %v1493
        %vm1499 = vcmask 261120
        %v1501 = vsel %vm1499, %v1481, 0
        %1503 = vmatprep.subr.bf16.mxu0 0
        %1504 = vmatpush1.bf16.msra.mxu0 %v1495
        %1505 = vmatprep.subr.bf16.mxu0 0
        %1506 = vmatpush1.bf16.msra.mxu0 %v1496
        %1507 = vmatprep.subr.bf16.mxu0 0
        %1508 = vmatpush1.bf16.msra.mxu0 0
        %1509 = vmatprep.subr.bf16.mxu0 0
        %1510 = vmatpush1.bf16.msra.mxu0 0
        %1511 = vmatprep.subr.bf16.mxu0 0
        %1512 = vmatpush1.bf16.msra.mxu0 0
        %1513 = vmatprep.subr.bf16.mxu0 0
        %1514 = vmatpush1.bf16.msra.mxu0 0
        %1515 = vmatprep.subr.bf16.mxu0 0
        %1516 = vmatpush1.bf16.msra.mxu0 0
        %1517 = vmatprep.subr.bf16.mxu0 0
        %1518 = vmatpush1.bf16.msra.mxu0 0
        %1519 = vmatprep.subr.bf16.mxu0 0
        %1520 = vmatpush1.bf16.msra.mxu0 0
        %1521 = vmatprep.subr.bf16.mxu0 0
        %1522 = vmatpush1.bf16.msra.mxu0 0
        %1523 = vmatprep.subr.bf16.mxu0 0
        %1524 = vmatpush1.bf16.msra.mxu0 0
        %1525 = vmatprep.subr.bf16.mxu0 0
        %1526 = vmatpush1.bf16.msra.mxu0 0
        %1527 = vmatprep.subr.bf16.mxu0 0
        %1528 = vmatpush1.bf16.msra.mxu0 0
        %1529 = vmatprep.subr.bf16.mxu0 0
        %1530 = vmatpush1.bf16.msra.mxu0 0
        %1531 = vmatprep.subr.bf16.mxu0 0
        %1532 = vmatpush1.bf16.msra.mxu0 0
        %1533 = vmatprep.subr.bf16.mxu0 0
        %1534 = vmatpush1.bf16.msra.mxu0 0
        %1535 = vmatprep.mubr.bf16.mxu0 0
        %1536 = vmatmul.mubr.bf16.gmra.mrb[0].mxu0 %v1501
        %v1537 = vpop.f32.mrb[0].mxu0
        %v1538 = vadd.f32 %v1470, %v1537
        %v1539 = vpop.f32.mrb[0].mxu0
        %v1540 = vpop.f32.mrb[0].mxu0
        %v1541 = vadd.f32 %v1475, %v1540
        %v1542 = vpop.f32.mrb[0].mxu0
        %1543 = vdwg.mxu0
        %1544 = vrot.lane.b32.xlu0 %v559, 120
        %v1545 = vpop.permute.xlu0 %1544
        %1546 = vrot.lane.b32.xlu0 %v563, 120
        %v1547 = vpop.permute.xlu0 %1546
        %vm1548 = vcmask 982016
        %v1549 = vsel %vm1548, %v1545, %v1547
        %v1551 = vmul.f32 %v1538, %v1549
        %v1552 = vmul.f32 %v1541, %v1549
        %v1553 = vld [vmem:[%s550] sm:$0xff]
        %v1554 = vmul.f32 %v1552, 1.442695
        %v1555 = vpow.pop %v1554
        %v1556 = vmul.f32 %v1553, %v1555
        %v1557 = vadd.f32 %v1551, %v1556
        %v1558 = vmul.f32 %v1557, %v1549
        %1559 = vst [vmem:[%s511] sm:$0xff] %v1558
        %1560 = vst [vmem:[%s518] sm:$0xff] %v1551
        %1561 = vst [vmem:[%s525] sm:$0xff] %v1552
        %s1562 = sand.u32 %s305, 1
        %s1563 = scalar_lea.sflag [#allocation6], %s1562
        %s1564 = sand.u32 %s305, 1
        %s1565 = smul.addr %s1564, 8
        %s1566 = scalar_lea.vmem [#allocation5], %s1565
        %s1567 = sand.u32 %s31, 1
        %s1568 = scalar_lea.sflag [#allocation8], %s1567
        %s1569 = sand.u32 %s333, 1
        %s1570 = smul.addr %s1569, 8
        %s1571 = scalar_lea.vmem [#allocation7], %s1570
        %s1572 = sand.u32 %s31, 1
        %s1573 = scalar_lea.sflag [#allocation8], %s1572
        %s1574 = sand.u32 %s361, 1
        %s1575 = smul.addr %s1574, 8
        %s1576 = scalar_lea.vmem [#allocation9], %s1575
        // Predicated region
        $region72: #{tpu_custom_call.1} parent=63 // pred_check
          %p1577 = pneg %p315
        $region73: #{tpu_custom_call.1} parent=63 // pred_check_branch
          %1579 = sbr.rel (%p1577) target = $region75
        $region74: #{tpu_custom_call.1} parent=63 // pred_region
          %s1581 = ssub.s32 128, 128
          %1582 = vsyncadd %s1563, %s1581
          %s1583 = smul.addr %s35, 2
          %s1584 = sadd.s32 %s36, %s1583
          %s1585 = smul.addr %s1584, 128
          %s1586 = scalar_lea.hbm %s11, %s1585
          %s1588 = sshll.u32 %s1566, 4
          %s1589 = int_to_ptr.vmem [resolvable:$true] %s1588
          %1591 = dma.vmem_to_hbm [thread:$0]  %s1589, 128, %s1586, %s1563
        $region75: #{tpu_custom_call.1} parent=63 // pred_fallthru
          _
        // Predicated region
        $region76: #{tpu_custom_call.1} parent=63 // pred_check
          %p1592 = pneg %p343
        $region77: #{tpu_custom_call.1} parent=63 // pred_check_branch
          %1594 = sbr.rel (%p1592) target = $region79
        $region78: #{tpu_custom_call.1} parent=63 // pred_region
          %s1596 = ssub.s32 128, 128
          %1597 = vsyncadd %s1568, %s1596
          %s1598 = smul.addr %s35, 2
          %s1599 = sadd.s32 %s36, %s1598
          %s1600 = smul.addr %s1599, 128
          %s1601 = scalar_lea.hbm %s12, %s1600
          %s1603 = sshll.u32 %s1571, 4
          %s1604 = int_to_ptr.vmem [resolvable:$true] %s1603
          %1606 = dma.vmem_to_hbm [thread:$0]  %s1604, 128, %s1601, %s1568
        $region79: #{tpu_custom_call.1} parent=63 // pred_fallthru
          _
        // Predicated region
        $region80: #{tpu_custom_call.1} parent=63 // pred_check
          %p1607 = pneg %p371
        $region81: #{tpu_custom_call.1} parent=63 // pred_check_branch
          %1609 = sbr.rel (%p1607) target = $region83
        $region82: #{tpu_custom_call.1} parent=63 // pred_region
          %s1611 = ssub.s32 128, 128
          %1612 = vsyncadd %s1573, %s1611
          %s1613 = smul.addr %s35, 2
          %s1614 = sadd.s32 %s36, %s1613
          %s1615 = smul.addr %s1614, 128
          %s1616 = scalar_lea.hbm %s13, %s1615
          %s1618 = sshll.u32 %s1576, 4
          %s1619 = int_to_ptr.vmem [resolvable:$true] %s1618
          %1621 = dma.vmem_to_hbm [thread:$0]  %s1619, 128, %s1616, %s1573
        $region83: #{tpu_custom_call.1} parent=63 // pred_fallthru
          _
      $region64: #{tpu_custom_call.1} parent=5 // pred_fallthru
        _
      %p1622 = scmp.le.s32.totalorder 2, %s26
      // Predicated region
      $region84: #{tpu_custom_call.1} parent=5 // pred_check
        %p1623 = pneg %p1622
      $region85: #{tpu_custom_call.1} parent=5 // pred_check_branch
        %1625 = sbr.rel (%p1623) target = $region87
      $region86: #{tpu_custom_call.1} parent=5 // pred_region
        %s1626 = ssub.s32 %s26, 2
        // Predicated region
        $region88: #{tpu_custom_call.1} parent=86 // pred_check
          %p1627 = pneg %p321
        $region89: #{tpu_custom_call.1} parent=86 // pred_check_branch
          %1629 = sbr.rel (%p1627) target = $region91
        $region90: #{tpu_custom_call.1} parent=86 // pred_region
          %s1630 = sand.u32 %s306, 1
          %s1631 = scalar_lea.sflag [#allocation6], %s1630
          %s1632 = sand.u32 %s306, 1
          %s1633 = smul.addr %s1632, 8
          %s1634 = scalar_lea.vmem [#allocation5], %s1633
          %1635 = dma.done %s1631, 128
        $region91: #{tpu_custom_call.1} parent=86 // pred_fallthru
          _
        // Predicated region
        $region92: #{tpu_custom_call.1} parent=86 // pred_check
          %p1636 = pneg %p349
        $region93: #{tpu_custom_call.1} parent=86 // pred_check_branch
          %1638 = sbr.rel (%p1636) target = $region95
        $region94: #{tpu_custom_call.1} parent=86 // pred_region
          %s1639 = sand.u32 %s32, 1
          %s1640 = scalar_lea.sflag [#allocation8], %s1639
          %s1641 = sand.u32 %s334, 1
          %s1642 = smul.addr %s1641, 8
          %s1643 = scalar_lea.vmem [#allocation7], %s1642
          %1644 = dma.done %s1640, 128
        $region95: #{tpu_custom_call.1} parent=86 // pred_fallthru
          _
        // Predicated region
        $region96: #{tpu_custom_call.1} parent=86 // pred_check
          %p1645 = pneg %p377
        $region97: #{tpu_custom_call.1} parent=86 // pred_check_branch
          %1647 = sbr.rel (%p1645) target = $region99
        $region98: #{tpu_custom_call.1} parent=86 // pred_region
          %s1648 = sand.u32 %s32, 1
          %s1649 = scalar_lea.sflag [#allocation8], %s1648
          %s1650 = sand.u32 %s362, 1
          %s1651 = smul.addr %s1650, 8
          %s1652 = scalar_lea.vmem [#allocation9], %s1651
          %1653 = dma.done %s1649, 128
        $region99: #{tpu_custom_call.1} parent=86 // pred_fallthru
          _
      $region87: #{tpu_custom_call.1} parent=5 // pred_fallthru
        _
    $region6: #{tpu_custom_call.1} parent=1 // loop_footer
      %s30 = sadd.s32 1, %s26
    $region7: #{tpu_custom_call.1} parent=1 // loop_footer_branch
      %25 = sbr.rel target = $region3
    $region8: #{tpu_custom_call.1} parent=1 // loop_exit
      _
    %1654 = vsyncpa [#allocation6], 1
    %s1655 = scalar_lea.sflag [#allocation6], 1
    %1656 = vsyncpa %s1655, 1
    %1657 = vsyncpa [#allocation8], 1
    %s1658 = scalar_lea.sflag [#allocation8], 1
    %1659 = vsyncpa %s1658, 1

</llo_original>
